<compile_context>
chip_gen: v5e
topology: v5e:2x2
jax: 0.10.0
libtpu: 0.0.40
codegen_flags: <defaults>
</compile_context>

<pallas_src>
import jax
import jax.numpy as jnp
from jax import lax
from jax.experimental import pallas as pl
from jax.experimental.pallas import tpu as pltpu

NUM_CLASSES = 3
OUT_PAD = 128    # lane-dense padded logits width (real logits live in [:, :3])
SPA_PAD = 128    # spatial (8 features) zero-padded to one full lane tile
CAT_PAD = 128    # category one-hot width (n_category+1 <= 128)
BATCH_PAD = 16   # bf16 sublane tile: 16 rows per vreg


def _round_up(x, m):
    return ((x + m - 1) // m) * m


# ----------------------------------------------------------------------------
# Pallas kernel: embedding (one-hot MXU) + LSTM recurrence + MLB fusion + MLP
# ----------------------------------------------------------------------------
def oracle_kernel(
    q_ref,      # [T*Bp, 1]              int32  question ids, time-major flat
    len_ref,    # [Bp, 1]                int32  sequence lengths
    emb_ref,    # [Wpad, E]              bf16   word embedding (zero-pad rows)
    wih_ref,    # [E, 4H]                bf16   LSTM input weights (i,f,o,g)
    whh_ref,    # [H, 4H]                bf16   LSTM hidden weights (i,f,o,g)
    b_ref,      # [1, 4H]                f32    combined LSTM bias (bih+bhh)
    img_ref,    # [Bp, Dimg]             bf16   image features
    wv_ref,     # [Dimg, F]              bf16   linear_v1
    bv_ref,     # [1, F]                 f32
    wq_ref,     # [H, F]                 bf16   linear_q
    bq_ref,     # [1, F]                 f32
    spa_ref,    # [Bp, SPA_PAD]          bf16   spatial (8 real lanes, zero-pad)
    cat_ref,    # [Bp, 1]                int32  category ids
    w1_ref,     # [F+SPA_PAD+CAT_PAD, M] bf16   fused fc1
    b1_ref,     # [1, M]                 f32
    w2_ref,     # [M, OUT_PAD]           bf16   fc2, zero-padded to 128 lanes
    b2_ref,     # [1, OUT_PAD]           f32
    out_ref,    # [Bp, OUT_PAD]          f32
    xw_scr,     # [T*Bp, 4H]             f32    scratch: x @ Wih + bias
):
    TB = q_ref.shape[0]
    Bp = len_ref.shape[0]
    T = TB // Bp
    Wpad = emb_ref.shape[0]
    H = whh_ref.shape[0]

    # ---- Word-embedding gather as a one-hot MXU matmul (word_num is tiny). ----
    iota_w = lax.broadcasted_iota(jnp.int32, (TB, Wpad), 1)
    onehot_q = jnp.where(q_ref[...] == iota_w, 1.0, 0.0).astype(jnp.bfloat16)
    x_flat = jnp.dot(onehot_q, emb_ref[...],
                     preferred_element_type=jnp.float32).astype(jnp.bfloat16)

    # ---- Hoisted input projection: one MXU GEMM for all timesteps (+ bias). ----
    xw_scr[...] = jnp.dot(x_flat, wih_ref[...],
                          preferred_element_type=jnp.float32) + b_ref[...]

    lens = len_ref[...]          # [Bp, 1]
    whh = whh_ref[...]           # hoisted: read once, reused across the loop

    def lstm_cell(gates, h, c, t):
        # Gate layout (i, f, o | g): one sigmoid over a 3H slab, one tanh over H.
        sig = jax.nn.sigmoid(gates[:, : 3 * H])
        i_g = sig[:, 0:H]
        f_g = sig[:, H:2 * H]
        o_g = sig[:, 2 * H:3 * H]
        g_g = jnp.tanh(gates[:, 3 * H:])
        c_new = f_g * c + i_g * g_g
        h_new = o_g * jnp.tanh(c_new)
        valid = t < lens         # [Bp, 1] pack_padded_sequence semantics
        return jnp.where(valid, h_new, h), jnp.where(valid, c_new, c)

    # t = 0: hidden state is zero -> skip the h @ Whh matmul entirely.
    zero = jnp.zeros((Bp, H), jnp.float32)
    h, c = lstm_cell(xw_scr[0:Bp, :], zero, zero, 0)

    # Short static trip count -> statically unrolled; slices are static.
    for t in range(1, T):
        gates = xw_scr[t * Bp:(t + 1) * Bp, :] + jnp.dot(
            h.astype(jnp.bfloat16), whh, preferred_element_type=jnp.float32)
        h, c = lstm_cell(gates, h, c, t)

    # ---- MLB fusion + MLP head -----------------------------------------------
    hq = jnp.dot(h.astype(jnp.bfloat16), wq_ref[...],
                 preferred_element_type=jnp.float32) + bq_ref[...]
    hv = jnp.dot(img_ref[...], wv_ref[...],
                 preferred_element_type=jnp.float32) + bv_ref[...]
    xv = (hq * hv).astype(jnp.bfloat16)                              # [Bp, F]

    # Category-embedding gather folded into fc1: one-hot rows select the
    # precomputed (cat_emb @ W1c) table inside the single fused fc1 GEMM.
    iota_c = lax.broadcasted_iota(jnp.int32, (Bp, CAT_PAD), 1)
    onehot_c = jnp.where(cat_ref[...] == iota_c, 1.0, 0.0).astype(jnp.bfloat16)

    big = jnp.concatenate([xv, spa_ref[...], onehot_c], axis=1)      # [Bp, F+256]
    h1 = jnp.dot(big, w1_ref[...], preferred_element_type=jnp.float32) + b1_ref[...]
    h1 = jnp.maximum(h1, 0.0)                                        # ReLU
    out_ref[...] = jnp.dot(h1.astype(jnp.bfloat16), w2_ref[...],
                           preferred_element_type=jnp.float32) + b2_ref[...]


# ----------------------------------------------------------------------------
# Parameters (PyTorch-layout: LSTM gate order i,f,g,o; fc1 split by concat segs)
# ----------------------------------------------------------------------------
def make_params(key, *, word_num, E, H, Dimg, F, n_cat, Dc, M):
    ks = jax.random.split(key, 16)

    def unif(k, shape, fan_in):
        bound = 1.0 / jnp.sqrt(float(fan_in))
        return jax.random.uniform(k, shape, jnp.float32, -bound, bound)

    p = {}
    p["word_emb"] = jax.random.normal(ks[0], (word_num, E), jnp.float32) * 0.1
    p["cat_emb"] = jax.random.normal(ks[1], (n_cat + 1, Dc), jnp.float32) * 0.1
    # LSTM weights stored [in, 4H] (pre-transposed for row-major matmul)
    p["wih"] = unif(ks[2], (E, 4 * H), H)
    p["whh"] = unif(ks[3], (H, 4 * H), H)
    p["bih"] = unif(ks[4], (1, 4 * H), H)
    p["bhh"] = unif(ks[5], (1, 4 * H), H)
    # linear_v1 / linear_q
    p["wv"] = unif(ks[6], (Dimg, F), Dimg)
    p["bv"] = unif(ks[7], (1, F), Dimg)
    p["wq"] = unif(ks[8], (H, F), H)
    p["bq"] = unif(ks[9], (1, F), H)
    # fc1 split by concat segments [fusion | category | spatial]
    fc_dim = F + Dc + 8
    p["w1v"] = unif(ks[10], (F, M), fc_dim)
    p["w1c"] = unif(ks[11], (Dc, M), fc_dim)
    p["w1s"] = unif(ks[12], (8, M), fc_dim)
    p["b1"] = unif(ks[13], (1, M), fc_dim)
    # fc2
    p["w2"] = unif(ks[14], (M, NUM_CLASSES), M)
    p["b2"] = unif(ks[15], (1, NUM_CLASSES), M)
    return p


# ----------------------------------------------------------------------------
# One-time weight preprocessing (NOT in the per-call path)
# ----------------------------------------------------------------------------
def prepare_params(p):
    """Gate reorder, bias fuse, fc1 fusion (category emb folded in), pads, bf16."""
    H = p["whh"].shape[0]
    word_num = p["word_emb"].shape[0]
    Wpad = _round_up(word_num, 128)

    # Gate reorder (i,f,g,o) -> (i,f,o,g) so the sigmoids cover one 3H slab.
    perm = jnp.concatenate(
        [jnp.arange(0, 2 * H), jnp.arange(3 * H, 4 * H), jnp.arange(2 * H, 3 * H)])

    prep = {}
    prep["emb"] = jnp.pad(p["word_emb"],
                          ((0, Wpad - word_num), (0, 0))).astype(jnp.bfloat16)
    prep["wih"] = p["wih"][:, perm].astype(jnp.bfloat16)
    prep["whh"] = p["whh"][:, perm].astype(jnp.bfloat16)
    prep["b_g"] = (p["bih"] + p["bhh"])[:, perm]                    # f32 [1,4H]
    prep["wv"] = p["wv"].astype(jnp.bfloat16)
    prep["bv"] = p["bv"]
    prep["wq"] = p["wq"].astype(jnp.bfloat16)
    prep["bq"] = p["bq"]

    # Fused fc1: rows = [W1v (F) ; W1s zero-padded to SPA_PAD ; cat table padded].
    # cat_table[r] = category_embedding[r] @ W1c  (exact fold of the embedding).
    w1s_pad = jnp.pad(p["w1s"], ((0, SPA_PAD - p["w1s"].shape[0]), (0, 0)))
    cat_table = p["cat_emb"] @ p["w1c"]                             # [n_cat+1, M]
    cat_pad = jnp.pad(cat_table, ((0, CAT_PAD - cat_table.shape[0]), (0, 0)))
    prep["w1"] = jnp.concatenate([p["w1v"], w1s_pad, cat_pad],
                                 axis=0).astype(jnp.bfloat16)
    prep["b1"] = p["b1"]

    prep["w2"] = jnp.pad(p["w2"],
                         ((0, 0), (0, OUT_PAD - NUM_CLASSES))).astype(jnp.bfloat16)
    prep["b2"] = jnp.pad(p["b2"], ((0, 0), (0, OUT_PAD - NUM_CLASSES)))
    return prep


# ----------------------------------------------------------------------------
# Per-call wrapper: activation padding/layout only, then pallas_call
# ----------------------------------------------------------------------------
@jax.jit
def oracle_forward(prep, image, category, spatial, question, lengths):
    """image:[B,Dimg] f32, category:[B] i32, spatial:[B,8] f32,
    question:[B,T] i32, lengths:[B] i32  ->  logits [B,3] f32."""
    B, T = question.shape
    H = prep["whh"].shape[0]

    Bp = _round_up(B, BATCH_PAD)        # one full bf16 sublane tile per chunk
    pad_b = Bp - B

    # Batch padding (padded rows get length 0 -> h stays 0, rows sliced away).
    q_flat = jnp.pad(question.astype(jnp.int32),
                     ((0, pad_b), (0, 0))).T.reshape(T * Bp, 1)     # time-major
    len_p = jnp.pad(lengths.astype(jnp.int32), (0, pad_b))[:, None]  # [Bp,1]
    img_p = jnp.pad(image, ((0, pad_b), (0, 0))).astype(jnp.bfloat16)
    cat_p = jnp.pad(category.astype(jnp.int32), (0, pad_b))[:, None]  # [Bp,1]
    spa_p = jnp.zeros((Bp, SPA_PAD), jnp.float32)
    spa_p = spa_p.at[:B, :spatial.shape[1]].set(
        spatial.astype(jnp.float32)).astype(jnp.bfloat16)

    args = (
        q_flat, len_p, prep["emb"], prep["wih"], prep["whh"], prep["b_g"],
        img_p, prep["wv"], prep["bv"], prep["wq"], prep["bq"],
        spa_p, cat_p, prep["w1"], prep["b1"], prep["w2"], prep["b2"],
    )

    out = pl.pallas_call(
        oracle_kernel,
        out_shape=jax.ShapeDtypeStruct((Bp, OUT_PAD), jnp.float32),
        in_specs=[pl.BlockSpec(memory_space=pltpu.MemorySpace.VMEM)] * len(args),
        out_specs=pl.BlockSpec(memory_space=pltpu.MemorySpace.VMEM),
        scratch_shapes=[pltpu.VMEM((T * Bp, 4 * H), jnp.float32)],
    )(*args)

    return out[:B, :NUM_CLASSES]


# ----------------------------------------------------------------------------
# Pure-JAX f32 reference (original layout / gate order) for correctness check
# ----------------------------------------------------------------------------
def oracle_reference(params, image, category, spatial, question, lengths):
    B, T = question.shape
    H = params["whh"].shape[0]
    word_embed = jnp.take(params["word_emb"], question, axis=0)   # [B, T, E]
    x_tbe = jnp.transpose(word_embed, (1, 0, 2))                  # [T, B, E]
    cate_emb = jnp.take(params["cat_emb"], category, axis=0)

    def step(carry, inp):
        h, c = carry
        x_t, t = inp
        gates = (x_t @ params["wih"] + h @ params["whh"]
                 + params["bih"] + params["bhh"])
        i_g = jax.nn.sigmoid(gates[:, :H])
        f_g = jax.nn.sigmoid(gates[:, H:2 * H])
        g_g = jnp.tanh(gates[:, 2 * H:3 * H])
        o_g = jax.nn.sigmoid(gates[:, 3 * H:])
        c_new = f_g * c + i_g * g_g
        h_new = o_g * jnp.tanh(c_new)
        valid = (t < lengths)[:, None]
        return (jnp.where(valid, h_new, h), jnp.where(valid, c_new, c)), None

    init = (jnp.zeros((B, H), jnp.float32), jnp.zeros((B, H), jnp.float32))
    (h, _), _ = lax.scan(step, init, (x_tbe, jnp.arange(T)))

    hq = h @ params["wq"] + params["bq"]
    hv = image @ params["wv"] + params["bv"]
    xv = hq * hv
    h1 = jnp.maximum(
        xv @ params["w1v"] + cate_emb @ params["w1c"]
        + spatial @ params["w1s"] + params["b1"], 0.0)
    return h1 @ params["w2"] + params["b2"]


if __name__ == "__main__":
    # Small, hardware-aligned config (H/E/F/M multiples of 128; batch padded to 16).
    B, T = 2, 8
    word_num = 50
    E = 128         # embedding_dim
    H = 128         # hidden
    Dimg = 256      # image_dim (vgg-style pooled feature vector)
    F = 128         # fusion_dim
    n_cat = 10      # n_category
    Dc = 16         # category_embed_dim
    M = 128         # MLP_hidden

    key = jax.random.PRNGKey(0)
    kp, k1, k2, k3, k4 = jax.random.split(key, 5)

    params = make_params(kp, word_num=word_num, E=E, H=H, Dimg=Dimg, F=F,
                         n_cat=n_cat, Dc=Dc, M=M)
    prep = prepare_params(params)       # one-time weight preprocessing

    image = jax.random.normal(k1, (B, Dimg), jnp.float32)
    category = jax.random.randint(k2, (B,), 0, n_cat + 1, jnp.int32)
    spatial = jax.random.normal(k3, (B, 8), jnp.float32)
    question = jax.random.randint(k4, (B, T), 0, word_num, jnp.int32)
    lengths = jnp.array([T, 5], jnp.int32)   # padded sequences, sorted decreasing

    y = oracle_forward(prep, image, category, spatial, question, lengths)
    y = jax.block_until_ready(y)

    y_ref = oracle_reference(params, image, category, spatial, question, lengths)
    assert y.shape == (B, NUM_CLASSES)
    # bf16 MXU inputs (f32 accumulate) -> loosened tolerance vs f32 reference.
    assert jnp.allclose(y, y_ref, atol=2e-2, rtol=2e-2), (y, y_ref)

    print("KERNEL_OK")
</pallas_src>

<mosaic_0001>
module attributes {stable_mosaic.version = 11 : i64} {
  func.func @oracle_kernel(%arg0: memref<128x1xi32, #tpu.memory_space<vmem>>, %arg1: memref<16x1xi32, #tpu.memory_space<vmem>>, %arg2: memref<128x128xbf16, #tpu.memory_space<vmem>>, %arg3: memref<128x512xbf16, #tpu.memory_space<vmem>>, %arg4: memref<128x512xbf16, #tpu.memory_space<vmem>>, %arg5: memref<1x512xf32, #tpu.memory_space<vmem>>, %arg6: memref<16x256xbf16, #tpu.memory_space<vmem>>, %arg7: memref<256x128xbf16, #tpu.memory_space<vmem>>, %arg8: memref<1x128xf32, #tpu.memory_space<vmem>>, %arg9: memref<128x128xbf16, #tpu.memory_space<vmem>>, %arg10: memref<1x128xf32, #tpu.memory_space<vmem>>, %arg11: memref<16x128xbf16, #tpu.memory_space<vmem>>, %arg12: memref<16x1xi32, #tpu.memory_space<vmem>>, %arg13: memref<384x128xbf16, #tpu.memory_space<vmem>>, %arg14: memref<1x128xf32, #tpu.memory_space<vmem>>, %arg15: memref<128x128xbf16, #tpu.memory_space<vmem>>, %arg16: memref<1x128xf32, #tpu.memory_space<vmem>>, %arg17: memref<16x128xf32, #tpu.memory_space<vmem>>, %arg18: memref<128x512xf32, #tpu.memory_space<vmem>>) attributes {dimension_semantics = [], scalar_prefetch = 0 : i64, scratch_operands = 1 : i64, tpu.core_type = #tpu.core_type<tc>} {
    %0 = tpu.iota {dimensions = array<i32: 1>} : vector<128x128xi32>
    %c0 = arith.constant 0 : index
    %c0_0 = arith.constant 0 : index
    %1 = vector.load %arg0[%c0, %c0_0] : memref<128x1xi32, #tpu.memory_space<vmem>>, vector<128x1xi32>
    %2 = vector.broadcast %1 : vector<128x1xi32> to vector<128x128xi32>
    %3 = arith.cmpi eq, %2, %0 : vector<128x128xi32>
    %cst = arith.constant 1.000000e+00 : f32
    %cst_1 = arith.constant 0.000000e+00 : f32
    %4 = vector.broadcast %cst : f32 to vector<128x128xf32>
    %5 = vector.broadcast %cst_1 : f32 to vector<128x128xf32>
    %6 = arith.select %3, %4, %5 : vector<128x128xi1>, vector<128x128xf32>
    %7 = arith.truncf %6 : vector<128x128xf32> to vector<128x128xbf16>
    %c0_2 = arith.constant 0 : index
    %c0_3 = arith.constant 0 : index
    %8 = vector.load %arg2[%c0_2, %c0_3] : memref<128x128xbf16, #tpu.memory_space<vmem>>, vector<128x128xbf16>
    %cst_4 = arith.constant dense<0.000000e+00> : vector<128x128xf32>
    %9 = tpu.matmul %7, %8, %cst_4 {dimension_numbers = #tpu.dot_dimension_numbers<[1], [0], [0], [1], [0, 0, 1, 1], [], []>} : vector<128x128xbf16>, vector<128x128xbf16>, vector<128x128xf32> -> vector<128x128xf32>
    %10 = arith.truncf %9 : vector<128x128xf32> to vector<128x128xbf16>
    %c0_5 = arith.constant 0 : index
    %c0_6 = arith.constant 0 : index
    %11 = vector.load %arg3[%c0_5, %c0_6] : memref<128x512xbf16, #tpu.memory_space<vmem>>, vector<128x512xbf16>
    %cst_7 = arith.constant dense<0.000000e+00> : vector<128x512xf32>
    %12 = tpu.matmul %10, %11, %cst_7 {dimension_numbers = #tpu.dot_dimension_numbers<[1], [0], [0], [1], [0, 0, 1, 1], [], []>} : vector<128x128xbf16>, vector<128x512xbf16>, vector<128x512xf32> -> vector<128x512xf32>
    %c0_8 = arith.constant 0 : index
    %c0_9 = arith.constant 0 : index
    %13 = vector.load %arg5[%c0_8, %c0_9] : memref<1x512xf32, #tpu.memory_space<vmem>>, vector<1x512xf32>
    %14 = vector.broadcast %13 : vector<1x512xf32> to vector<128x512xf32>
    %15 = arith.addf %12, %14 : vector<128x512xf32>
    %c0_10 = arith.constant 0 : index
    %c0_11 = arith.constant 0 : index
    %16 = vector.load %arg18[%c0_10, %c0_11] : memref<128x512xf32, #tpu.memory_space<vmem>>, vector<128x512xf32>
    tpu.vector_store %arg18[%c0_10, %c0_11], %15 {strides = array<i32>} : memref<128x512xf32, #tpu.memory_space<vmem>>, vector<128x512xf32>,
    %c0_12 = arith.constant 0 : index
    %c0_13 = arith.constant 0 : index
    %17 = vector.load %arg1[%c0_12, %c0_13] : memref<16x1xi32, #tpu.memory_space<vmem>>, vector<16x1xi32>
    %c0_14 = arith.constant 0 : index
    %c0_15 = arith.constant 0 : index
    %18 = vector.load %arg4[%c0_14, %c0_15] : memref<128x512xbf16, #tpu.memory_space<vmem>>, vector<128x512xbf16>
    %cst_16 = arith.constant 0.000000e+00 : f32
    %19 = vector.broadcast %cst_16 : f32 to vector<16x128xf32>
    %c0_17 = arith.constant 0 : index
    %c0_18 = arith.constant 0 : index
    %20 = vector.load %arg18[%c0_17, %c0_18] : memref<128x512xf32, #tpu.memory_space<vmem>>, vector<16x512xf32>
    %21 = vector.extract_strided_slice %20 {offsets = [0, 0], sizes = [16, 384], strides = [1, 1]} : vector<16x512xf32> to vector<16x384xf32>
    %22 = arith.negf %21 : vector<16x384xf32>
    %23 = math.exp %22 : vector<16x384xf32>
    %cst_19 = arith.constant 1.000000e+00 : f32
    %24 = vector.broadcast %cst_19 : f32 to vector<16x384xf32>
    %25 = arith.addf %24, %23 : vector<16x384xf32>
    %26 = arith.divf %24, %25 : vector<16x384xf32>
    %27 = vector.extract_strided_slice %26 {offsets = [0, 0], sizes = [16, 128], strides = [1, 1]} : vector<16x384xf32> to vector<16x128xf32>
    %28 = vector.extract_strided_slice %26 {offsets = [0, 128], sizes = [16, 128], strides = [1, 1]} : vector<16x384xf32> to vector<16x128xf32>
    %29 = vector.extract_strided_slice %26 {offsets = [0, 256], sizes = [16, 128], strides = [1, 1]} : vector<16x384xf32> to vector<16x128xf32>
    %30 = vector.extract_strided_slice %20 {offsets = [0, 384], sizes = [16, 128], strides = [1, 1]} : vector<16x512xf32> to vector<16x128xf32>
    %31 = math.tanh %30 : vector<16x128xf32>
    %32 = arith.mulf %28, %19 : vector<16x128xf32>
    %33 = arith.mulf %27, %31 : vector<16x128xf32>
    %34 = arith.addf %32, %33 : vector<16x128xf32>
    %35 = math.tanh %34 : vector<16x128xf32>
    %36 = arith.mulf %29, %35 : vector<16x128xf32>
    %c0_i32 = arith.constant 0 : i32
    %37 = vector.broadcast %c0_i32 : i32 to vector<16x1xi32>
    %38 = arith.cmpi sgt, %17, %37 : vector<16x1xi32>
    %39 = vector.shape_cast %38 : vector<16x1xi1> to vector<16x1xi1>
    %40 = vector.broadcast %39 : vector<16x1xi1> to vector<16x128xi1>
    %41 = arith.select %40, %36, %19 : vector<16x128xi1>, vector<16x128xf32>
    %42 = vector.shape_cast %38 : vector<16x1xi1> to vector<16x1xi1>
    %43 = vector.broadcast %42 : vector<16x1xi1> to vector<16x128xi1>
    %44 = arith.select %43, %34, %19 : vector<16x128xi1>, vector<16x128xf32>
    %c16 = arith.constant 16 : index
    %c0_20 = arith.constant 0 : index
    %45 = vector.load %arg18[%c16, %c0_20] : memref<128x512xf32, #tpu.memory_space<vmem>>, vector<16x512xf32>
    %46 = arith.truncf %41 : vector<16x128xf32> to vector<16x128xbf16>
    %cst_21 = arith.constant dense<0.000000e+00> : vector<16x512xf32>
    %47 = tpu.matmul %46, %18, %cst_21 {dimension_numbers = #tpu.dot_dimension_numbers<[1], [0], [0], [1], [0, 0, 1, 1], [], []>} : vector<16x128xbf16>, vector<128x512xbf16>, vector<16x512xf32> -> vector<16x512xf32>
    %48 = arith.addf %45, %47 : vector<16x512xf32>
    %49 = vector.extract_strided_slice %48 {offsets = [0, 0], sizes = [16, 384], strides = [1, 1]} : vector<16x512xf32> to vector<16x384xf32>
    %50 = arith.negf %49 : vector<16x384xf32>
    %51 = math.exp %50 : vector<16x384xf32>
    %cst_22 = arith.constant 1.000000e+00 : f32
    %52 = vector.broadcast %cst_22 : f32 to vector<16x384xf32>
    %53 = arith.addf %52, %51 : vector<16x384xf32>
    %54 = arith.divf %52, %53 : vector<16x384xf32>
    %55 = vector.extract_strided_slice %54 {offsets = [0, 0], sizes = [16, 128], strides = [1, 1]} : vector<16x384xf32> to vector<16x128xf32>
    %56 = vector.extract_strided_slice %54 {offsets = [0, 128], sizes = [16, 128], strides = [1, 1]} : vector<16x384xf32> to vector<16x128xf32>
    %57 = vector.extract_strided_slice %54 {offsets = [0, 256], sizes = [16, 128], strides = [1, 1]} : vector<16x384xf32> to vector<16x128xf32>
    %58 = vector.extract_strided_slice %48 {offsets = [0, 384], sizes = [16, 128], strides = [1, 1]} : vector<16x512xf32> to vector<16x128xf32>
    %59 = math.tanh %58 : vector<16x128xf32>
    %60 = arith.mulf %56, %44 : vector<16x128xf32>
    %61 = arith.mulf %55, %59 : vector<16x128xf32>
    %62 = arith.addf %60, %61 : vector<16x128xf32>
    %63 = math.tanh %62 : vector<16x128xf32>
    %64 = arith.mulf %57, %63 : vector<16x128xf32>
    %c1_i32 = arith.constant 1 : i32
    %65 = vector.broadcast %c1_i32 : i32 to vector<16x1xi32>
    %66 = arith.cmpi sgt, %17, %65 : vector<16x1xi32>
    %67 = vector.shape_cast %66 : vector<16x1xi1> to vector<16x1xi1>
    %68 = vector.broadcast %67 : vector<16x1xi1> to vector<16x128xi1>
    %69 = arith.select %68, %64, %41 : vector<16x128xi1>, vector<16x128xf32>
    %70 = vector.shape_cast %66 : vector<16x1xi1> to vector<16x1xi1>
    %71 = vector.broadcast %70 : vector<16x1xi1> to vector<16x128xi1>
    %72 = arith.select %71, %62, %44 : vector<16x128xi1>, vector<16x128xf32>
    %c32 = arith.constant 32 : index
    %c0_23 = arith.constant 0 : index
    %73 = vector.load %arg18[%c32, %c0_23] : memref<128x512xf32, #tpu.memory_space<vmem>>, vector<16x512xf32>
    %74 = arith.truncf %69 : vector<16x128xf32> to vector<16x128xbf16>
    %cst_24 = arith.constant dense<0.000000e+00> : vector<16x512xf32>
    %75 = tpu.matmul %74, %18, %cst_24 {dimension_numbers = #tpu.dot_dimension_numbers<[1], [0], [0], [1], [0, 0, 1, 1], [], []>} : vector<16x128xbf16>, vector<128x512xbf16>, vector<16x512xf32> -> vector<16x512xf32>
    %76 = arith.addf %73, %75 : vector<16x512xf32>
    %77 = vector.extract_strided_slice %76 {offsets = [0, 0], sizes = [16, 384], strides = [1, 1]} : vector<16x512xf32> to vector<16x384xf32>
    %78 = arith.negf %77 : vector<16x384xf32>
    %79 = math.exp %78 : vector<16x384xf32>
    %cst_25 = arith.constant 1.000000e+00 : f32
    %80 = vector.broadcast %cst_25 : f32 to vector<16x384xf32>
    %81 = arith.addf %80, %79 : vector<16x384xf32>
    %82 = arith.divf %80, %81 : vector<16x384xf32>
    %83 = vector.extract_strided_slice %82 {offsets = [0, 0], sizes = [16, 128], strides = [1, 1]} : vector<16x384xf32> to vector<16x128xf32>
    %84 = vector.extract_strided_slice %82 {offsets = [0, 128], sizes = [16, 128], strides = [1, 1]} : vector<16x384xf32> to vector<16x128xf32>
    %85 = vector.extract_strided_slice %82 {offsets = [0, 256], sizes = [16, 128], strides = [1, 1]} : vector<16x384xf32> to vector<16x128xf32>
    %86 = vector.extract_strided_slice %76 {offsets = [0, 384], sizes = [16, 128], strides = [1, 1]} : vector<16x512xf32> to vector<16x128xf32>
    %87 = math.tanh %86 : vector<16x128xf32>
    %88 = arith.mulf %84, %72 : vector<16x128xf32>
    %89 = arith.mulf %83, %87 : vector<16x128xf32>
    %90 = arith.addf %88, %89 : vector<16x128xf32>
    %91 = math.tanh %90 : vector<16x128xf32>
    %92 = arith.mulf %85, %91 : vector<16x128xf32>
    %c2_i32 = arith.constant 2 : i32
    %93 = vector.broadcast %c2_i32 : i32 to vector<16x1xi32>
    %94 = arith.cmpi sgt, %17, %93 : vector<16x1xi32>
    %95 = vector.shape_cast %94 : vector<16x1xi1> to vector<16x1xi1>
    %96 = vector.broadcast %95 : vector<16x1xi1> to vector<16x128xi1>
    %97 = arith.select %96, %92, %69 : vector<16x128xi1>, vector<16x128xf32>
    %98 = vector.shape_cast %94 : vector<16x1xi1> to vector<16x1xi1>
    %99 = vector.broadcast %98 : vector<16x1xi1> to vector<16x128xi1>
    %100 = arith.select %99, %90, %72 : vector<16x128xi1>, vector<16x128xf32>
    %c48 = arith.constant 48 : index
    %c0_26 = arith.constant 0 : index
    %101 = vector.load %arg18[%c48, %c0_26] : memref<128x512xf32, #tpu.memory_space<vmem>>, vector<16x512xf32>
    %102 = arith.truncf %97 : vector<16x128xf32> to vector<16x128xbf16>
    %cst_27 = arith.constant dense<0.000000e+00> : vector<16x512xf32>
    %103 = tpu.matmul %102, %18, %cst_27 {dimension_numbers = #tpu.dot_dimension_numbers<[1], [0], [0], [1], [0, 0, 1, 1], [], []>} : vector<16x128xbf16>, vector<128x512xbf16>, vector<16x512xf32> -> vector<16x512xf32>
    %104 = arith.addf %101, %103 : vector<16x512xf32>
    %105 = vector.extract_strided_slice %104 {offsets = [0, 0], sizes = [16, 384], strides = [1, 1]} : vector<16x512xf32> to vector<16x384xf32>
    %106 = arith.negf %105 : vector<16x384xf32>
    %107 = math.exp %106 : vector<16x384xf32>
    %cst_28 = arith.constant 1.000000e+00 : f32
    %108 = vector.broadcast %cst_28 : f32 to vector<16x384xf32>
    %109 = arith.addf %108, %107 : vector<16x384xf32>
    %110 = arith.divf %108, %109 : vector<16x384xf32>
    %111 = vector.extract_strided_slice %110 {offsets = [0, 0], sizes = [16, 128], strides = [1, 1]} : vector<16x384xf32> to vector<16x128xf32>
    %112 = vector.extract_strided_slice %110 {offsets = [0, 128], sizes = [16, 128], strides = [1, 1]} : vector<16x384xf32> to vector<16x128xf32>
    %113 = vector.extract_strided_slice %110 {offsets = [0, 256], sizes = [16, 128], strides = [1, 1]} : vector<16x384xf32> to vector<16x128xf32>
    %114 = vector.extract_strided_slice %104 {offsets = [0, 384], sizes = [16, 128], strides = [1, 1]} : vector<16x512xf32> to vector<16x128xf32>
    %115 = math.tanh %114 : vector<16x128xf32>
    %116 = arith.mulf %112, %100 : vector<16x128xf32>
    %117 = arith.mulf %111, %115 : vector<16x128xf32>
    %118 = arith.addf %116, %117 : vector<16x128xf32>
    %119 = math.tanh %118 : vector<16x128xf32>
    %120 = arith.mulf %113, %119 : vector<16x128xf32>
    %c3_i32 = arith.constant 3 : i32
    %121 = vector.broadcast %c3_i32 : i32 to vector<16x1xi32>
    %122 = arith.cmpi sgt, %17, %121 : vector<16x1xi32>
    %123 = vector.shape_cast %122 : vector<16x1xi1> to vector<16x1xi1>
    %124 = vector.broadcast %123 : vector<16x1xi1> to vector<16x128xi1>
    %125 = arith.select %124, %120, %97 : vector<16x128xi1>, vector<16x128xf32>
    %126 = vector.shape_cast %122 : vector<16x1xi1> to vector<16x1xi1>
    %127 = vector.broadcast %126 : vector<16x1xi1> to vector<16x128xi1>
    %128 = arith.select %127, %118, %100 : vector<16x128xi1>, vector<16x128xf32>
    %c64 = arith.constant 64 : index
    %c0_29 = arith.constant 0 : index
    %129 = vector.load %arg18[%c64, %c0_29] : memref<128x512xf32, #tpu.memory_space<vmem>>, vector<16x512xf32>
    %130 = arith.truncf %125 : vector<16x128xf32> to vector<16x128xbf16>
    %cst_30 = arith.constant dense<0.000000e+00> : vector<16x512xf32>
    %131 = tpu.matmul %130, %18, %cst_30 {dimension_numbers = #tpu.dot_dimension_numbers<[1], [0], [0], [1], [0, 0, 1, 1], [], []>} : vector<16x128xbf16>, vector<128x512xbf16>, vector<16x512xf32> -> vector<16x512xf32>
    %132 = arith.addf %129, %131 : vector<16x512xf32>
    %133 = vector.extract_strided_slice %132 {offsets = [0, 0], sizes = [16, 384], strides = [1, 1]} : vector<16x512xf32> to vector<16x384xf32>
    %134 = arith.negf %133 : vector<16x384xf32>
    %135 = math.exp %134 : vector<16x384xf32>
    %cst_31 = arith.constant 1.000000e+00 : f32
    %136 = vector.broadcast %cst_31 : f32 to vector<16x384xf32>
    %137 = arith.addf %136, %135 : vector<16x384xf32>
    %138 = arith.divf %136, %137 : vector<16x384xf32>
    %139 = vector.extract_strided_slice %138 {offsets = [0, 0], sizes = [16, 128], strides = [1, 1]} : vector<16x384xf32> to vector<16x128xf32>
    %140 = vector.extract_strided_slice %138 {offsets = [0, 128], sizes = [16, 128], strides = [1, 1]} : vector<16x384xf32> to vector<16x128xf32>
    %141 = vector.extract_strided_slice %138 {offsets = [0, 256], sizes = [16, 128], strides = [1, 1]} : vector<16x384xf32> to vector<16x128xf32>
    %142 = vector.extract_strided_slice %132 {offsets = [0, 384], sizes = [16, 128], strides = [1, 1]} : vector<16x512xf32> to vector<16x128xf32>
    %143 = math.tanh %142 : vector<16x128xf32>
    %144 = arith.mulf %140, %128 : vector<16x128xf32>
    %145 = arith.mulf %139, %143 : vector<16x128xf32>
    %146 = arith.addf %144, %145 : vector<16x128xf32>
    %147 = math.tanh %146 : vector<16x128xf32>
    %148 = arith.mulf %141, %147 : vector<16x128xf32>
    %c4_i32 = arith.constant 4 : i32
    %149 = vector.broadcast %c4_i32 : i32 to vector<16x1xi32>
    %150 = arith.cmpi sgt, %17, %149 : vector<16x1xi32>
    %151 = vector.shape_cast %150 : vector<16x1xi1> to vector<16x1xi1>
    %152 = vector.broadcast %151 : vector<16x1xi1> to vector<16x128xi1>
    %153 = arith.select %152, %148, %125 : vector<16x128xi1>, vector<16x128xf32>
    %154 = vector.shape_cast %150 : vector<16x1xi1> to vector<16x1xi1>
    %155 = vector.broadcast %154 : vector<16x1xi1> to vector<16x128xi1>
    %156 = arith.select %155, %146, %128 : vector<16x128xi1>, vector<16x128xf32>
    %c80 = arith.constant 80 : index
    %c0_32 = arith.constant 0 : index
    %157 = vector.load %arg18[%c80, %c0_32] : memref<128x512xf32, #tpu.memory_space<vmem>>, vector<16x512xf32>
    %158 = arith.truncf %153 : vector<16x128xf32> to vector<16x128xbf16>
    %cst_33 = arith.constant dense<0.000000e+00> : vector<16x512xf32>
    %159 = tpu.matmul %158, %18, %cst_33 {dimension_numbers = #tpu.dot_dimension_numbers<[1], [0], [0], [1], [0, 0, 1, 1], [], []>} : vector<16x128xbf16>, vector<128x512xbf16>, vector<16x512xf32> -> vector<16x512xf32>
    %160 = arith.addf %157, %159 : vector<16x512xf32>
    %161 = vector.extract_strided_slice %160 {offsets = [0, 0], sizes = [16, 384], strides = [1, 1]} : vector<16x512xf32> to vector<16x384xf32>
    %162 = arith.negf %161 : vector<16x384xf32>
    %163 = math.exp %162 : vector<16x384xf32>
    %cst_34 = arith.constant 1.000000e+00 : f32
    %164 = vector.broadcast %cst_34 : f32 to vector<16x384xf32>
    %165 = arith.addf %164, %163 : vector<16x384xf32>
    %166 = arith.divf %164, %165 : vector<16x384xf32>
    %167 = vector.extract_strided_slice %166 {offsets = [0, 0], sizes = [16, 128], strides = [1, 1]} : vector<16x384xf32> to vector<16x128xf32>
    %168 = vector.extract_strided_slice %166 {offsets = [0, 128], sizes = [16, 128], strides = [1, 1]} : vector<16x384xf32> to vector<16x128xf32>
    %169 = vector.extract_strided_slice %166 {offsets = [0, 256], sizes = [16, 128], strides = [1, 1]} : vector<16x384xf32> to vector<16x128xf32>
    %170 = vector.extract_strided_slice %160 {offsets = [0, 384], sizes = [16, 128], strides = [1, 1]} : vector<16x512xf32> to vector<16x128xf32>
    %171 = math.tanh %170 : vector<16x128xf32>
    %172 = arith.mulf %168, %156 : vector<16x128xf32>
    %173 = arith.mulf %167, %171 : vector<16x128xf32>
    %174 = arith.addf %172, %173 : vector<16x128xf32>
    %175 = math.tanh %174 : vector<16x128xf32>
    %176 = arith.mulf %169, %175 : vector<16x128xf32>
    %c5_i32 = arith.constant 5 : i32
    %177 = vector.broadcast %c5_i32 : i32 to vector<16x1xi32>
    %178 = arith.cmpi sgt, %17, %177 : vector<16x1xi32>
    %179 = vector.shape_cast %178 : vector<16x1xi1> to vector<16x1xi1>
    %180 = vector.broadcast %179 : vector<16x1xi1> to vector<16x128xi1>
    %181 = arith.select %180, %176, %153 : vector<16x128xi1>, vector<16x128xf32>
    %182 = vector.shape_cast %178 : vector<16x1xi1> to vector<16x1xi1>
    %183 = vector.broadcast %182 : vector<16x1xi1> to vector<16x128xi1>
    %184 = arith.select %183, %174, %156 : vector<16x128xi1>, vector<16x128xf32>
    %c96 = arith.constant 96 : index
    %c0_35 = arith.constant 0 : index
    %185 = vector.load %arg18[%c96, %c0_35] : memref<128x512xf32, #tpu.memory_space<vmem>>, vector<16x512xf32>
    %186 = arith.truncf %181 : vector<16x128xf32> to vector<16x128xbf16>
    %cst_36 = arith.constant dense<0.000000e+00> : vector<16x512xf32>
    %187 = tpu.matmul %186, %18, %cst_36 {dimension_numbers = #tpu.dot_dimension_numbers<[1], [0], [0], [1], [0, 0, 1, 1], [], []>} : vector<16x128xbf16>, vector<128x512xbf16>, vector<16x512xf32> -> vector<16x512xf32>
    %188 = arith.addf %185, %187 : vector<16x512xf32>
    %189 = vector.extract_strided_slice %188 {offsets = [0, 0], sizes = [16, 384], strides = [1, 1]} : vector<16x512xf32> to vector<16x384xf32>
    %190 = arith.negf %189 : vector<16x384xf32>
    %191 = math.exp %190 : vector<16x384xf32>
    %cst_37 = arith.constant 1.000000e+00 : f32
    %192 = vector.broadcast %cst_37 : f32 to vector<16x384xf32>
    %193 = arith.addf %192, %191 : vector<16x384xf32>
    %194 = arith.divf %192, %193 : vector<16x384xf32>
    %195 = vector.extract_strided_slice %194 {offsets = [0, 0], sizes = [16, 128], strides = [1, 1]} : vector<16x384xf32> to vector<16x128xf32>
    %196 = vector.extract_strided_slice %194 {offsets = [0, 128], sizes = [16, 128], strides = [1, 1]} : vector<16x384xf32> to vector<16x128xf32>
    %197 = vector.extract_strided_slice %194 {offsets = [0, 256], sizes = [16, 128], strides = [1, 1]} : vector<16x384xf32> to vector<16x128xf32>
    %198 = vector.extract_strided_slice %188 {offsets = [0, 384], sizes = [16, 128], strides = [1, 1]} : vector<16x512xf32> to vector<16x128xf32>
    %199 = math.tanh %198 : vector<16x128xf32>
    %200 = arith.mulf %196, %184 : vector<16x128xf32>
    %201 = arith.mulf %195, %199 : vector<16x128xf32>
    %202 = arith.addf %200, %201 : vector<16x128xf32>
    %203 = math.tanh %202 : vector<16x128xf32>
    %204 = arith.mulf %197, %203 : vector<16x128xf32>
    %c6_i32 = arith.constant 6 : i32
    %205 = vector.broadcast %c6_i32 : i32 to vector<16x1xi32>
    %206 = arith.cmpi sgt, %17, %205 : vector<16x1xi32>
    %207 = vector.shape_cast %206 : vector<16x1xi1> to vector<16x1xi1>
    %208 = vector.broadcast %207 : vector<16x1xi1> to vector<16x128xi1>
    %209 = arith.select %208, %204, %181 : vector<16x128xi1>, vector<16x128xf32>
    %210 = vector.shape_cast %206 : vector<16x1xi1> to vector<16x1xi1>
    %211 = vector.broadcast %210 : vector<16x1xi1> to vector<16x128xi1>
    %212 = arith.select %211, %202, %184 : vector<16x128xi1>, vector<16x128xf32>
    %c112 = arith.constant 112 : index
    %c0_38 = arith.constant 0 : index
    %213 = vector.load %arg18[%c112, %c0_38] : memref<128x512xf32, #tpu.memory_space<vmem>>, vector<16x512xf32>
    %214 = arith.truncf %209 : vector<16x128xf32> to vector<16x128xbf16>
    %cst_39 = arith.constant dense<0.000000e+00> : vector<16x512xf32>
    %215 = tpu.matmul %214, %18, %cst_39 {dimension_numbers = #tpu.dot_dimension_numbers<[1], [0], [0], [1], [0, 0, 1, 1], [], []>} : vector<16x128xbf16>, vector<128x512xbf16>, vector<16x512xf32> -> vector<16x512xf32>
    %216 = arith.addf %213, %215 : vector<16x512xf32>
    %217 = vector.extract_strided_slice %216 {offsets = [0, 0], sizes = [16, 384], strides = [1, 1]} : vector<16x512xf32> to vector<16x384xf32>
    %218 = arith.negf %217 : vector<16x384xf32>
    %219 = math.exp %218 : vector<16x384xf32>
    %cst_40 = arith.constant 1.000000e+00 : f32
    %220 = vector.broadcast %cst_40 : f32 to vector<16x384xf32>
    %221 = arith.addf %220, %219 : vector<16x384xf32>
    %222 = arith.divf %220, %221 : vector<16x384xf32>
    %223 = vector.extract_strided_slice %222 {offsets = [0, 0], sizes = [16, 128], strides = [1, 1]} : vector<16x384xf32> to vector<16x128xf32>
    %224 = vector.extract_strided_slice %222 {offsets = [0, 128], sizes = [16, 128], strides = [1, 1]} : vector<16x384xf32> to vector<16x128xf32>
    %225 = vector.extract_strided_slice %222 {offsets = [0, 256], sizes = [16, 128], strides = [1, 1]} : vector<16x384xf32> to vector<16x128xf32>
    %226 = vector.extract_strided_slice %216 {offsets = [0, 384], sizes = [16, 128], strides = [1, 1]} : vector<16x512xf32> to vector<16x128xf32>
    %227 = math.tanh %226 : vector<16x128xf32>
    %228 = arith.mulf %224, %212 : vector<16x128xf32>
    %229 = arith.mulf %223, %227 : vector<16x128xf32>
    %230 = arith.addf %228, %229 : vector<16x128xf32>
    %231 = math.tanh %230 : vector<16x128xf32>
    %232 = arith.mulf %225, %231 : vector<16x128xf32>
    %c7_i32 = arith.constant 7 : i32
    %233 = vector.broadcast %c7_i32 : i32 to vector<16x1xi32>
    %234 = arith.cmpi sgt, %17, %233 : vector<16x1xi32>
    %235 = vector.shape_cast %234 : vector<16x1xi1> to vector<16x1xi1>
    %236 = vector.broadcast %235 : vector<16x1xi1> to vector<16x128xi1>
    %237 = arith.select %236, %232, %209 : vector<16x128xi1>, vector<16x128xf32>
    %238 = arith.truncf %237 : vector<16x128xf32> to vector<16x128xbf16>
    %c0_41 = arith.constant 0 : index
    %c0_42 = arith.constant 0 : index
    %239 = vector.load %arg9[%c0_41, %c0_42] : memref<128x128xbf16, #tpu.memory_space<vmem>>, vector<128x128xbf16>
    %cst_43 = arith.constant dense<0.000000e+00> : vector<16x128xf32>
    %240 = tpu.matmul %238, %239, %cst_43 {dimension_numbers = #tpu.dot_dimension_numbers<[1], [0], [0], [1], [0, 0, 1, 1], [], []>} : vector<16x128xbf16>, vector<128x128xbf16>, vector<16x128xf32> -> vector<16x128xf32>
    %c0_44 = arith.constant 0 : index
    %c0_45 = arith.constant 0 : index
    %241 = vector.load %arg10[%c0_44, %c0_45] : memref<1x128xf32, #tpu.memory_space<vmem>>, vector<1x128xf32>
    %242 = vector.broadcast %241 : vector<1x128xf32> to vector<16x128xf32>
    %243 = arith.addf %240, %242 : vector<16x128xf32>
    %c0_46 = arith.constant 0 : index
    %c0_47 = arith.constant 0 : index
    %244 = vector.load %arg6[%c0_46, %c0_47] : memref<16x256xbf16, #tpu.memory_space<vmem>>, vector<16x256xbf16>
    %c0_48 = arith.constant 0 : index
    %c0_49 = arith.constant 0 : index
    %245 = vector.load %arg7[%c0_48, %c0_49] : memref<256x128xbf16, #tpu.memory_space<vmem>>, vector<256x128xbf16>
    %cst_50 = arith.constant dense<0.000000e+00> : vector<16x128xf32>
    %246 = tpu.matmul %244, %245, %cst_50 {dimension_numbers = #tpu.dot_dimension_numbers<[1], [0], [0], [1], [0, 0, 1, 1], [], []>} : vector<16x256xbf16>, vector<256x128xbf16>, vector<16x128xf32> -> vector<16x128xf32>
    %c0_51 = arith.constant 0 : index
    %c0_52 = arith.constant 0 : index
    %247 = vector.load %arg8[%c0_51, %c0_52] : memref<1x128xf32, #tpu.memory_space<vmem>>, vector<1x128xf32>
    %248 = vector.broadcast %247 : vector<1x128xf32> to vector<16x128xf32>
    %249 = arith.addf %246, %248 : vector<16x128xf32>
    %250 = arith.mulf %243, %249 : vector<16x128xf32>
    %251 = arith.truncf %250 : vector<16x128xf32> to vector<16x128xbf16>
    %252 = tpu.iota {dimensions = array<i32: 1>} : vector<16x128xi32>
    %c0_53 = arith.constant 0 : index
    %c0_54 = arith.constant 0 : index
    %253 = vector.load %arg12[%c0_53, %c0_54] : memref<16x1xi32, #tpu.memory_space<vmem>>, vector<16x1xi32>
    %254 = vector.broadcast %253 : vector<16x1xi32> to vector<16x128xi32>
    %255 = arith.cmpi eq, %254, %252 : vector<16x128xi32>
    %cst_55 = arith.constant 1.000000e+00 : f32
    %cst_56 = arith.constant 0.000000e+00 : f32
    %256 = vector.broadcast %cst_55 : f32 to vector<16x128xf32>
    %257 = vector.broadcast %cst_56 : f32 to vector<16x128xf32>
    %258 = arith.select %255, %256, %257 : vector<16x128xi1>, vector<16x128xf32>
    %259 = arith.truncf %258 : vector<16x128xf32> to vector<16x128xbf16>
    %c0_57 = arith.constant 0 : index
    %c0_58 = arith.constant 0 : index
    %260 = vector.load %arg11[%c0_57, %c0_58] : memref<16x128xbf16, #tpu.memory_space<vmem>>, vector<16x128xbf16>
    %261 = tpu.concatenate %251, %260, %259 in 1 : vector<16x128xbf16>, vector<16x128xbf16>, vector<16x128xbf16> -> vector<16x384xbf16>
    %c0_59 = arith.constant 0 : index
    %c0_60 = arith.constant 0 : index
    %262 = vector.load %arg13[%c0_59, %c0_60] : memref<384x128xbf16, #tpu.memory_space<vmem>>, vector<384x128xbf16>
    %cst_61 = arith.constant dense<0.000000e+00> : vector<16x128xf32>
    %263 = tpu.matmul %261, %262, %cst_61 {dimension_numbers = #tpu.dot_dimension_numbers<[1], [0], [0], [1], [0, 0, 1, 1], [], []>} : vector<16x384xbf16>, vector<384x128xbf16>, vector<16x128xf32> -> vector<16x128xf32>
    %c0_62 = arith.constant 0 : index
    %c0_63 = arith.constant 0 : index
    %264 = vector.load %arg14[%c0_62, %c0_63] : memref<1x128xf32, #tpu.memory_space<vmem>>, vector<1x128xf32>
    %265 = vector.broadcast %264 : vector<1x128xf32> to vector<16x128xf32>
    %266 = arith.addf %263, %265 : vector<16x128xf32>
    %cst_64 = arith.constant 0.000000e+00 : f32
    %267 = vector.broadcast %cst_64 : f32 to vector<16x128xf32>
    %268 = arith.maximumf %266, %267 : vector<16x128xf32>
    %269 = arith.truncf %268 : vector<16x128xf32> to vector<16x128xbf16>
    %c0_65 = arith.constant 0 : index
    %c0_66 = arith.constant 0 : index
    %270 = vector.load %arg15[%c0_65, %c0_66] : memref<128x128xbf16, #tpu.memory_space<vmem>>, vector<128x128xbf16>
    %cst_67 = arith.constant dense<0.000000e+00> : vector<16x128xf32>
    %271 = tpu.matmul %269, %270, %cst_67 {dimension_numbers = #tpu.dot_dimension_numbers<[1], [0], [0], [1], [0, 0, 1, 1], [], []>} : vector<16x128xbf16>, vector<128x128xbf16>, vector<16x128xf32> -> vector<16x128xf32>
    %c0_68 = arith.constant 0 : index
    %c0_69 = arith.constant 0 : index
    %272 = vector.load %arg16[%c0_68, %c0_69] : memref<1x128xf32, #tpu.memory_space<vmem>>, vector<1x128xf32>
    %273 = vector.broadcast %272 : vector<1x128xf32> to vector<16x128xf32>
    %274 = arith.addf %271, %273 : vector<16x128xf32>
    %c0_70 = arith.constant 0 : index
    %c0_71 = arith.constant 0 : index
    %275 = vector.load %arg17[%c0_70, %c0_71] : memref<16x128xf32, #tpu.memory_space<vmem>>, vector<16x128xf32>
    tpu.vector_store %arg17[%c0_70, %c0_71], %274 {strides = array<i32>} : memref<16x128xf32, #tpu.memory_space<vmem>>, vector<16x128xf32>,
    return
  }
}

</mosaic_0001>

<llo_original>
// kernel: oracle_forward.1
$region0: #{oracle_forward.1}
  #allocation0 [shape = 'u32[]', space=smem, size = 0x4, offset = 0x4, fixed_abs, tag = 'smem constant byte address 0x4 - core index']
  #allocation1 [shape = 'u32[72,128]{1,0:T(1,128)}', space=vmem, size = 0x9000, scoped, tag = 'internal scratch']
  #allocation2 [shape = 'f32[128,512]{1,0:T(8,128)}', space=vmem, size = 0x40000, scoped, tag = 'scratch operand']
  %s0 = inlined_call_operand.vmem [shape: s32[128,1], index: 0, kind: input, shape index: {}]
  %s1 = inlined_call_operand.vmem [shape: s32[16,1], index: 1, kind: input, shape index: {}]
  %s2 = inlined_call_operand.hbm [shape: bf16[128,128], index: 2, kind: input, shape index: {}]
  %s3 = inlined_call_operand.hbm [shape: bf16[128,512], index: 3, kind: input, shape index: {}]
  %s4 = inlined_call_operand.hbm [shape: bf16[128,512], index: 4, kind: input, shape index: {}]
  %s5 = inlined_call_operand.vmem [shape: f32[1,512], index: 5, kind: input, shape index: {}]
  %s6 = inlined_call_operand.vmem [shape: bf16[16,256], index: 6, kind: input, shape index: {}]
  %s7 = inlined_call_operand.hbm [shape: bf16[256,128], index: 7, kind: input, shape index: {}]
  %s8 = inlined_call_operand.vmem [shape: f32[1,128], index: 8, kind: input, shape index: {}]
  %s9 = inlined_call_operand.hbm [shape: bf16[128,128], index: 9, kind: input, shape index: {}]
  %s10 = inlined_call_operand.vmem [shape: f32[1,128], index: 10, kind: input, shape index: {}]
  %s11 = inlined_call_operand.vmem [shape: bf16[16,128], index: 11, kind: input, shape index: {}]
  %s12 = inlined_call_operand.vmem [shape: s32[16,1], index: 12, kind: input, shape index: {}]
  %s13 = inlined_call_operand.vmem [shape: bf16[384,128], index: 13, kind: input, shape index: {}]
  %s14 = inlined_call_operand.vmem [shape: f32[1,128], index: 14, kind: input, shape index: {}]
  %s15 = inlined_call_operand.hbm [shape: bf16[128,128], index: 15, kind: input, shape index: {}]
  %s16 = inlined_call_operand.vmem [shape: f32[1,128], index: 16, kind: input, shape index: {}]
  %s17 = inlined_call_operand.vmem [shape: f32[16,128], index: 17, kind: output, shape index: {}]
  %s18 = sld [smem:[#allocation0]]
  $region102: #{oracle_forward.1} parent=0
    _
  %s20 = ssub.s32 1, %s18
  %s21 = scalar_select 0, %s20, %s18
  $region1: #{oracle_forward.1} parent=0
    #allocation3 [shape = 'u8[32768]{0}', space=vmem, size = 0x8000, scoped, tag = 'input window, operand 2, single buffered']
    #allocation4 [shape = 's32[1]{0}', space=sflag, size = 0x4, scoped, tag = 'scoped memory for oracle_forward.1']
    #allocation5 [shape = 'u8[131072]{0}', space=vmem, size = 0x20000, scoped, tag = 'input window, operand 3, single buffered']
    #allocation6 [shape = 's32[1]{0}', space=sflag, size = 0x4, scoped, tag = 'scoped memory for oracle_forward.1']
    #allocation7 [shape = 'u8[131072]{0}', space=vmem, size = 0x20000, scoped, tag = 'input window, operand 4, single buffered']
    #allocation8 [shape = 'u8[65536]{0}', space=vmem, size = 0x10000, scoped, tag = 'input window, operand 7, single buffered']
    #allocation9 [shape = 's32[1]{0}', space=sflag, size = 0x4, scoped, tag = 'scoped memory for oracle_forward.1']
    #allocation10 [shape = 'u8[32768]{0}', space=vmem, size = 0x8000, scoped, tag = 'input window, operand 9, single buffered']
    #allocation11 [shape = 'u8[32768]{0}', space=vmem, size = 0x8000, scoped, tag = 'input window, operand 15, single buffered']
    #allocation12 [shape = 's32[1]{0}', space=sflag, size = 0x4, scoped, tag = 'scoped memory for oracle_forward.1']
    %22 = vsyncpa [#allocation4], 0
    %23 = vsyncpa [#allocation6], 0
    %24 = vsyncpa [#allocation9], 0
    %25 = vsyncpa [#allocation12], 0
    // Predicated region
    $region2: #{oracle_forward.1} parent=1 // pred_check
      _
    $region3: #{oracle_forward.1} parent=1 // pred_check_branch
      %27 = sbr.rel (0) target = $region5
    $region4: #{oracle_forward.1} parent=1 // pred_region
      _
    $region5: #{oracle_forward.1} parent=1 // pred_fallthru
      _
    // Predicated region
    $region6: #{oracle_forward.1} parent=1 // pred_check
      _
    $region7: #{oracle_forward.1} parent=1 // pred_check_branch
      %29 = sbr.rel (0) target = $region9
    $region8: #{oracle_forward.1} parent=1 // pred_region
      _
    $region9: #{oracle_forward.1} parent=1 // pred_fallthru
      _
    // Predicated region
    $region10: #{oracle_forward.1} parent=1 // pred_check
      _
    $region11: #{oracle_forward.1} parent=1 // pred_check_branch
      %31 = sbr.rel (0) target = $region13
    $region12: #{oracle_forward.1} parent=1 // pred_region
      %33 = vsyncadd [#allocation4], 0
      %s34 = sshll.u32 %s2, 4
      %s35 = int_to_ptr.hbm [resolvable:$true] %s34
      %s36 = sshll.u32 [#allocation3], 4
      %s37 = int_to_ptr.vmem [resolvable:$true] %s36
      %42 = dma.hbm_to_vmem [thread:$0]  %s35, 1024, %s37, [#allocation4], 64, 64, 4
    $region13: #{oracle_forward.1} parent=1 // pred_fallthru
      _
    // Predicated region
    $region14: #{oracle_forward.1} parent=1 // pred_check
      _
    $region15: #{oracle_forward.1} parent=1 // pred_check_branch
      %44 = sbr.rel (0) target = $region17
    $region16: #{oracle_forward.1} parent=1 // pred_region
      %46 = vsyncadd [#allocation6], 0
      %s47 = sshll.u32 %s3, 4
      %s48 = int_to_ptr.hbm [resolvable:$true] %s47
      %s49 = sshll.u32 [#allocation5], 4
      %s50 = int_to_ptr.vmem [resolvable:$true] %s49
      %55 = dma.hbm_to_vmem [thread:$0]  %s48, 4096, %s50, [#allocation6], 256, 256, 16
    $region17: #{oracle_forward.1} parent=1 // pred_fallthru
      _
    // Predicated region
    $region18: #{oracle_forward.1} parent=1 // pred_check
      _
    $region19: #{oracle_forward.1} parent=1 // pred_check_branch
      %57 = sbr.rel (0) target = $region21
    $region20: #{oracle_forward.1} parent=1 // pred_region
      %59 = vsyncadd [#allocation6], 0
      %s60 = sshll.u32 %s4, 4
      %s61 = int_to_ptr.hbm [resolvable:$true] %s60
      %s62 = sshll.u32 [#allocation7], 4
      %s63 = int_to_ptr.vmem [resolvable:$true] %s62
      %68 = dma.hbm_to_vmem [thread:$0]  %s61, 4096, %s63, [#allocation6], 256, 256, 16
    $region21: #{oracle_forward.1} parent=1 // pred_fallthru
      _
    // Predicated region
    $region22: #{oracle_forward.1} parent=1 // pred_check
      _
    $region23: #{oracle_forward.1} parent=1 // pred_check_branch
      %70 = sbr.rel (0) target = $region25
    $region24: #{oracle_forward.1} parent=1 // pred_region
      _
    $region25: #{oracle_forward.1} parent=1 // pred_fallthru
      _
    // Predicated region
    $region26: #{oracle_forward.1} parent=1 // pred_check
      _
    $region27: #{oracle_forward.1} parent=1 // pred_check_branch
      %72 = sbr.rel (0) target = $region29
    $region28: #{oracle_forward.1} parent=1 // pred_region
      _
    $region29: #{oracle_forward.1} parent=1 // pred_fallthru
      _
    // Predicated region
    $region30: #{oracle_forward.1} parent=1 // pred_check
      _
    $region31: #{oracle_forward.1} parent=1 // pred_check_branch
      %74 = sbr.rel (0) target = $region33
    $region32: #{oracle_forward.1} parent=1 // pred_region
      %76 = vsyncadd [#allocation9], 0
      %s77 = sshll.u32 %s7, 4
      %s78 = int_to_ptr.hbm [resolvable:$true] %s77
      %s79 = sshll.u32 [#allocation8], 4
      %s80 = int_to_ptr.vmem [resolvable:$true] %s79
      %85 = dma.hbm_to_vmem [thread:$0]  %s78, 2048, %s80, [#allocation9], 64, 64, 4
    $region33: #{oracle_forward.1} parent=1 // pred_fallthru
      _
    // Predicated region
    $region34: #{oracle_forward.1} parent=1 // pred_check
      _
    $region35: #{oracle_forward.1} parent=1 // pred_check_branch
      %87 = sbr.rel (0) target = $region37
    $region36: #{oracle_forward.1} parent=1 // pred_region
      _
    $region37: #{oracle_forward.1} parent=1 // pred_fallthru
      _
    // Predicated region
    $region38: #{oracle_forward.1} parent=1 // pred_check
      _
    $region39: #{oracle_forward.1} parent=1 // pred_check_branch
      %89 = sbr.rel (0) target = $region41
    $region40: #{oracle_forward.1} parent=1 // pred_region
      %91 = vsyncadd [#allocation9], 0
      %s92 = sshll.u32 %s9, 4
      %s93 = int_to_ptr.hbm [resolvable:$true] %s92
      %s94 = sshll.u32 [#allocation10], 4
      %s95 = int_to_ptr.vmem [resolvable:$true] %s94
      %100 = dma.hbm_to_vmem [thread:$0]  %s93, 1024, %s95, [#allocation9], 64, 64, 4
    $region41: #{oracle_forward.1} parent=1 // pred_fallthru
      _
    // Predicated region
    $region42: #{oracle_forward.1} parent=1 // pred_check
      _
    $region43: #{oracle_forward.1} parent=1 // pred_check_branch
      %102 = sbr.rel (0) target = $region45
    $region44: #{oracle_forward.1} parent=1 // pred_region
      _
    $region45: #{oracle_forward.1} parent=1 // pred_fallthru
      _
    // Predicated region
    $region46: #{oracle_forward.1} parent=1 // pred_check
      _
    $region47: #{oracle_forward.1} parent=1 // pred_check_branch
      %104 = sbr.rel (0) target = $region49
    $region48: #{oracle_forward.1} parent=1 // pred_region
      _
    $region49: #{oracle_forward.1} parent=1 // pred_fallthru
      _
    // Predicated region
    $region50: #{oracle_forward.1} parent=1 // pred_check
      _
    $region51: #{oracle_forward.1} parent=1 // pred_check_branch
      %106 = sbr.rel (0) target = $region53
    $region52: #{oracle_forward.1} parent=1 // pred_region
      _
    $region53: #{oracle_forward.1} parent=1 // pred_fallthru
      _
    // Predicated region
    $region54: #{oracle_forward.1} parent=1 // pred_check
      _
    $region55: #{oracle_forward.1} parent=1 // pred_check_branch
      %108 = sbr.rel (0) target = $region57
    $region56: #{oracle_forward.1} parent=1 // pred_region
      _
    $region57: #{oracle_forward.1} parent=1 // pred_fallthru
      _
    // Predicated region
    $region58: #{oracle_forward.1} parent=1 // pred_check
      _
    $region59: #{oracle_forward.1} parent=1 // pred_check_branch
      %110 = sbr.rel (0) target = $region61
    $region60: #{oracle_forward.1} parent=1 // pred_region
      _
    $region61: #{oracle_forward.1} parent=1 // pred_fallthru
      _
    // Predicated region
    $region62: #{oracle_forward.1} parent=1 // pred_check
      _
    $region63: #{oracle_forward.1} parent=1 // pred_check_branch
      %112 = sbr.rel (0) target = $region65
    $region64: #{oracle_forward.1} parent=1 // pred_region
      %114 = vsyncadd [#allocation12], 0
      %s115 = sshll.u32 %s15, 4
      %s116 = int_to_ptr.hbm [resolvable:$true] %s115
      %s117 = sshll.u32 [#allocation11], 4
      %s118 = int_to_ptr.vmem [resolvable:$true] %s117
      %123 = dma.hbm_to_vmem [thread:$0]  %s116, 1024, %s118, [#allocation12], 64, 64, 4
    $region65: #{oracle_forward.1} parent=1 // pred_fallthru
      _
    // Predicated region
    $region66: #{oracle_forward.1} parent=1 // pred_check
      _
    $region67: #{oracle_forward.1} parent=1 // pred_check_branch
      %125 = sbr.rel (0) target = $region69
    $region68: #{oracle_forward.1} parent=1 // pred_region
      _
    $region69: #{oracle_forward.1} parent=1 // pred_fallthru
      _
    // Predicated region
    $region70: #{oracle_forward.1} parent=1 // pred_check
      _
    $region71: #{oracle_forward.1} parent=1 // pred_check_branch
      %127 = sbr.rel (0) target = $region73
    $region72: #{oracle_forward.1} parent=1 // pred_region
      %129 = dma.done [#allocation4], 1024
    $region73: #{oracle_forward.1} parent=1 // pred_fallthru
      _
    // Predicated region
    $region74: #{oracle_forward.1} parent=1 // pred_check
      _
    $region75: #{oracle_forward.1} parent=1 // pred_check_branch
      %131 = sbr.rel (0) target = $region77
    $region76: #{oracle_forward.1} parent=1 // pred_region
      %133 = dma.done [#allocation6], 4096
    $region77: #{oracle_forward.1} parent=1 // pred_fallthru
      _
    // Predicated region
    $region78: #{oracle_forward.1} parent=1 // pred_check
      _
    $region79: #{oracle_forward.1} parent=1 // pred_check_branch
      %135 = sbr.rel (0) target = $region81
    $region80: #{oracle_forward.1} parent=1 // pred_region
      %137 = dma.done [#allocation6], 4096
    $region81: #{oracle_forward.1} parent=1 // pred_fallthru
      _
    // Predicated region
    $region82: #{oracle_forward.1} parent=1 // pred_check
      _
    $region83: #{oracle_forward.1} parent=1 // pred_check_branch
      %139 = sbr.rel (0) target = $region85
    $region84: #{oracle_forward.1} parent=1 // pred_region
      %141 = dma.done [#allocation9], 2048
    $region85: #{oracle_forward.1} parent=1 // pred_fallthru
      _
    // Predicated region
    $region86: #{oracle_forward.1} parent=1 // pred_check
      _
    $region87: #{oracle_forward.1} parent=1 // pred_check_branch
      %143 = sbr.rel (0) target = $region89
    $region88: #{oracle_forward.1} parent=1 // pred_region
      %145 = dma.done [#allocation9], 1024
    $region89: #{oracle_forward.1} parent=1 // pred_fallthru
      _
    // Predicated region
    $region90: #{oracle_forward.1} parent=1 // pred_check
      _
    $region91: #{oracle_forward.1} parent=1 // pred_check_branch
      %147 = sbr.rel (0) target = $region93
    $region92: #{oracle_forward.1} parent=1 // pred_region
      %149 = dma.done [#allocation12], 1024
    $region93: #{oracle_forward.1} parent=1 // pred_fallthru
      _
    %v150 = vlaneseq
    %v151 = vand.u32 %v150, 127
    %v152 = vld [vmem:[%s0] sm:$0xff]
    %v153 = vld [vmem:[%s0 + $0x8] sm:$0xff]
    %v154 = vld [vmem:[%s0 + $0x10] sm:$0xff]
    %v155 = vld [vmem:[%s0 + $0x18] sm:$0xff]
    %v156 = vld [vmem:[%s0 + $0x20] sm:$0xff]
    %v157 = vld [vmem:[%s0 + $0x28] sm:$0xff]
    %v158 = vld [vmem:[%s0 + $0x30] sm:$0xff]
    %v159 = vld [vmem:[%s0 + $0x38] sm:$0xff]
    %v160 = vld [vmem:[%s0 + $0x40] sm:$0xff]
    %v161 = vld [vmem:[%s0 + $0x48] sm:$0xff]
    %v162 = vld [vmem:[%s0 + $0x50] sm:$0xff]
    %v163 = vld [vmem:[%s0 + $0x58] sm:$0xff]
    %v164 = vld [vmem:[%s0 + $0x60] sm:$0xff]
    %v165 = vld [vmem:[%s0 + $0x68] sm:$0xff]
    %v166 = vld [vmem:[%s0 + $0x70] sm:$0xff]
    %v167 = vld [vmem:[%s0 + $0x78] sm:$0xff]
    %168 = vset.pattern.permute.xlu0 0
    %169 = vperm.xlu0 %168, %v152
    %v170 = vpop.permute.xlu0 %169
    %171 = vset.pattern.permute.xlu0 0
    %172 = vperm.xlu0 %171, %v153
    %v173 = vpop.permute.xlu0 %172
    %174 = vset.pattern.permute.xlu0 0
    %175 = vperm.xlu0 %174, %v154
    %v176 = vpop.permute.xlu0 %175
    %177 = vset.pattern.permute.xlu0 0
    %178 = vperm.xlu0 %177, %v155
    %v179 = vpop.permute.xlu0 %178
    %180 = vset.pattern.permute.xlu0 0
    %181 = vperm.xlu0 %180, %v156
    %v182 = vpop.permute.xlu0 %181
    %183 = vset.pattern.permute.xlu0 0
    %184 = vperm.xlu0 %183, %v157
    %v185 = vpop.permute.xlu0 %184
    %186 = vset.pattern.permute.xlu0 0
    %187 = vperm.xlu0 %186, %v158
    %v188 = vpop.permute.xlu0 %187
    %189 = vset.pattern.permute.xlu0 0
    %190 = vperm.xlu0 %189, %v159
    %v191 = vpop.permute.xlu0 %190
    %192 = vset.pattern.permute.xlu0 0
    %193 = vperm.xlu0 %192, %v160
    %v194 = vpop.permute.xlu0 %193
    %195 = vset.pattern.permute.xlu0 0
    %196 = vperm.xlu0 %195, %v161
    %v197 = vpop.permute.xlu0 %196
    %198 = vset.pattern.permute.xlu0 0
    %199 = vperm.xlu0 %198, %v162
    %v200 = vpop.permute.xlu0 %199
    %201 = vset.pattern.permute.xlu0 0
    %202 = vperm.xlu0 %201, %v163
    %v203 = vpop.permute.xlu0 %202
    %204 = vset.pattern.permute.xlu0 0
    %205 = vperm.xlu0 %204, %v164
    %v206 = vpop.permute.xlu0 %205
    %207 = vset.pattern.permute.xlu0 0
    %208 = vperm.xlu0 %207, %v165
    %v209 = vpop.permute.xlu0 %208
    %210 = vset.pattern.permute.xlu0 0
    %211 = vperm.xlu0 %210, %v166
    %v212 = vpop.permute.xlu0 %211
    %213 = vset.pattern.permute.xlu0 0
    %214 = vperm.xlu0 %213, %v167
    %v215 = vpop.permute.xlu0 %214
    %vm216 = vcmp.eq.s32.totalorder %v170, %v151
    %vm217 = vcmp.eq.s32.totalorder %v173, %v151
    %vm218 = vcmp.eq.s32.totalorder %v176, %v151
    %vm219 = vcmp.eq.s32.totalorder %v179, %v151
    %vm220 = vcmp.eq.s32.totalorder %v182, %v151
    %vm221 = vcmp.eq.s32.totalorder %v185, %v151
    %vm222 = vcmp.eq.s32.totalorder %v188, %v151
    %vm223 = vcmp.eq.s32.totalorder %v191, %v151
    %vm224 = vcmp.eq.s32.totalorder %v194, %v151
    %vm225 = vcmp.eq.s32.totalorder %v197, %v151
    %vm226 = vcmp.eq.s32.totalorder %v200, %v151
    %vm227 = vcmp.eq.s32.totalorder %v203, %v151
    %vm228 = vcmp.eq.s32.totalorder %v206, %v151
    %vm229 = vcmp.eq.s32.totalorder %v209, %v151
    %vm230 = vcmp.eq.s32.totalorder %v212, %v151
    %vm231 = vcmp.eq.s32.totalorder %v215, %v151
    %v232 = vsel %vm216, 1.0, 0.0
    %v233 = vsel %vm217, 1.0, 0.0
    %v234 = vsel %vm218, 1.0, 0.0
    %v235 = vsel %vm219, 1.0, 0.0
    %v236 = vsel %vm220, 1.0, 0.0
    %v237 = vsel %vm221, 1.0, 0.0
    %v238 = vsel %vm222, 1.0, 0.0
    %v239 = vsel %vm223, 1.0, 0.0
    %v240 = vsel %vm224, 1.0, 0.0
    %v241 = vsel %vm225, 1.0, 0.0
    %v242 = vsel %vm226, 1.0, 0.0
    %v243 = vsel %vm227, 1.0, 0.0
    %v244 = vsel %vm228, 1.0, 0.0
    %v245 = vsel %vm229, 1.0, 0.0
    %v246 = vsel %vm230, 1.0, 0.0
    %v247 = vsel %vm231, 1.0, 0.0
    %v248 = vpack.c.bf16 %v233, %v232
    %v249 = vpack.c.bf16 %v235, %v234
    %v250 = vpack.c.bf16 %v237, %v236
    %v251 = vpack.c.bf16 %v239, %v238
    %v252 = vpack.c.bf16 %v241, %v240
    %v253 = vpack.c.bf16 %v243, %v242
    %v254 = vpack.c.bf16 %v245, %v244
    %v255 = vpack.c.bf16 %v247, %v246
    %v256 = vld [vmem:[#allocation3] sm:$0xf]
    %v257 = vld [vmem:[#allocation3 + $0x4] sm:$0xf]
    %v258 = vld [vmem:[#allocation3 + $0x8] sm:$0xf]
    %v259 = vld [vmem:[#allocation3 + $0xc] sm:$0xf]
    %v260 = vld [vmem:[#allocation3 + $0x10] sm:$0xf]
    %v261 = vld [vmem:[#allocation3 + $0x14] sm:$0xf]
    %v262 = vld [vmem:[#allocation3 + $0x18] sm:$0xf]
    %v263 = vld [vmem:[#allocation3 + $0x1c] sm:$0xf]
    %v264 = vld [vmem:[#allocation3 + $0x20] sm:$0xf]
    %v265 = vld [vmem:[#allocation3 + $0x24] sm:$0xf]
    %v266 = vld [vmem:[#allocation3 + $0x28] sm:$0xf]
    %v267 = vld [vmem:[#allocation3 + $0x2c] sm:$0xf]
    %v268 = vld [vmem:[#allocation3 + $0x30] sm:$0xf]
    %v269 = vld [vmem:[#allocation3 + $0x34] sm:$0xf]
    %v270 = vld [vmem:[#allocation3 + $0x38] sm:$0xf]
    %v271 = vld [vmem:[#allocation3 + $0x3c] sm:$0xf]
    %v288 = vunpack.c.l.b16 %v256
    %v289 = vunpack.c.l.b16 %v257
    %v290 = vunpack.c.l.b16 %v258
    %v291 = vunpack.c.l.b16 %v259
    %v292 = vunpack.c.l.b16 %v260
    %v293 = vunpack.c.l.b16 %v261
    %v294 = vunpack.c.l.b16 %v262
    %v295 = vunpack.c.l.b16 %v263
    %v296 = vunpack.c.l.b16 %v264
    %v297 = vunpack.c.l.b16 %v265
    %v298 = vunpack.c.l.b16 %v266
    %v299 = vunpack.c.l.b16 %v267
    %v300 = vunpack.c.l.b16 %v268
    %v301 = vunpack.c.l.b16 %v269
    %v302 = vunpack.c.l.b16 %v270
    %v303 = vunpack.c.l.b16 %v271
    %v304 = vpack.c.b16 %v289, %v288
    %v305 = vpack.c.b16 %v291, %v290
    %v306 = vpack.c.b16 %v293, %v292
    %v307 = vpack.c.b16 %v295, %v294
    %v308 = vpack.c.b16 %v297, %v296
    %v309 = vpack.c.b16 %v299, %v298
    %v310 = vpack.c.b16 %v301, %v300
    %v311 = vpack.c.b16 %v303, %v302
    %320 = vmatpush.bf16.msra.mxu0 %v311
    %321 = vmatpush.bf16.msra.mxu0 %v310
    %322 = vmatpush.bf16.msra.mxu0 %v309
    %323 = vmatpush.bf16.msra.mxu0 %v308
    %324 = vmatpush.bf16.msra.mxu0 %v307
    %325 = vmatpush.bf16.msra.mxu0 %v306
    %326 = vmatpush.bf16.msra.mxu0 %v305
    %327 = vmatpush.bf16.msra.mxu0 %v304
    %328 = vmatmul.bf16.gmra.mxu0 %v248
    %v329 = vpop.f32.mrf.mxu0
    %v330 = vadd.f32 0.0, %v329
    %v331 = vpop.f32.mrf.mxu0
    %v332 = vadd.f32 0.0, %v331
    %333 = vmatmul.bf16.gmra.mxu0 %v249
    %v334 = vpop.f32.mrf.mxu0
    %v335 = vadd.f32 0.0, %v334
    %v336 = vpop.f32.mrf.mxu0
    %v337 = vadd.f32 0.0, %v336
    %338 = vmatmul.bf16.gmra.mxu0 %v250
    %v339 = vpop.f32.mrf.mxu0
    %v340 = vadd.f32 0.0, %v339
    %v341 = vpop.f32.mrf.mxu0
    %v342 = vadd.f32 0.0, %v341
    %343 = vmatmul.bf16.gmra.mxu0 %v251
    %v344 = vpop.f32.mrf.mxu0
    %v345 = vadd.f32 0.0, %v344
    %v346 = vpop.f32.mrf.mxu0
    %v347 = vadd.f32 0.0, %v346
    %348 = vmatmul.bf16.gmra.mxu0 %v252
    %v349 = vpop.f32.mrf.mxu0
    %v350 = vadd.f32 0.0, %v349
    %v351 = vpop.f32.mrf.mxu0
    %v352 = vadd.f32 0.0, %v351
    %353 = vmatmul.bf16.gmra.mxu0 %v253
    %v354 = vpop.f32.mrf.mxu0
    %v355 = vadd.f32 0.0, %v354
    %v356 = vpop.f32.mrf.mxu0
    %v357 = vadd.f32 0.0, %v356
    %358 = vmatmul.bf16.gmra.mxu0 %v254
    %v359 = vpop.f32.mrf.mxu0
    %v360 = vadd.f32 0.0, %v359
    %v361 = vpop.f32.mrf.mxu0
    %v362 = vadd.f32 0.0, %v361
    %363 = vmatmul.bf16.gmra.mxu0 %v255
    %v364 = vpop.f32.mrf.mxu0
    %v365 = vadd.f32 0.0, %v364
    %v366 = vpop.f32.mrf.mxu0
    %v367 = vadd.f32 0.0, %v366
    %368 = vdwg.mxu0
    %v369 = vpack.c.bf16 %v332, %v330
    %v370 = vpack.c.bf16 %v337, %v335
    %v371 = vpack.c.bf16 %v342, %v340
    %v372 = vpack.c.bf16 %v347, %v345
    %v373 = vpack.c.bf16 %v352, %v350
    %v374 = vpack.c.bf16 %v357, %v355
    %v375 = vpack.c.bf16 %v362, %v360
    %v376 = vpack.c.bf16 %v367, %v365
    %v377 = vld [vmem:[#allocation5] sm:$0xff]
    %v378 = vld [vmem:[#allocation5 + $0x8] sm:$0xff]
    %v379 = vld [vmem:[#allocation5 + $0x10] sm:$0xff]
    %v380 = vld [vmem:[#allocation5 + $0x18] sm:$0xff]
    %v381 = vld [vmem:[#allocation5 + $0x20] sm:$0xff]
    %v382 = vld [vmem:[#allocation5 + $0x28] sm:$0xff]
    %v383 = vld [vmem:[#allocation5 + $0x30] sm:$0xff]
    %v384 = vld [vmem:[#allocation5 + $0x38] sm:$0xff]
    %v385 = vld [vmem:[#allocation5 + $0x40] sm:$0xff]
    %v386 = vld [vmem:[#allocation5 + $0x48] sm:$0xff]
    %v387 = vld [vmem:[#allocation5 + $0x50] sm:$0xff]
    %v388 = vld [vmem:[#allocation5 + $0x58] sm:$0xff]
    %v389 = vld [vmem:[#allocation5 + $0x60] sm:$0xff]
    %v390 = vld [vmem:[#allocation5 + $0x68] sm:$0xff]
    %v391 = vld [vmem:[#allocation5 + $0x70] sm:$0xff]
    %v392 = vld [vmem:[#allocation5 + $0x78] sm:$0xff]
    %v393 = vld [vmem:[#allocation5 + $0x80] sm:$0xff]
    %v394 = vld [vmem:[#allocation5 + $0x88] sm:$0xff]
    %v395 = vld [vmem:[#allocation5 + $0x90] sm:$0xff]
    %v396 = vld [vmem:[#allocation5 + $0x98] sm:$0xff]
    %v397 = vld [vmem:[#allocation5 + $0xa0] sm:$0xff]
    %v398 = vld [vmem:[#allocation5 + $0xa8] sm:$0xff]
    %v399 = vld [vmem:[#allocation5 + $0xb0] sm:$0xff]
    %v400 = vld [vmem:[#allocation5 + $0xb8] sm:$0xff]
    %v401 = vld [vmem:[#allocation5 + $0xc0] sm:$0xff]
    %v402 = vld [vmem:[#allocation5 + $0xc8] sm:$0xff]
    %v403 = vld [vmem:[#allocation5 + $0xd0] sm:$0xff]
    %v404 = vld [vmem:[#allocation5 + $0xd8] sm:$0xff]
    %v405 = vld [vmem:[#allocation5 + $0xe0] sm:$0xff]
    %v406 = vld [vmem:[#allocation5 + $0xe8] sm:$0xff]
    %v407 = vld [vmem:[#allocation5 + $0xf0] sm:$0xff]
    %v408 = vld [vmem:[#allocation5 + $0xf8] sm:$0xff]
    %v409 = vld [vmem:[%s5] sm:$0xf]
    %v411 = vperm.slane %v409, 0
    %v412 = vperm.slane %v409, 1
    %v413 = vperm.slane %v409, 2
    %v414 = vperm.slane %v409, 3
    %v451 = vunpack.c.l.b16 %v377
    %v452 = vunpack.c.h.b16 %v377
    %v453 = vunpack.c.l.b16 %v378
    %v454 = vunpack.c.h.b16 %v378
    %v455 = vunpack.c.l.b16 %v379
    %v456 = vunpack.c.h.b16 %v379
    %v457 = vunpack.c.l.b16 %v380
    %v458 = vunpack.c.h.b16 %v380
    %v459 = vunpack.c.l.b16 %v381
    %v460 = vunpack.c.h.b16 %v381
    %v461 = vunpack.c.l.b16 %v382
    %v462 = vunpack.c.h.b16 %v382
    %v463 = vunpack.c.l.b16 %v383
    %v464 = vunpack.c.h.b16 %v383
    %v465 = vunpack.c.l.b16 %v384
    %v466 = vunpack.c.h.b16 %v384
    %v467 = vunpack.c.l.b16 %v385
    %v468 = vunpack.c.h.b16 %v385
    %v469 = vunpack.c.l.b16 %v386
    %v470 = vunpack.c.h.b16 %v386
    %v471 = vunpack.c.l.b16 %v387
    %v472 = vunpack.c.h.b16 %v387
    %v473 = vunpack.c.l.b16 %v388
    %v474 = vunpack.c.h.b16 %v388
    %v475 = vunpack.c.l.b16 %v389
    %v476 = vunpack.c.h.b16 %v389
    %v477 = vunpack.c.l.b16 %v390
    %v478 = vunpack.c.h.b16 %v390
    %v479 = vunpack.c.l.b16 %v391
    %v480 = vunpack.c.h.b16 %v391
    %v481 = vunpack.c.l.b16 %v392
    %v482 = vunpack.c.h.b16 %v392
    %v483 = vunpack.c.l.b16 %v393
    %v484 = vunpack.c.h.b16 %v393
    %v485 = vunpack.c.l.b16 %v394
    %v486 = vunpack.c.h.b16 %v394
    %v487 = vunpack.c.l.b16 %v395
    %v488 = vunpack.c.h.b16 %v395
    %v489 = vunpack.c.l.b16 %v396
    %v490 = vunpack.c.h.b16 %v396
    %v491 = vunpack.c.l.b16 %v397
    %v492 = vunpack.c.h.b16 %v397
    %v493 = vunpack.c.l.b16 %v398
    %v494 = vunpack.c.h.b16 %v398
    %v495 = vunpack.c.l.b16 %v399
    %v496 = vunpack.c.h.b16 %v399
    %v497 = vunpack.c.l.b16 %v400
    %v498 = vunpack.c.h.b16 %v400
    %v499 = vunpack.c.l.b16 %v401
    %v500 = vunpack.c.h.b16 %v401
    %v501 = vunpack.c.l.b16 %v402
    %v502 = vunpack.c.h.b16 %v402
    %v503 = vunpack.c.l.b16 %v403
    %v504 = vunpack.c.h.b16 %v403
    %v505 = vunpack.c.l.b16 %v404
    %v506 = vunpack.c.h.b16 %v404
    %v507 = vunpack.c.l.b16 %v405
    %v508 = vunpack.c.h.b16 %v405
    %v509 = vunpack.c.l.b16 %v406
    %v510 = vunpack.c.h.b16 %v406
    %v511 = vunpack.c.l.b16 %v407
    %v512 = vunpack.c.h.b16 %v407
    %v513 = vunpack.c.l.b16 %v408
    %v514 = vunpack.c.h.b16 %v408
    %v515 = vpack.c.b16 %v455, %v451
    %v516 = vpack.c.b16 %v456, %v452
    %v517 = vpack.c.b16 %v457, %v453
    %v518 = vpack.c.b16 %v458, %v454
    %v519 = vpack.c.b16 %v463, %v459
    %v520 = vpack.c.b16 %v464, %v460
    %v521 = vpack.c.b16 %v465, %v461
    %v522 = vpack.c.b16 %v466, %v462
    %v523 = vpack.c.b16 %v471, %v467
    %v524 = vpack.c.b16 %v472, %v468
    %v525 = vpack.c.b16 %v473, %v469
    %v526 = vpack.c.b16 %v474, %v470
    %v527 = vpack.c.b16 %v479, %v475
    %v528 = vpack.c.b16 %v480, %v476
    %v529 = vpack.c.b16 %v481, %v477
    %v530 = vpack.c.b16 %v482, %v478
    %v531 = vpack.c.b16 %v487, %v483
    %v532 = vpack.c.b16 %v488, %v484
    %v533 = vpack.c.b16 %v489, %v485
    %v534 = vpack.c.b16 %v490, %v486
    %v535 = vpack.c.b16 %v495, %v491
    %v536 = vpack.c.b16 %v496, %v492
    %v537 = vpack.c.b16 %v497, %v493
    %v538 = vpack.c.b16 %v498, %v494
    %v539 = vpack.c.b16 %v503, %v499
    %v540 = vpack.c.b16 %v504, %v500
    %v541 = vpack.c.b16 %v505, %v501
    %v542 = vpack.c.b16 %v506, %v502
    %v543 = vpack.c.b16 %v511, %v507
    %v544 = vpack.c.b16 %v512, %v508
    %v545 = vpack.c.b16 %v513, %v509
    %v546 = vpack.c.b16 %v514, %v510
    %579 = vmatpush.bf16.msra.mxu0 %v543
    %580 = vmatpush.bf16.msra.mxu0 %v539
    %581 = vmatpush.bf16.msra.mxu0 %v535
    %582 = vmatpush.bf16.msra.mxu0 %v531
    %583 = vmatpush.bf16.msra.mxu0 %v527
    %584 = vmatpush.bf16.msra.mxu0 %v523
    %585 = vmatpush.bf16.msra.mxu0 %v519
    %586 = vmatpush.bf16.msra.mxu0 %v515
    %587 = vmatmul.bf16.gmra.mxu0 %v369
    %v588 = vpop.f32.mrf.mxu0
    %v589 = vadd.f32 %v411, %v588
    %v590 = vpop.f32.mrf.mxu0
    %v591 = vadd.f32 %v411, %v590
    %592 = vmatmul.bf16.gmra.mxu0 %v370
    %v593 = vpop.f32.mrf.mxu0
    %v594 = vadd.f32 %v411, %v593
    %v595 = vpop.f32.mrf.mxu0
    %v596 = vadd.f32 %v411, %v595
    %597 = vmatmul.bf16.gmra.mxu0 %v371
    %v598 = vpop.f32.mrf.mxu0
    %v599 = vadd.f32 %v411, %v598
    %v600 = vpop.f32.mrf.mxu0
    %v601 = vadd.f32 %v411, %v600
    %602 = vmatmul.bf16.gmra.mxu0 %v372
    %v603 = vpop.f32.mrf.mxu0
    %v604 = vadd.f32 %v411, %v603
    %v605 = vpop.f32.mrf.mxu0
    %v606 = vadd.f32 %v411, %v605
    %607 = vmatmul.bf16.gmra.mxu0 %v373
    %v608 = vpop.f32.mrf.mxu0
    %v609 = vadd.f32 %v411, %v608
    %v610 = vpop.f32.mrf.mxu0
    %v611 = vadd.f32 %v411, %v610
    %612 = vmatmul.bf16.gmra.mxu0 %v374
    %v613 = vpop.f32.mrf.mxu0
    %v614 = vadd.f32 %v411, %v613
    %v615 = vpop.f32.mrf.mxu0
    %v616 = vadd.f32 %v411, %v615
    %617 = vmatmul.bf16.gmra.mxu0 %v375
    %v618 = vpop.f32.mrf.mxu0
    %v619 = vadd.f32 %v411, %v618
    %v620 = vpop.f32.mrf.mxu0
    %v621 = vadd.f32 %v411, %v620
    %622 = vmatmul.bf16.gmra.mxu0 %v376
    %v623 = vpop.f32.mrf.mxu0
    %v624 = vadd.f32 %v411, %v623
    %v625 = vpop.f32.mrf.mxu0
    %v626 = vadd.f32 %v411, %v625
    %627 = vdwg.mxu0
    %628 = vmatpush.bf16.msra.mxu0 %v544
    %629 = vmatpush.bf16.msra.mxu0 %v540
    %630 = vmatpush.bf16.msra.mxu0 %v536
    %631 = vmatpush.bf16.msra.mxu0 %v532
    %632 = vmatpush.bf16.msra.mxu0 %v528
    %633 = vmatpush.bf16.msra.mxu0 %v524
    %634 = vmatpush.bf16.msra.mxu0 %v520
    %635 = vmatpush.bf16.msra.mxu0 %v516
    %636 = vmatmul.bf16.gmra.mxu0 %v369
    %v637 = vpop.f32.mrf.mxu0
    %v638 = vadd.f32 %v412, %v637
    %v639 = vpop.f32.mrf.mxu0
    %v640 = vadd.f32 %v412, %v639
    %641 = vmatmul.bf16.gmra.mxu0 %v370
    %v642 = vpop.f32.mrf.mxu0
    %v643 = vadd.f32 %v412, %v642
    %v644 = vpop.f32.mrf.mxu0
    %v645 = vadd.f32 %v412, %v644
    %646 = vmatmul.bf16.gmra.mxu0 %v371
    %v647 = vpop.f32.mrf.mxu0
    %v648 = vadd.f32 %v412, %v647
    %v649 = vpop.f32.mrf.mxu0
    %v650 = vadd.f32 %v412, %v649
    %651 = vmatmul.bf16.gmra.mxu0 %v372
    %v652 = vpop.f32.mrf.mxu0
    %v653 = vadd.f32 %v412, %v652
    %v654 = vpop.f32.mrf.mxu0
    %v655 = vadd.f32 %v412, %v654
    %656 = vmatmul.bf16.gmra.mxu0 %v373
    %v657 = vpop.f32.mrf.mxu0
    %v658 = vadd.f32 %v412, %v657
    %v659 = vpop.f32.mrf.mxu0
    %v660 = vadd.f32 %v412, %v659
    %661 = vmatmul.bf16.gmra.mxu0 %v374
    %v662 = vpop.f32.mrf.mxu0
    %v663 = vadd.f32 %v412, %v662
    %v664 = vpop.f32.mrf.mxu0
    %v665 = vadd.f32 %v412, %v664
    %666 = vmatmul.bf16.gmra.mxu0 %v375
    %v667 = vpop.f32.mrf.mxu0
    %v668 = vadd.f32 %v412, %v667
    %v669 = vpop.f32.mrf.mxu0
    %v670 = vadd.f32 %v412, %v669
    %671 = vmatmul.bf16.gmra.mxu0 %v376
    %v672 = vpop.f32.mrf.mxu0
    %v673 = vadd.f32 %v412, %v672
    %v674 = vpop.f32.mrf.mxu0
    %v675 = vadd.f32 %v412, %v674
    %676 = vdwg.mxu0
    %677 = vmatpush.bf16.msra.mxu0 %v545
    %678 = vmatpush.bf16.msra.mxu0 %v541
    %679 = vmatpush.bf16.msra.mxu0 %v537
    %680 = vmatpush.bf16.msra.mxu0 %v533
    %681 = vmatpush.bf16.msra.mxu0 %v529
    %682 = vmatpush.bf16.msra.mxu0 %v525
    %683 = vmatpush.bf16.msra.mxu0 %v521
    %684 = vmatpush.bf16.msra.mxu0 %v517
    %685 = vmatmul.bf16.gmra.mxu0 %v369
    %v686 = vpop.f32.mrf.mxu0
    %v687 = vadd.f32 %v413, %v686
    %v688 = vpop.f32.mrf.mxu0
    %v689 = vadd.f32 %v413, %v688
    %690 = vmatmul.bf16.gmra.mxu0 %v370
    %v691 = vpop.f32.mrf.mxu0
    %v692 = vadd.f32 %v413, %v691
    %v693 = vpop.f32.mrf.mxu0
    %v694 = vadd.f32 %v413, %v693
    %695 = vmatmul.bf16.gmra.mxu0 %v371
    %v696 = vpop.f32.mrf.mxu0
    %v697 = vadd.f32 %v413, %v696
    %v698 = vpop.f32.mrf.mxu0
    %v699 = vadd.f32 %v413, %v698
    %700 = vmatmul.bf16.gmra.mxu0 %v372
    %v701 = vpop.f32.mrf.mxu0
    %v702 = vadd.f32 %v413, %v701
    %v703 = vpop.f32.mrf.mxu0
    %v704 = vadd.f32 %v413, %v703
    %705 = vmatmul.bf16.gmra.mxu0 %v373
    %v706 = vpop.f32.mrf.mxu0
    %v707 = vadd.f32 %v413, %v706
    %v708 = vpop.f32.mrf.mxu0
    %v709 = vadd.f32 %v413, %v708
    %710 = vmatmul.bf16.gmra.mxu0 %v374
    %v711 = vpop.f32.mrf.mxu0
    %v712 = vadd.f32 %v413, %v711
    %v713 = vpop.f32.mrf.mxu0
    %v714 = vadd.f32 %v413, %v713
    %715 = vmatmul.bf16.gmra.mxu0 %v375
    %v716 = vpop.f32.mrf.mxu0
    %v717 = vadd.f32 %v413, %v716
    %v718 = vpop.f32.mrf.mxu0
    %v719 = vadd.f32 %v413, %v718
    %720 = vmatmul.bf16.gmra.mxu0 %v376
    %v721 = vpop.f32.mrf.mxu0
    %v722 = vadd.f32 %v413, %v721
    %v723 = vpop.f32.mrf.mxu0
    %v724 = vadd.f32 %v413, %v723
    %725 = vdwg.mxu0
    %726 = vmatpush.bf16.msra.mxu0 %v546
    %727 = vmatpush.bf16.msra.mxu0 %v542
    %728 = vmatpush.bf16.msra.mxu0 %v538
    %729 = vmatpush.bf16.msra.mxu0 %v534
    %730 = vmatpush.bf16.msra.mxu0 %v530
    %731 = vmatpush.bf16.msra.mxu0 %v526
    %732 = vmatpush.bf16.msra.mxu0 %v522
    %733 = vmatpush.bf16.msra.mxu0 %v518
    %734 = vmatmul.bf16.gmra.mxu0 %v369
    %v735 = vpop.f32.mrf.mxu0
    %v736 = vadd.f32 %v414, %v735
    %v737 = vpop.f32.mrf.mxu0
    %v738 = vadd.f32 %v414, %v737
    %739 = vmatmul.bf16.gmra.mxu0 %v370
    %v740 = vpop.f32.mrf.mxu0
    %v741 = vadd.f32 %v414, %v740
    %v742 = vpop.f32.mrf.mxu0
    %v743 = vadd.f32 %v414, %v742
    %744 = vmatmul.bf16.gmra.mxu0 %v371
    %v745 = vpop.f32.mrf.mxu0
    %v746 = vadd.f32 %v414, %v745
    %v747 = vpop.f32.mrf.mxu0
    %v748 = vadd.f32 %v414, %v747
    %749 = vmatmul.bf16.gmra.mxu0 %v372
    %v750 = vpop.f32.mrf.mxu0
    %v751 = vadd.f32 %v414, %v750
    %v752 = vpop.f32.mrf.mxu0
    %v753 = vadd.f32 %v414, %v752
    %754 = vmatmul.bf16.gmra.mxu0 %v373
    %v755 = vpop.f32.mrf.mxu0
    %v756 = vadd.f32 %v414, %v755
    %v757 = vpop.f32.mrf.mxu0
    %v758 = vadd.f32 %v414, %v757
    %759 = vmatmul.bf16.gmra.mxu0 %v374
    %v760 = vpop.f32.mrf.mxu0
    %v761 = vadd.f32 %v414, %v760
    %v762 = vpop.f32.mrf.mxu0
    %v763 = vadd.f32 %v414, %v762
    %764 = vmatmul.bf16.gmra.mxu0 %v375
    %v765 = vpop.f32.mrf.mxu0
    %v766 = vadd.f32 %v414, %v765
    %v767 = vpop.f32.mrf.mxu0
    %v768 = vadd.f32 %v414, %v767
    %769 = vmatmul.bf16.gmra.mxu0 %v376
    %v770 = vpop.f32.mrf.mxu0
    %v771 = vadd.f32 %v414, %v770
    %v772 = vpop.f32.mrf.mxu0
    %v773 = vadd.f32 %v414, %v772
    %774 = vdwg.mxu0
    %775 = vst [vmem:[#allocation2] sm:$0xff] %v589
    %776 = vst [vmem:[#allocation2 + $0x8] sm:$0xff] %v638
    %777 = vst [vmem:[#allocation2 + $0x10] sm:$0xff] %v687
    %778 = vst [vmem:[#allocation2 + $0x18] sm:$0xff] %v736
    %779 = vst [vmem:[#allocation2 + $0x20] sm:$0xff] %v591
    %780 = vst [vmem:[#allocation2 + $0x28] sm:$0xff] %v640
    %781 = vst [vmem:[#allocation2 + $0x30] sm:$0xff] %v689
    %782 = vst [vmem:[#allocation2 + $0x38] sm:$0xff] %v738
    %783 = vst [vmem:[#allocation2 + $0x40] sm:$0xff] %v594
    %784 = vst [vmem:[#allocation2 + $0x48] sm:$0xff] %v643
    %785 = vst [vmem:[#allocation2 + $0x50] sm:$0xff] %v692
    %786 = vst [vmem:[#allocation2 + $0x58] sm:$0xff] %v741
    %787 = vst [vmem:[#allocation2 + $0x60] sm:$0xff] %v596
    %788 = vst [vmem:[#allocation2 + $0x68] sm:$0xff] %v645
    %789 = vst [vmem:[#allocation2 + $0x70] sm:$0xff] %v694
    %790 = vst [vmem:[#allocation2 + $0x78] sm:$0xff] %v743
    %791 = vst [vmem:[#allocation2 + $0x80] sm:$0xff] %v599
    %792 = vst [vmem:[#allocation2 + $0x88] sm:$0xff] %v648
    %793 = vst [vmem:[#allocation2 + $0x90] sm:$0xff] %v697
    %794 = vst [vmem:[#allocation2 + $0x98] sm:$0xff] %v746
    %795 = vst [vmem:[#allocation2 + $0xa0] sm:$0xff] %v601
    %796 = vst [vmem:[#allocation2 + $0xa8] sm:$0xff] %v650
    %797 = vst [vmem:[#allocation2 + $0xb0] sm:$0xff] %v699
    %798 = vst [vmem:[#allocation2 + $0xb8] sm:$0xff] %v748
    %799 = vst [vmem:[#allocation2 + $0xc0] sm:$0xff] %v604
    %800 = vst [vmem:[#allocation2 + $0xc8] sm:$0xff] %v653
    %801 = vst [vmem:[#allocation2 + $0xd0] sm:$0xff] %v702
    %802 = vst [vmem:[#allocation2 + $0xd8] sm:$0xff] %v751
    %803 = vst [vmem:[#allocation2 + $0xe0] sm:$0xff] %v606
    %804 = vst [vmem:[#allocation2 + $0xe8] sm:$0xff] %v655
    %805 = vst [vmem:[#allocation2 + $0xf0] sm:$0xff] %v704
    %806 = vst [vmem:[#allocation2 + $0xf8] sm:$0xff] %v753
    %807 = vst [vmem:[#allocation2 + $0x100] sm:$0xff] %v609
    %808 = vst [vmem:[#allocation2 + $0x108] sm:$0xff] %v658
    %809 = vst [vmem:[#allocation2 + $0x110] sm:$0xff] %v707
    %810 = vst [vmem:[#allocation2 + $0x118] sm:$0xff] %v756
    %811 = vst [vmem:[#allocation2 + $0x120] sm:$0xff] %v611
    %812 = vst [vmem:[#allocation2 + $0x128] sm:$0xff] %v660
    %813 = vst [vmem:[#allocation2 + $0x130] sm:$0xff] %v709
    %814 = vst [vmem:[#allocation2 + $0x138] sm:$0xff] %v758
    %815 = vst [vmem:[#allocation2 + $0x140] sm:$0xff] %v614
    %816 = vst [vmem:[#allocation2 + $0x148] sm:$0xff] %v663
    %817 = vst [vmem:[#allocation2 + $0x150] sm:$0xff] %v712
    %818 = vst [vmem:[#allocation2 + $0x158] sm:$0xff] %v761
    %819 = vst [vmem:[#allocation2 + $0x160] sm:$0xff] %v616
    %820 = vst [vmem:[#allocation2 + $0x168] sm:$0xff] %v665
    %821 = vst [vmem:[#allocation2 + $0x170] sm:$0xff] %v714
    %822 = vst [vmem:[#allocation2 + $0x178] sm:$0xff] %v763
    %823 = vst [vmem:[#allocation2 + $0x180] sm:$0xff] %v619
    %824 = vst [vmem:[#allocation2 + $0x188] sm:$0xff] %v668
    %825 = vst [vmem:[#allocation2 + $0x190] sm:$0xff] %v717
    %826 = vst [vmem:[#allocation2 + $0x198] sm:$0xff] %v766
    %827 = vst [vmem:[#allocation2 + $0x1a0] sm:$0xff] %v621
    %828 = vst [vmem:[#allocation2 + $0x1a8] sm:$0xff] %v670
    %829 = vst [vmem:[#allocation2 + $0x1b0] sm:$0xff] %v719
    %830 = vst [vmem:[#allocation2 + $0x1b8] sm:$0xff] %v768
    %831 = vst [vmem:[#allocation2 + $0x1c0] sm:$0xff] %v624
    %832 = vst [vmem:[#allocation2 + $0x1c8] sm:$0xff] %v673
    %833 = vst [vmem:[#allocation2 + $0x1d0] sm:$0xff] %v722
    %834 = vst [vmem:[#allocation2 + $0x1d8] sm:$0xff] %v771
    %835 = vst [vmem:[#allocation2 + $0x1e0] sm:$0xff] %v626
    %836 = vst [vmem:[#allocation2 + $0x1e8] sm:$0xff] %v675
    %837 = vst [vmem:[#allocation2 + $0x1f0] sm:$0xff] %v724
    %838 = vst [vmem:[#allocation2 + $0x1f8] sm:$0xff] %v773
    %v839 = vld [vmem:[%s1] sm:$0xff]
    %v840 = vld [vmem:[%s1 + $0x8] sm:$0xff]
    %v841 = vld [vmem:[#allocation7] sm:$0xff]
    %v842 = vld [vmem:[#allocation7 + $0x8] sm:$0xff]
    %v843 = vld [vmem:[#allocation7 + $0x10] sm:$0xff]
    %v844 = vld [vmem:[#allocation7 + $0x18] sm:$0xff]
    %v845 = vld [vmem:[#allocation7 + $0x20] sm:$0xff]
    %v846 = vld [vmem:[#allocation7 + $0x28] sm:$0xff]
    %v847 = vld [vmem:[#allocation7 + $0x30] sm:$0xff]
    %v848 = vld [vmem:[#allocation7 + $0x38] sm:$0xff]
    %v849 = vld [vmem:[#allocation7 + $0x40] sm:$0xff]
    %v850 = vld [vmem:[#allocation7 + $0x48] sm:$0xff]
    %v851 = vld [vmem:[#allocation7 + $0x50] sm:$0xff]
    %v852 = vld [vmem:[#allocation7 + $0x58] sm:$0xff]
    %v853 = vld [vmem:[#allocation7 + $0x60] sm:$0xff]
    %v854 = vld [vmem:[#allocation7 + $0x68] sm:$0xff]
    %v855 = vld [vmem:[#allocation7 + $0x70] sm:$0xff]
    %v856 = vld [vmem:[#allocation7 + $0x78] sm:$0xff]
    %v857 = vld [vmem:[#allocation7 + $0x80] sm:$0xff]
    %v858 = vld [vmem:[#allocation7 + $0x88] sm:$0xff]
    %v859 = vld [vmem:[#allocation7 + $0x90] sm:$0xff]
    %v860 = vld [vmem:[#allocation7 + $0x98] sm:$0xff]
    %v861 = vld [vmem:[#allocation7 + $0xa0] sm:$0xff]
    %v862 = vld [vmem:[#allocation7 + $0xa8] sm:$0xff]
    %v863 = vld [vmem:[#allocation7 + $0xb0] sm:$0xff]
    %v864 = vld [vmem:[#allocation7 + $0xb8] sm:$0xff]
    %v865 = vld [vmem:[#allocation7 + $0xc0] sm:$0xff]
    %v866 = vld [vmem:[#allocation7 + $0xc8] sm:$0xff]
    %v867 = vld [vmem:[#allocation7 + $0xd0] sm:$0xff]
    %v868 = vld [vmem:[#allocation7 + $0xd8] sm:$0xff]
    %v869 = vld [vmem:[#allocation7 + $0xe0] sm:$0xff]
    %v870 = vld [vmem:[#allocation7 + $0xe8] sm:$0xff]
    %v871 = vld [vmem:[#allocation7 + $0xf0] sm:$0xff]
    %v872 = vld [vmem:[#allocation7 + $0xf8] sm:$0xff]
    %v873 = vld [vmem:[#allocation2] sm:$0xff]
    %v874 = vld [vmem:[#allocation2 + $0x8] sm:$0xff]
    %v875 = vld [vmem:[#allocation2 + $0x10] sm:$0xff]
    %v876 = vld [vmem:[#allocation2 + $0x18] sm:$0xff]
    %v877 = vld [vmem:[#allocation2 + $0x20] sm:$0xff]
    %v878 = vld [vmem:[#allocation2 + $0x28] sm:$0xff]
    %v879 = vld [vmem:[#allocation2 + $0x30] sm:$0xff]
    %v880 = vld [vmem:[#allocation2 + $0x38] sm:$0xff]
    %v881 = vxor.u32 %v873, 2147483648
    %v882 = vxor.u32 %v874, 2147483648
    %v883 = vxor.u32 %v875, 2147483648
    %v884 = vxor.u32 %v877, 2147483648
    %v885 = vxor.u32 %v878, 2147483648
    %v886 = vxor.u32 %v879, 2147483648
    %v887 = vmul.f32 %v881, 1.442695
    %v888 = vpow.pop %v887
    %v889 = vmul.f32 %v882, 1.442695
    %v890 = vpow.pop %v889
    %v891 = vmul.f32 %v883, 1.442695
    %v892 = vpow.pop %v891
    %v893 = vmul.f32 %v884, 1.442695
    %v894 = vpow.pop %v893
    %v895 = vmul.f32 %v885, 1.442695
    %v896 = vpow.pop %v895
    %v897 = vmul.f32 %v886, 1.442695
    %v898 = vpow.pop %v897
    %v899 = vadd.f32 %v888, 1.0
    %v900 = vadd.f32 %v890, 1.0
    %v901 = vadd.f32 %v892, 1.0
    %v902 = vadd.f32 %v894, 1.0
    %v903 = vadd.f32 %v896, 1.0
    %v904 = vadd.f32 %v898, 1.0
    %v905 = vrcp.pop %v899
    %v906 = vmul.f32 %v899, %v905
    %v907 = vsub.f32 1.0, %v906
    %v908 = vmul.f32 %v905, %v907
    %v909 = vadd.f32 %v905, %v908
    %vm910 = vweird.f32 %v899
    %vm911 = vweird.f32 %v905
    %vm912 = vmor %vm910, %vm911
    %v913 = vsel %vm912, %v905, %v909
    %v914 = vand.u32 2147483647, %v899
    %vm915 = vcmp.eq.f32.partialorder %v914, 8.507059e+37
    %v916 = vand.u32 %v899, 2147483648
    %v917 = vor.u32 1.1754944e-38, %v916
    %v918 = vsel %vm915, %v917, %v913
    %v919 = vmul.f32 1.0, %v918
    %v920 = vrcp.pop %v900
    %v921 = vmul.f32 %v900, %v920
    %v922 = vsub.f32 1.0, %v921
    %v923 = vmul.f32 %v920, %v922
    %v924 = vadd.f32 %v920, %v923
    %vm925 = vweird.f32 %v900
    %vm926 = vweird.f32 %v920
    %vm927 = vmor %vm925, %vm926
    %v928 = vsel %vm927, %v920, %v924
    %v929 = vand.u32 2147483647, %v900
    %vm930 = vcmp.eq.f32.partialorder %v929, 8.507059e+37
    %v931 = vand.u32 %v900, 2147483648
    %v932 = vor.u32 1.1754944e-38, %v931
    %v933 = vsel %vm930, %v932, %v928
    %v934 = vmul.f32 1.0, %v933
    %v935 = vrcp.pop %v901
    %v936 = vmul.f32 %v901, %v935
    %v937 = vsub.f32 1.0, %v936
    %v938 = vmul.f32 %v935, %v937
    %v939 = vadd.f32 %v935, %v938
    %vm940 = vweird.f32 %v901
    %vm941 = vweird.f32 %v935
    %vm942 = vmor %vm940, %vm941
    %v943 = vsel %vm942, %v935, %v939
    %v944 = vand.u32 2147483647, %v901
    %vm945 = vcmp.eq.f32.partialorder %v944, 8.507059e+37
    %v946 = vand.u32 %v901, 2147483648
    %v947 = vor.u32 1.1754944e-38, %v946
    %v948 = vsel %vm945, %v947, %v943
    %v949 = vmul.f32 1.0, %v948
    %v950 = vrcp.pop %v902
    %v951 = vmul.f32 %v902, %v950
    %v952 = vsub.f32 1.0, %v951
    %v953 = vmul.f32 %v950, %v952
    %v954 = vadd.f32 %v950, %v953
    %vm955 = vweird.f32 %v902
    %vm956 = vweird.f32 %v950
    %vm957 = vmor %vm955, %vm956
    %v958 = vsel %vm957, %v950, %v954
    %v959 = vand.u32 2147483647, %v902
    %vm960 = vcmp.eq.f32.partialorder %v959, 8.507059e+37
    %v961 = vand.u32 %v902, 2147483648
    %v962 = vor.u32 1.1754944e-38, %v961
    %v963 = vsel %vm960, %v962, %v958
    %v964 = vmul.f32 1.0, %v963
    %v965 = vrcp.pop %v903
    %v966 = vmul.f32 %v903, %v965
    %v967 = vsub.f32 1.0, %v966
    %v968 = vmul.f32 %v965, %v967
    %v969 = vadd.f32 %v965, %v968
    %vm970 = vweird.f32 %v903
    %vm971 = vweird.f32 %v965
    %vm972 = vmor %vm970, %vm971
    %v973 = vsel %vm972, %v965, %v969
    %v974 = vand.u32 2147483647, %v903
    %vm975 = vcmp.eq.f32.partialorder %v974, 8.507059e+37
    %v976 = vand.u32 %v903, 2147483648
    %v977 = vor.u32 1.1754944e-38, %v976
    %v978 = vsel %vm975, %v977, %v973
    %v979 = vmul.f32 1.0, %v978
    %v980 = vrcp.pop %v904
    %v981 = vmul.f32 %v904, %v980
    %v982 = vsub.f32 1.0, %v981
    %v983 = vmul.f32 %v980, %v982
    %v984 = vadd.f32 %v980, %v983
    %vm985 = vweird.f32 %v904
    %vm986 = vweird.f32 %v980
    %vm987 = vmor %vm985, %vm986
    %v988 = vsel %vm987, %v980, %v984
    %v989 = vand.u32 2147483647, %v904
    %vm990 = vcmp.eq.f32.partialorder %v989, 8.507059e+37
    %v991 = vand.u32 %v904, 2147483648
    %v992 = vor.u32 1.1754944e-38, %v991
    %v993 = vsel %vm990, %v992, %v988
    %v994 = vmul.f32 1.0, %v993
    %v995 = vtanh.pop %v876
    %v996 = vtanh.pop %v880
    %v997 = vmul.f32 %v934, 0.0
    %v998 = vmul.f32 %v979, 0.0
    %v999 = vmul.f32 %v919, %v995
    %v1000 = vmul.f32 %v964, %v996
    %v1001 = vadd.f32 %v997, %v999
    %v1002 = vadd.f32 %v998, %v1000
    %v1003 = vtanh.pop %v1001
    %v1004 = vtanh.pop %v1002
    %v1005 = vmul.f32 %v949, %v1003
    %v1006 = vmul.f32 %v994, %v1004
    %vm1007 = vcmp.gt.s32.totalorder %v839, 0
    %vm1008 = vcmp.gt.s32.totalorder %v840, 0
    %v1009 = vsel %vm1007, 1, 0
    %v1010 = vsel %vm1008, 1, 0
    %1011 = vset.pattern.permute.xlu0 0
    %1012 = vperm.xlu0 %1011, %v1009
    %v1013 = vpop.permute.xlu0 %1012
    %1014 = vset.pattern.permute.xlu0 0
    %1015 = vperm.xlu0 %1014, %v1010
    %v1016 = vpop.permute.xlu0 %1015
    %vm1017 = vcmp.eq.s32.totalorder %v1013, 1
    %vm1018 = vcmp.eq.s32.totalorder %v1016, 1
    %v1019 = vsel %vm1017, %v1005, 0.0
    %v1020 = vsel %vm1018, %v1006, 0.0
    %v1021 = vsel %vm1017, %v1001, 0.0
    %v1022 = vsel %vm1018, %v1002, 0.0
    %v1023 = vld [vmem:[#allocation2 + $0x40] sm:$0xff]
    %v1024 = vld [vmem:[#allocation2 + $0x48] sm:$0xff]
    %v1025 = vld [vmem:[#allocation2 + $0x50] sm:$0xff]
    %v1026 = vld [vmem:[#allocation2 + $0x58] sm:$0xff]
    %v1027 = vld [vmem:[#allocation2 + $0x60] sm:$0xff]
    %v1028 = vld [vmem:[#allocation2 + $0x68] sm:$0xff]
    %v1029 = vld [vmem:[#allocation2 + $0x70] sm:$0xff]
    %v1030 = vld [vmem:[#allocation2 + $0x78] sm:$0xff]
    %v1031 = vpack.c.bf16 %v1020, %v1019
    %v1064 = vunpack.c.l.b16 %v841
    %v1065 = vunpack.c.h.b16 %v841
    %v1066 = vunpack.c.l.b16 %v842
    %v1067 = vunpack.c.h.b16 %v842
    %v1068 = vunpack.c.l.b16 %v843
    %v1069 = vunpack.c.h.b16 %v843
    %v1070 = vunpack.c.l.b16 %v844
    %v1071 = vunpack.c.h.b16 %v844
    %v1072 = vunpack.c.l.b16 %v845
    %v1073 = vunpack.c.h.b16 %v845
    %v1074 = vunpack.c.l.b16 %v846
    %v1075 = vunpack.c.h.b16 %v846
    %v1076 = vunpack.c.l.b16 %v847
    %v1077 = vunpack.c.h.b16 %v847
    %v1078 = vunpack.c.l.b16 %v848
    %v1079 = vunpack.c.h.b16 %v848
    %v1080 = vunpack.c.l.b16 %v849
    %v1081 = vunpack.c.h.b16 %v849
    %v1082 = vunpack.c.l.b16 %v850
    %v1083 = vunpack.c.h.b16 %v850
    %v1084 = vunpack.c.l.b16 %v851
    %v1085 = vunpack.c.h.b16 %v851
    %v1086 = vunpack.c.l.b16 %v852
    %v1087 = vunpack.c.h.b16 %v852
    %v1088 = vunpack.c.l.b16 %v853
    %v1089 = vunpack.c.h.b16 %v853
    %v1090 = vunpack.c.l.b16 %v854
    %v1091 = vunpack.c.h.b16 %v854
    %v1092 = vunpack.c.l.b16 %v855
    %v1093 = vunpack.c.h.b16 %v855
    %v1094 = vunpack.c.l.b16 %v856
    %v1095 = vunpack.c.h.b16 %v856
    %v1096 = vunpack.c.l.b16 %v857
    %v1097 = vunpack.c.h.b16 %v857
    %v1098 = vunpack.c.l.b16 %v858
    %v1099 = vunpack.c.h.b16 %v858
    %v1100 = vunpack.c.l.b16 %v859
    %v1101 = vunpack.c.h.b16 %v859
    %v1102 = vunpack.c.l.b16 %v860
    %v1103 = vunpack.c.h.b16 %v860
    %v1104 = vunpack.c.l.b16 %v861
    %v1105 = vunpack.c.h.b16 %v861
    %v1106 = vunpack.c.l.b16 %v862
    %v1107 = vunpack.c.h.b16 %v862
    %v1108 = vunpack.c.l.b16 %v863
    %v1109 = vunpack.c.h.b16 %v863
    %v1110 = vunpack.c.l.b16 %v864
    %v1111 = vunpack.c.h.b16 %v864
    %v1112 = vunpack.c.l.b16 %v865
    %v1113 = vunpack.c.h.b16 %v865
    %v1114 = vunpack.c.l.b16 %v866
    %v1115 = vunpack.c.h.b16 %v866
    %v1116 = vunpack.c.l.b16 %v867
    %v1117 = vunpack.c.h.b16 %v867
    %v1118 = vunpack.c.l.b16 %v868
    %v1119 = vunpack.c.h.b16 %v868
    %v1120 = vunpack.c.l.b16 %v869
    %v1121 = vunpack.c.h.b16 %v869
    %v1122 = vunpack.c.l.b16 %v870
    %v1123 = vunpack.c.h.b16 %v870
    %v1124 = vunpack.c.l.b16 %v871
    %v1125 = vunpack.c.h.b16 %v871
    %v1126 = vunpack.c.l.b16 %v872
    %v1127 = vunpack.c.h.b16 %v872
    %v1128 = vpack.c.b16 %v1068, %v1064
    %v1129 = vpack.c.b16 %v1069, %v1065
    %v1130 = vpack.c.b16 %v1070, %v1066
    %v1131 = vpack.c.b16 %v1071, %v1067
    %v1132 = vpack.c.b16 %v1076, %v1072
    %v1133 = vpack.c.b16 %v1077, %v1073
    %v1134 = vpack.c.b16 %v1078, %v1074
    %v1135 = vpack.c.b16 %v1079, %v1075
    %v1136 = vpack.c.b16 %v1084, %v1080
    %v1137 = vpack.c.b16 %v1085, %v1081
    %v1138 = vpack.c.b16 %v1086, %v1082
    %v1139 = vpack.c.b16 %v1087, %v1083
    %v1140 = vpack.c.b16 %v1092, %v1088
    %v1141 = vpack.c.b16 %v1093, %v1089
    %v1142 = vpack.c.b16 %v1094, %v1090
    %v1143 = vpack.c.b16 %v1095, %v1091
    %v1144 = vpack.c.b16 %v1100, %v1096
    %v1145 = vpack.c.b16 %v1101, %v1097
    %v1146 = vpack.c.b16 %v1102, %v1098
    %v1147 = vpack.c.b16 %v1103, %v1099
    %v1148 = vpack.c.b16 %v1108, %v1104
    %v1149 = vpack.c.b16 %v1109, %v1105
    %v1150 = vpack.c.b16 %v1110, %v1106
    %v1151 = vpack.c.b16 %v1111, %v1107
    %v1152 = vpack.c.b16 %v1116, %v1112
    %v1153 = vpack.c.b16 %v1117, %v1113
    %v1154 = vpack.c.b16 %v1118, %v1114
    %v1155 = vpack.c.b16 %v1119, %v1115
    %v1156 = vpack.c.b16 %v1124, %v1120
    %v1157 = vpack.c.b16 %v1125, %v1121
    %v1158 = vpack.c.b16 %v1126, %v1122
    %v1159 = vpack.c.b16 %v1127, %v1123
    %1192 = vmatpush.bf16.msra.mxu0 %v1156
    %1193 = vmatpush.bf16.msra.mxu0 %v1152
    %1194 = vmatpush.bf16.msra.mxu0 %v1148
    %1195 = vmatpush.bf16.msra.mxu0 %v1144
    %1196 = vmatpush.bf16.msra.mxu0 %v1140
    %1197 = vmatpush.bf16.msra.mxu0 %v1136
    %1198 = vmatpush.bf16.msra.mxu0 %v1132
    %1199 = vmatpush.bf16.msra.mxu0 %v1128
    %1200 = vmatmul.bf16.gmra.mxu0 %v1031
    %v1201 = vpop.f32.mrf.mxu0
    %v1202 = vadd.f32 0.0, %v1201
    %v1203 = vpop.f32.mrf.mxu0
    %v1204 = vadd.f32 0.0, %v1203
    %1205 = vdwg.mxu0
    %1206 = vmatpush.bf16.msra.mxu0 %v1157
    %1207 = vmatpush.bf16.msra.mxu0 %v1153
    %1208 = vmatpush.bf16.msra.mxu0 %v1149
    %1209 = vmatpush.bf16.msra.mxu0 %v1145
    %1210 = vmatpush.bf16.msra.mxu0 %v1141
    %1211 = vmatpush.bf16.msra.mxu0 %v1137
    %1212 = vmatpush.bf16.msra.mxu0 %v1133
    %1213 = vmatpush.bf16.msra.mxu0 %v1129
    %1214 = vmatmul.bf16.gmra.mxu0 %v1031
    %v1215 = vpop.f32.mrf.mxu0
    %v1216 = vadd.f32 0.0, %v1215
    %v1217 = vpop.f32.mrf.mxu0
    %v1218 = vadd.f32 0.0, %v1217
    %1219 = vdwg.mxu0
    %1220 = vmatpush.bf16.msra.mxu0 %v1158
    %1221 = vmatpush.bf16.msra.mxu0 %v1154
    %1222 = vmatpush.bf16.msra.mxu0 %v1150
    %1223 = vmatpush.bf16.msra.mxu0 %v1146
    %1224 = vmatpush.bf16.msra.mxu0 %v1142
    %1225 = vmatpush.bf16.msra.mxu0 %v1138
    %1226 = vmatpush.bf16.msra.mxu0 %v1134
    %1227 = vmatpush.bf16.msra.mxu0 %v1130
    %1228 = vmatmul.bf16.gmra.mxu0 %v1031
    %v1229 = vpop.f32.mrf.mxu0
    %v1230 = vadd.f32 0.0, %v1229
    %v1231 = vpop.f32.mrf.mxu0
    %v1232 = vadd.f32 0.0, %v1231
    %1233 = vdwg.mxu0
    %1234 = vmatpush.bf16.msra.mxu0 %v1159
    %1235 = vmatpush.bf16.msra.mxu0 %v1155
    %1236 = vmatpush.bf16.msra.mxu0 %v1151
    %1237 = vmatpush.bf16.msra.mxu0 %v1147
    %1238 = vmatpush.bf16.msra.mxu0 %v1143
    %1239 = vmatpush.bf16.msra.mxu0 %v1139
    %1240 = vmatpush.bf16.msra.mxu0 %v1135
    %1241 = vmatpush.bf16.msra.mxu0 %v1131
    %1242 = vmatmul.bf16.gmra.mxu0 %v1031
    %v1243 = vpop.f32.mrf.mxu0
    %v1244 = vadd.f32 0.0, %v1243
    %v1245 = vpop.f32.mrf.mxu0
    %v1246 = vadd.f32 0.0, %v1245
    %1247 = vdwg.mxu0
    %v1248 = vadd.f32 %v1023, %v1202
    %v1249 = vadd.f32 %v1024, %v1216
    %v1250 = vadd.f32 %v1025, %v1230
    %v1251 = vadd.f32 %v1026, %v1244
    %v1252 = vadd.f32 %v1027, %v1204
    %v1253 = vadd.f32 %v1028, %v1218
    %v1254 = vadd.f32 %v1029, %v1232
    %v1255 = vadd.f32 %v1030, %v1246
    %v1256 = vxor.u32 %v1248, 2147483648
    %v1257 = vxor.u32 %v1249, 2147483648
    %v1258 = vxor.u32 %v1250, 2147483648
    %v1259 = vxor.u32 %v1252, 2147483648
    %v1260 = vxor.u32 %v1253, 2147483648
    %v1261 = vxor.u32 %v1254, 2147483648
    %v1262 = vmul.f32 %v1256, 1.442695
    %v1263 = vpow.pop %v1262
    %v1264 = vmul.f32 %v1257, 1.442695
    %v1265 = vpow.pop %v1264
    %v1266 = vmul.f32 %v1258, 1.442695
    %v1267 = vpow.pop %v1266
    %v1268 = vmul.f32 %v1259, 1.442695
    %v1269 = vpow.pop %v1268
    %v1270 = vmul.f32 %v1260, 1.442695
    %v1271 = vpow.pop %v1270
    %v1272 = vmul.f32 %v1261, 1.442695
    %v1273 = vpow.pop %v1272
    %v1274 = vadd.f32 %v1263, 1.0
    %v1275 = vadd.f32 %v1265, 1.0
    %v1276 = vadd.f32 %v1267, 1.0
    %v1277 = vadd.f32 %v1269, 1.0
    %v1278 = vadd.f32 %v1271, 1.0
    %v1279 = vadd.f32 %v1273, 1.0
    %v1280 = vrcp.pop %v1274
    %v1281 = vmul.f32 %v1274, %v1280
    %v1282 = vsub.f32 1.0, %v1281
    %v1283 = vmul.f32 %v1280, %v1282
    %v1284 = vadd.f32 %v1280, %v1283
    %vm1285 = vweird.f32 %v1274
    %vm1286 = vweird.f32 %v1280
    %vm1287 = vmor %vm1285, %vm1286
    %v1288 = vsel %vm1287, %v1280, %v1284
    %v1289 = vand.u32 2147483647, %v1274
    %vm1290 = vcmp.eq.f32.partialorder %v1289, 8.507059e+37
    %v1291 = vand.u32 %v1274, 2147483648
    %v1292 = vor.u32 1.1754944e-38, %v1291
    %v1293 = vsel %vm1290, %v1292, %v1288
    %v1294 = vmul.f32 1.0, %v1293
    %v1295 = vrcp.pop %v1275
    %v1296 = vmul.f32 %v1275, %v1295
    %v1297 = vsub.f32 1.0, %v1296
    %v1298 = vmul.f32 %v1295, %v1297
    %v1299 = vadd.f32 %v1295, %v1298
    %vm1300 = vweird.f32 %v1275
    %vm1301 = vweird.f32 %v1295
    %vm1302 = vmor %vm1300, %vm1301
    %v1303 = vsel %vm1302, %v1295, %v1299
    %v1304 = vand.u32 2147483647, %v1275
    %vm1305 = vcmp.eq.f32.partialorder %v1304, 8.507059e+37
    %v1306 = vand.u32 %v1275, 2147483648
    %v1307 = vor.u32 1.1754944e-38, %v1306
    %v1308 = vsel %vm1305, %v1307, %v1303
    %v1309 = vmul.f32 1.0, %v1308
    %v1310 = vrcp.pop %v1276
    %v1311 = vmul.f32 %v1276, %v1310
    %v1312 = vsub.f32 1.0, %v1311
    %v1313 = vmul.f32 %v1310, %v1312
    %v1314 = vadd.f32 %v1310, %v1313
    %vm1315 = vweird.f32 %v1276
    %vm1316 = vweird.f32 %v1310
    %vm1317 = vmor %vm1315, %vm1316
    %v1318 = vsel %vm1317, %v1310, %v1314
    %v1319 = vand.u32 2147483647, %v1276
    %vm1320 = vcmp.eq.f32.partialorder %v1319, 8.507059e+37
    %v1321 = vand.u32 %v1276, 2147483648
    %v1322 = vor.u32 1.1754944e-38, %v1321
    %v1323 = vsel %vm1320, %v1322, %v1318
    %v1324 = vmul.f32 1.0, %v1323
    %v1325 = vrcp.pop %v1277
    %v1326 = vmul.f32 %v1277, %v1325
    %v1327 = vsub.f32 1.0, %v1326
    %v1328 = vmul.f32 %v1325, %v1327
    %v1329 = vadd.f32 %v1325, %v1328
    %vm1330 = vweird.f32 %v1277
    %vm1331 = vweird.f32 %v1325
    %vm1332 = vmor %vm1330, %vm1331
    %v1333 = vsel %vm1332, %v1325, %v1329
    %v1334 = vand.u32 2147483647, %v1277
    %vm1335 = vcmp.eq.f32.partialorder %v1334, 8.507059e+37
    %v1336 = vand.u32 %v1277, 2147483648
    %v1337 = vor.u32 1.1754944e-38, %v1336
    %v1338 = vsel %vm1335, %v1337, %v1333
    %v1339 = vmul.f32 1.0, %v1338
    %v1340 = vrcp.pop %v1278
    %v1341 = vmul.f32 %v1278, %v1340
    %v1342 = vsub.f32 1.0, %v1341
    %v1343 = vmul.f32 %v1340, %v1342
    %v1344 = vadd.f32 %v1340, %v1343
    %vm1345 = vweird.f32 %v1278
    %vm1346 = vweird.f32 %v1340
    %vm1347 = vmor %vm1345, %vm1346
    %v1348 = vsel %vm1347, %v1340, %v1344
    %v1349 = vand.u32 2147483647, %v1278
    %vm1350 = vcmp.eq.f32.partialorder %v1349, 8.507059e+37
    %v1351 = vand.u32 %v1278, 2147483648
    %v1352 = vor.u32 1.1754944e-38, %v1351
    %v1353 = vsel %vm1350, %v1352, %v1348
    %v1354 = vmul.f32 1.0, %v1353
    %v1355 = vrcp.pop %v1279
    %v1356 = vmul.f32 %v1279, %v1355
    %v1357 = vsub.f32 1.0, %v1356
    %v1358 = vmul.f32 %v1355, %v1357
    %v1359 = vadd.f32 %v1355, %v1358
    %vm1360 = vweird.f32 %v1279
    %vm1361 = vweird.f32 %v1355
    %vm1362 = vmor %vm1360, %vm1361
    %v1363 = vsel %vm1362, %v1355, %v1359
    %v1364 = vand.u32 2147483647, %v1279
    %vm1365 = vcmp.eq.f32.partialorder %v1364, 8.507059e+37
    %v1366 = vand.u32 %v1279, 2147483648
    %v1367 = vor.u32 1.1754944e-38, %v1366
    %v1368 = vsel %vm1365, %v1367, %v1363
    %v1369 = vmul.f32 1.0, %v1368
    %v1370 = vtanh.pop %v1251
    %v1371 = vtanh.pop %v1255
    %v1372 = vmul.f32 %v1309, %v1021
    %v1373 = vmul.f32 %v1354, %v1022
    %v1374 = vmul.f32 %v1294, %v1370
    %v1375 = vmul.f32 %v1339, %v1371
    %v1376 = vadd.f32 %v1372, %v1374
    %v1377 = vadd.f32 %v1373, %v1375
    %v1378 = vtanh.pop %v1376
    %v1379 = vtanh.pop %v1377
    %v1380 = vmul.f32 %v1324, %v1378
    %v1381 = vmul.f32 %v1369, %v1379
    %vm1382 = vcmp.gt.s32.totalorder %v839, 1
    %vm1383 = vcmp.gt.s32.totalorder %v840, 1
    %v1384 = vsel %vm1382, 1, 0
    %v1385 = vsel %vm1383, 1, 0
    %1386 = vset.pattern.permute.xlu0 0
    %1387 = vperm.xlu0 %1386, %v1384
    %v1388 = vpop.permute.xlu0 %1387
    %1389 = vset.pattern.permute.xlu0 0
    %1390 = vperm.xlu0 %1389, %v1385
    %v1391 = vpop.permute.xlu0 %1390
    %vm1392 = vcmp.eq.s32.totalorder %v1388, 1
    %vm1393 = vcmp.eq.s32.totalorder %v1391, 1
    %v1394 = vsel %vm1392, %v1380, %v1019
    %v1395 = vsel %vm1393, %v1381, %v1020
    %v1396 = vsel %vm1392, %v1376, %v1021
    %v1397 = vsel %vm1393, %v1377, %v1022
    %v1398 = vld [vmem:[#allocation2 + $0x80] sm:$0xff]
    %v1399 = vld [vmem:[#allocation2 + $0x88] sm:$0xff]
    %v1400 = vld [vmem:[#allocation2 + $0x90] sm:$0xff]
    %v1401 = vld [vmem:[#allocation2 + $0x98] sm:$0xff]
    %v1402 = vld [vmem:[#allocation2 + $0xa0] sm:$0xff]
    %v1403 = vld [vmem:[#allocation2 + $0xa8] sm:$0xff]
    %v1404 = vld [vmem:[#allocation2 + $0xb0] sm:$0xff]
    %v1405 = vld [vmem:[#allocation2 + $0xb8] sm:$0xff]
    %v1406 = vpack.c.bf16 %v1395, %v1394
    %1407 = vmatpush.bf16.msra.mxu0 %v1156
    %1408 = vmatpush.bf16.msra.mxu0 %v1152
    %1409 = vmatpush.bf16.msra.mxu0 %v1148
    %1410 = vmatpush.bf16.msra.mxu0 %v1144
    %1411 = vmatpush.bf16.msra.mxu0 %v1140
    %1412 = vmatpush.bf16.msra.mxu0 %v1136
    %1413 = vmatpush.bf16.msra.mxu0 %v1132
    %1414 = vmatpush.bf16.msra.mxu0 %v1128
    %1415 = vmatmul.bf16.gmra.mxu0 %v1406
    %v1416 = vpop.f32.mrf.mxu0
    %v1417 = vadd.f32 0.0, %v1416
    %v1418 = vpop.f32.mrf.mxu0
    %v1419 = vadd.f32 0.0, %v1418
    %1420 = vdwg.mxu0
    %1421 = vmatpush.bf16.msra.mxu0 %v1157
    %1422 = vmatpush.bf16.msra.mxu0 %v1153
    %1423 = vmatpush.bf16.msra.mxu0 %v1149
    %1424 = vmatpush.bf16.msra.mxu0 %v1145
    %1425 = vmatpush.bf16.msra.mxu0 %v1141
    %1426 = vmatpush.bf16.msra.mxu0 %v1137
    %1427 = vmatpush.bf16.msra.mxu0 %v1133
    %1428 = vmatpush.bf16.msra.mxu0 %v1129
    %1429 = vmatmul.bf16.gmra.mxu0 %v1406
    %v1430 = vpop.f32.mrf.mxu0
    %v1431 = vadd.f32 0.0, %v1430
    %v1432 = vpop.f32.mrf.mxu0
    %v1433 = vadd.f32 0.0, %v1432
    %1434 = vdwg.mxu0
    %1435 = vmatpush.bf16.msra.mxu0 %v1158
    %1436 = vmatpush.bf16.msra.mxu0 %v1154
    %1437 = vmatpush.bf16.msra.mxu0 %v1150
    %1438 = vmatpush.bf16.msra.mxu0 %v1146
    %1439 = vmatpush.bf16.msra.mxu0 %v1142
    %1440 = vmatpush.bf16.msra.mxu0 %v1138
    %1441 = vmatpush.bf16.msra.mxu0 %v1134
    %1442 = vmatpush.bf16.msra.mxu0 %v1130
    %1443 = vmatmul.bf16.gmra.mxu0 %v1406
    %v1444 = vpop.f32.mrf.mxu0
    %v1445 = vadd.f32 0.0, %v1444
    %v1446 = vpop.f32.mrf.mxu0
    %v1447 = vadd.f32 0.0, %v1446
    %1448 = vdwg.mxu0
    %1449 = vmatpush.bf16.msra.mxu0 %v1159
    %1450 = vmatpush.bf16.msra.mxu0 %v1155
    %1451 = vmatpush.bf16.msra.mxu0 %v1151
    %1452 = vmatpush.bf16.msra.mxu0 %v1147
    %1453 = vmatpush.bf16.msra.mxu0 %v1143
    %1454 = vmatpush.bf16.msra.mxu0 %v1139
    %1455 = vmatpush.bf16.msra.mxu0 %v1135
    %1456 = vmatpush.bf16.msra.mxu0 %v1131
    %1457 = vmatmul.bf16.gmra.mxu0 %v1406
    %v1458 = vpop.f32.mrf.mxu0
    %v1459 = vadd.f32 0.0, %v1458
    %v1460 = vpop.f32.mrf.mxu0
    %v1461 = vadd.f32 0.0, %v1460
    %1462 = vdwg.mxu0
    %v1463 = vadd.f32 %v1398, %v1417
    %v1464 = vadd.f32 %v1399, %v1431
    %v1465 = vadd.f32 %v1400, %v1445
    %v1466 = vadd.f32 %v1401, %v1459
    %v1467 = vadd.f32 %v1402, %v1419
    %v1468 = vadd.f32 %v1403, %v1433
    %v1469 = vadd.f32 %v1404, %v1447
    %v1470 = vadd.f32 %v1405, %v1461
    %v1471 = vxor.u32 %v1463, 2147483648
    %v1472 = vxor.u32 %v1464, 2147483648
    %v1473 = vxor.u32 %v1465, 2147483648
    %v1474 = vxor.u32 %v1467, 2147483648
    %v1475 = vxor.u32 %v1468, 2147483648
    %v1476 = vxor.u32 %v1469, 2147483648
    %v1477 = vmul.f32 %v1471, 1.442695
    %v1478 = vpow.pop %v1477
    %v1479 = vmul.f32 %v1472, 1.442695
    %v1480 = vpow.pop %v1479
    %v1481 = vmul.f32 %v1473, 1.442695
    %v1482 = vpow.pop %v1481
    %v1483 = vmul.f32 %v1474, 1.442695
    %v1484 = vpow.pop %v1483
    %v1485 = vmul.f32 %v1475, 1.442695
    %v1486 = vpow.pop %v1485
    %v1487 = vmul.f32 %v1476, 1.442695
    %v1488 = vpow.pop %v1487
    %v1489 = vadd.f32 %v1478, 1.0
    %v1490 = vadd.f32 %v1480, 1.0
    %v1491 = vadd.f32 %v1482, 1.0
    %v1492 = vadd.f32 %v1484, 1.0
    %v1493 = vadd.f32 %v1486, 1.0
    %v1494 = vadd.f32 %v1488, 1.0
    %v1495 = vrcp.pop %v1489
    %v1496 = vmul.f32 %v1489, %v1495
    %v1497 = vsub.f32 1.0, %v1496
    %v1498 = vmul.f32 %v1495, %v1497
    %v1499 = vadd.f32 %v1495, %v1498
    %vm1500 = vweird.f32 %v1489
    %vm1501 = vweird.f32 %v1495
    %vm1502 = vmor %vm1500, %vm1501
    %v1503 = vsel %vm1502, %v1495, %v1499
    %v1504 = vand.u32 2147483647, %v1489
    %vm1505 = vcmp.eq.f32.partialorder %v1504, 8.507059e+37
    %v1506 = vand.u32 %v1489, 2147483648
    %v1507 = vor.u32 1.1754944e-38, %v1506
    %v1508 = vsel %vm1505, %v1507, %v1503
    %v1509 = vmul.f32 1.0, %v1508
    %v1510 = vrcp.pop %v1490
    %v1511 = vmul.f32 %v1490, %v1510
    %v1512 = vsub.f32 1.0, %v1511
    %v1513 = vmul.f32 %v1510, %v1512
    %v1514 = vadd.f32 %v1510, %v1513
    %vm1515 = vweird.f32 %v1490
    %vm1516 = vweird.f32 %v1510
    %vm1517 = vmor %vm1515, %vm1516
    %v1518 = vsel %vm1517, %v1510, %v1514
    %v1519 = vand.u32 2147483647, %v1490
    %vm1520 = vcmp.eq.f32.partialorder %v1519, 8.507059e+37
    %v1521 = vand.u32 %v1490, 2147483648
    %v1522 = vor.u32 1.1754944e-38, %v1521
    %v1523 = vsel %vm1520, %v1522, %v1518
    %v1524 = vmul.f32 1.0, %v1523
    %v1525 = vrcp.pop %v1491
    %v1526 = vmul.f32 %v1491, %v1525
    %v1527 = vsub.f32 1.0, %v1526
    %v1528 = vmul.f32 %v1525, %v1527
    %v1529 = vadd.f32 %v1525, %v1528
    %vm1530 = vweird.f32 %v1491
    %vm1531 = vweird.f32 %v1525
    %vm1532 = vmor %vm1530, %vm1531
    %v1533 = vsel %vm1532, %v1525, %v1529
    %v1534 = vand.u32 2147483647, %v1491
    %vm1535 = vcmp.eq.f32.partialorder %v1534, 8.507059e+37
    %v1536 = vand.u32 %v1491, 2147483648
    %v1537 = vor.u32 1.1754944e-38, %v1536
    %v1538 = vsel %vm1535, %v1537, %v1533
    %v1539 = vmul.f32 1.0, %v1538
    %v1540 = vrcp.pop %v1492
    %v1541 = vmul.f32 %v1492, %v1540
    %v1542 = vsub.f32 1.0, %v1541
    %v1543 = vmul.f32 %v1540, %v1542
    %v1544 = vadd.f32 %v1540, %v1543
    %vm1545 = vweird.f32 %v1492
    %vm1546 = vweird.f32 %v1540
    %vm1547 = vmor %vm1545, %vm1546
    %v1548 = vsel %vm1547, %v1540, %v1544
    %v1549 = vand.u32 2147483647, %v1492
    %vm1550 = vcmp.eq.f32.partialorder %v1549, 8.507059e+37
    %v1551 = vand.u32 %v1492, 2147483648
    %v1552 = vor.u32 1.1754944e-38, %v1551
    %v1553 = vsel %vm1550, %v1552, %v1548
    %v1554 = vmul.f32 1.0, %v1553
    %v1555 = vrcp.pop %v1493
    %v1556 = vmul.f32 %v1493, %v1555
    %v1557 = vsub.f32 1.0, %v1556
    %v1558 = vmul.f32 %v1555, %v1557
    %v1559 = vadd.f32 %v1555, %v1558
    %vm1560 = vweird.f32 %v1493
    %vm1561 = vweird.f32 %v1555
    %vm1562 = vmor %vm1560, %vm1561
    %v1563 = vsel %vm1562, %v1555, %v1559
    %v1564 = vand.u32 2147483647, %v1493
    %vm1565 = vcmp.eq.f32.partialorder %v1564, 8.507059e+37
    %v1566 = vand.u32 %v1493, 2147483648
    %v1567 = vor.u32 1.1754944e-38, %v1566
    %v1568 = vsel %vm1565, %v1567, %v1563
    %v1569 = vmul.f32 1.0, %v1568
    %v1570 = vrcp.pop %v1494
    %v1571 = vmul.f32 %v1494, %v1570
    %v1572 = vsub.f32 1.0, %v1571
    %v1573 = vmul.f32 %v1570, %v1572
    %v1574 = vadd.f32 %v1570, %v1573
    %vm1575 = vweird.f32 %v1494
    %vm1576 = vweird.f32 %v1570
    %vm1577 = vmor %vm1575, %vm1576
    %v1578 = vsel %vm1577, %v1570, %v1574
    %v1579 = vand.u32 2147483647, %v1494
    %vm1580 = vcmp.eq.f32.partialorder %v1579, 8.507059e+37
    %v1581 = vand.u32 %v1494, 2147483648
    %v1582 = vor.u32 1.1754944e-38, %v1581
    %v1583 = vsel %vm1580, %v1582, %v1578
    %v1584 = vmul.f32 1.0, %v1583
    %v1585 = vtanh.pop %v1466
    %v1586 = vtanh.pop %v1470
    %v1587 = vmul.f32 %v1524, %v1396
    %v1588 = vmul.f32 %v1569, %v1397
    %v1589 = vmul.f32 %v1509, %v1585
    %v1590 = vmul.f32 %v1554, %v1586
    %v1591 = vadd.f32 %v1587, %v1589
    %v1592 = vadd.f32 %v1588, %v1590
    %v1593 = vtanh.pop %v1591
    %v1594 = vtanh.pop %v1592
    %v1595 = vmul.f32 %v1539, %v1593
    %v1596 = vmul.f32 %v1584, %v1594
    %vm1597 = vcmp.gt.s32.totalorder %v839, 2
    %vm1598 = vcmp.gt.s32.totalorder %v840, 2
    %v1599 = vsel %vm1597, 1, 0
    %v1600 = vsel %vm1598, 1, 0
    %1601 = vset.pattern.permute.xlu0 0
    %1602 = vperm.xlu0 %1601, %v1599
    %v1603 = vpop.permute.xlu0 %1602
    %1604 = vset.pattern.permute.xlu0 0
    %1605 = vperm.xlu0 %1604, %v1600
    %v1606 = vpop.permute.xlu0 %1605
    %vm1607 = vcmp.eq.s32.totalorder %v1603, 1
    %vm1608 = vcmp.eq.s32.totalorder %v1606, 1
    %v1609 = vsel %vm1607, %v1595, %v1394
    %v1610 = vsel %vm1608, %v1596, %v1395
    %v1611 = vsel %vm1607, %v1591, %v1396
    %v1612 = vsel %vm1608, %v1592, %v1397
    %v1613 = vld [vmem:[#allocation2 + $0xc0] sm:$0xff]
    %v1614 = vld [vmem:[#allocation2 + $0xc8] sm:$0xff]
    %v1615 = vld [vmem:[#allocation2 + $0xd0] sm:$0xff]
    %v1616 = vld [vmem:[#allocation2 + $0xd8] sm:$0xff]
    %v1617 = vld [vmem:[#allocation2 + $0xe0] sm:$0xff]
    %v1618 = vld [vmem:[#allocation2 + $0xe8] sm:$0xff]
    %v1619 = vld [vmem:[#allocation2 + $0xf0] sm:$0xff]
    %v1620 = vld [vmem:[#allocation2 + $0xf8] sm:$0xff]
    %v1621 = vpack.c.bf16 %v1610, %v1609
    %1622 = vmatpush.bf16.msra.mxu0 %v1156
    %1623 = vmatpush.bf16.msra.mxu0 %v1152
    %1624 = vmatpush.bf16.msra.mxu0 %v1148
    %1625 = vmatpush.bf16.msra.mxu0 %v1144
    %1626 = vmatpush.bf16.msra.mxu0 %v1140
    %1627 = vmatpush.bf16.msra.mxu0 %v1136
    %1628 = vmatpush.bf16.msra.mxu0 %v1132
    %1629 = vmatpush.bf16.msra.mxu0 %v1128
    %1630 = vmatmul.bf16.gmra.mxu0 %v1621
    %v1631 = vpop.f32.mrf.mxu0
    %v1632 = vadd.f32 0.0, %v1631
    %v1633 = vpop.f32.mrf.mxu0
    %v1634 = vadd.f32 0.0, %v1633
    %1635 = vdwg.mxu0
    %1636 = vmatpush.bf16.msra.mxu0 %v1157
    %1637 = vmatpush.bf16.msra.mxu0 %v1153
    %1638 = vmatpush.bf16.msra.mxu0 %v1149
    %1639 = vmatpush.bf16.msra.mxu0 %v1145
    %1640 = vmatpush.bf16.msra.mxu0 %v1141
    %1641 = vmatpush.bf16.msra.mxu0 %v1137
    %1642 = vmatpush.bf16.msra.mxu0 %v1133
    %1643 = vmatpush.bf16.msra.mxu0 %v1129
    %1644 = vmatmul.bf16.gmra.mxu0 %v1621
    %v1645 = vpop.f32.mrf.mxu0
    %v1646 = vadd.f32 0.0, %v1645
    %v1647 = vpop.f32.mrf.mxu0
    %v1648 = vadd.f32 0.0, %v1647
    %1649 = vdwg.mxu0
    %1650 = vmatpush.bf16.msra.mxu0 %v1158
    %1651 = vmatpush.bf16.msra.mxu0 %v1154
    %1652 = vmatpush.bf16.msra.mxu0 %v1150
    %1653 = vmatpush.bf16.msra.mxu0 %v1146
    %1654 = vmatpush.bf16.msra.mxu0 %v1142
    %1655 = vmatpush.bf16.msra.mxu0 %v1138
    %1656 = vmatpush.bf16.msra.mxu0 %v1134
    %1657 = vmatpush.bf16.msra.mxu0 %v1130
    %1658 = vmatmul.bf16.gmra.mxu0 %v1621
    %v1659 = vpop.f32.mrf.mxu0
    %v1660 = vadd.f32 0.0, %v1659
    %v1661 = vpop.f32.mrf.mxu0
    %v1662 = vadd.f32 0.0, %v1661
    %1663 = vdwg.mxu0
    %1664 = vmatpush.bf16.msra.mxu0 %v1159
    %1665 = vmatpush.bf16.msra.mxu0 %v1155
    %1666 = vmatpush.bf16.msra.mxu0 %v1151
    %1667 = vmatpush.bf16.msra.mxu0 %v1147
    %1668 = vmatpush.bf16.msra.mxu0 %v1143
    %1669 = vmatpush.bf16.msra.mxu0 %v1139
    %1670 = vmatpush.bf16.msra.mxu0 %v1135
    %1671 = vmatpush.bf16.msra.mxu0 %v1131
    %1672 = vmatmul.bf16.gmra.mxu0 %v1621
    %v1673 = vpop.f32.mrf.mxu0
    %v1674 = vadd.f32 0.0, %v1673
    %v1675 = vpop.f32.mrf.mxu0
    %v1676 = vadd.f32 0.0, %v1675
    %1677 = vdwg.mxu0
    %v1678 = vadd.f32 %v1613, %v1632
    %v1679 = vadd.f32 %v1614, %v1646
    %v1680 = vadd.f32 %v1615, %v1660
    %v1681 = vadd.f32 %v1616, %v1674
    %v1682 = vadd.f32 %v1617, %v1634
    %v1683 = vadd.f32 %v1618, %v1648
    %v1684 = vadd.f32 %v1619, %v1662
    %v1685 = vadd.f32 %v1620, %v1676
    %v1686 = vxor.u32 %v1678, 2147483648
    %v1687 = vxor.u32 %v1679, 2147483648
    %v1688 = vxor.u32 %v1680, 2147483648
    %v1689 = vxor.u32 %v1682, 2147483648
    %v1690 = vxor.u32 %v1683, 2147483648
    %v1691 = vxor.u32 %v1684, 2147483648
    %v1692 = vmul.f32 %v1686, 1.442695
    %v1693 = vpow.pop %v1692
    %v1694 = vmul.f32 %v1687, 1.442695
    %v1695 = vpow.pop %v1694
    %v1696 = vmul.f32 %v1688, 1.442695
    %v1697 = vpow.pop %v1696
    %v1698 = vmul.f32 %v1689, 1.442695
    %v1699 = vpow.pop %v1698
    %v1700 = vmul.f32 %v1690, 1.442695
    %v1701 = vpow.pop %v1700
    %v1702 = vmul.f32 %v1691, 1.442695
    %v1703 = vpow.pop %v1702
    %v1704 = vadd.f32 %v1693, 1.0
    %v1705 = vadd.f32 %v1695, 1.0
    %v1706 = vadd.f32 %v1697, 1.0
    %v1707 = vadd.f32 %v1699, 1.0
    %v1708 = vadd.f32 %v1701, 1.0
    %v1709 = vadd.f32 %v1703, 1.0
    %v1710 = vrcp.pop %v1704
    %v1711 = vmul.f32 %v1704, %v1710
    %v1712 = vsub.f32 1.0, %v1711
    %v1713 = vmul.f32 %v1710, %v1712
    %v1714 = vadd.f32 %v1710, %v1713
    %vm1715 = vweird.f32 %v1704
    %vm1716 = vweird.f32 %v1710
    %vm1717 = vmor %vm1715, %vm1716
    %v1718 = vsel %vm1717, %v1710, %v1714
    %v1719 = vand.u32 2147483647, %v1704
    %vm1720 = vcmp.eq.f32.partialorder %v1719, 8.507059e+37
    %v1721 = vand.u32 %v1704, 2147483648
    %v1722 = vor.u32 1.1754944e-38, %v1721
    %v1723 = vsel %vm1720, %v1722, %v1718
    %v1724 = vmul.f32 1.0, %v1723
    %v1725 = vrcp.pop %v1705
    %v1726 = vmul.f32 %v1705, %v1725
    %v1727 = vsub.f32 1.0, %v1726
    %v1728 = vmul.f32 %v1725, %v1727
    %v1729 = vadd.f32 %v1725, %v1728
    %vm1730 = vweird.f32 %v1705
    %vm1731 = vweird.f32 %v1725
    %vm1732 = vmor %vm1730, %vm1731
    %v1733 = vsel %vm1732, %v1725, %v1729
    %v1734 = vand.u32 2147483647, %v1705
    %vm1735 = vcmp.eq.f32.partialorder %v1734, 8.507059e+37
    %v1736 = vand.u32 %v1705, 2147483648
    %v1737 = vor.u32 1.1754944e-38, %v1736
    %v1738 = vsel %vm1735, %v1737, %v1733
    %v1739 = vmul.f32 1.0, %v1738
    %v1740 = vrcp.pop %v1706
    %v1741 = vmul.f32 %v1706, %v1740
    %v1742 = vsub.f32 1.0, %v1741
    %v1743 = vmul.f32 %v1740, %v1742
    %v1744 = vadd.f32 %v1740, %v1743
    %vm1745 = vweird.f32 %v1706
    %vm1746 = vweird.f32 %v1740
    %vm1747 = vmor %vm1745, %vm1746
    %v1748 = vsel %vm1747, %v1740, %v1744
    %v1749 = vand.u32 2147483647, %v1706
    %vm1750 = vcmp.eq.f32.partialorder %v1749, 8.507059e+37
    %v1751 = vand.u32 %v1706, 2147483648
    %v1752 = vor.u32 1.1754944e-38, %v1751
    %v1753 = vsel %vm1750, %v1752, %v1748
    %v1754 = vmul.f32 1.0, %v1753
    %v1755 = vrcp.pop %v1707
    %v1756 = vmul.f32 %v1707, %v1755
    %v1757 = vsub.f32 1.0, %v1756
    %v1758 = vmul.f32 %v1755, %v1757
    %v1759 = vadd.f32 %v1755, %v1758
    %vm1760 = vweird.f32 %v1707
    %vm1761 = vweird.f32 %v1755
    %vm1762 = vmor %vm1760, %vm1761
    %v1763 = vsel %vm1762, %v1755, %v1759
    %v1764 = vand.u32 2147483647, %v1707
    %vm1765 = vcmp.eq.f32.partialorder %v1764, 8.507059e+37
    %v1766 = vand.u32 %v1707, 2147483648
    %v1767 = vor.u32 1.1754944e-38, %v1766
    %v1768 = vsel %vm1765, %v1767, %v1763
    %v1769 = vmul.f32 1.0, %v1768
    %v1770 = vrcp.pop %v1708
    %v1771 = vmul.f32 %v1708, %v1770
    %v1772 = vsub.f32 1.0, %v1771
    %v1773 = vmul.f32 %v1770, %v1772
    %v1774 = vadd.f32 %v1770, %v1773
    %vm1775 = vweird.f32 %v1708
    %vm1776 = vweird.f32 %v1770
    %vm1777 = vmor %vm1775, %vm1776
    %v1778 = vsel %vm1777, %v1770, %v1774
    %v1779 = vand.u32 2147483647, %v1708
    %vm1780 = vcmp.eq.f32.partialorder %v1779, 8.507059e+37
    %v1781 = vand.u32 %v1708, 2147483648
    %v1782 = vor.u32 1.1754944e-38, %v1781
    %v1783 = vsel %vm1780, %v1782, %v1778
    %v1784 = vmul.f32 1.0, %v1783
    %v1785 = vrcp.pop %v1709
    %v1786 = vmul.f32 %v1709, %v1785
    %v1787 = vsub.f32 1.0, %v1786
    %v1788 = vmul.f32 %v1785, %v1787
    %v1789 = vadd.f32 %v1785, %v1788
    %vm1790 = vweird.f32 %v1709
    %vm1791 = vweird.f32 %v1785
    %vm1792 = vmor %vm1790, %vm1791
    %v1793 = vsel %vm1792, %v1785, %v1789
    %v1794 = vand.u32 2147483647, %v1709
    %vm1795 = vcmp.eq.f32.partialorder %v1794, 8.507059e+37
    %v1796 = vand.u32 %v1709, 2147483648
    %v1797 = vor.u32 1.1754944e-38, %v1796
    %v1798 = vsel %vm1795, %v1797, %v1793
    %v1799 = vmul.f32 1.0, %v1798
    %v1800 = vtanh.pop %v1681
    %v1801 = vtanh.pop %v1685
    %v1802 = vmul.f32 %v1739, %v1611
    %v1803 = vmul.f32 %v1784, %v1612
    %v1804 = vmul.f32 %v1724, %v1800
    %v1805 = vmul.f32 %v1769, %v1801
    %v1806 = vadd.f32 %v1802, %v1804
    %v1807 = vadd.f32 %v1803, %v1805
    %v1808 = vtanh.pop %v1806
    %v1809 = vtanh.pop %v1807
    %v1810 = vmul.f32 %v1754, %v1808
    %v1811 = vmul.f32 %v1799, %v1809
    %vm1812 = vcmp.gt.s32.totalorder %v839, 3
    %vm1813 = vcmp.gt.s32.totalorder %v840, 3
    %v1814 = vsel %vm1812, 1, 0
    %v1815 = vsel %vm1813, 1, 0
    %1816 = vset.pattern.permute.xlu0 0
    %1817 = vperm.xlu0 %1816, %v1814
    %v1818 = vpop.permute.xlu0 %1817
    %1819 = vset.pattern.permute.xlu0 0
    %1820 = vperm.xlu0 %1819, %v1815
    %v1821 = vpop.permute.xlu0 %1820
    %vm1822 = vcmp.eq.s32.totalorder %v1818, 1
    %vm1823 = vcmp.eq.s32.totalorder %v1821, 1
    %v1824 = vsel %vm1822, %v1810, %v1609
    %v1825 = vsel %vm1823, %v1811, %v1610
    %v1826 = vsel %vm1822, %v1806, %v1611
    %v1827 = vsel %vm1823, %v1807, %v1612
    %v1828 = vld [vmem:[#allocation2 + $0x100] sm:$0xff]
    %v1829 = vld [vmem:[#allocation2 + $0x108] sm:$0xff]
    %v1830 = vld [vmem:[#allocation2 + $0x110] sm:$0xff]
    %v1831 = vld [vmem:[#allocation2 + $0x118] sm:$0xff]
    %v1832 = vld [vmem:[#allocation2 + $0x120] sm:$0xff]
    %v1833 = vld [vmem:[#allocation2 + $0x128] sm:$0xff]
    %v1834 = vld [vmem:[#allocation2 + $0x130] sm:$0xff]
    %v1835 = vld [vmem:[#allocation2 + $0x138] sm:$0xff]
    %v1836 = vpack.c.bf16 %v1825, %v1824
    %1837 = vmatpush.bf16.msra.mxu0 %v1156
    %1838 = vmatpush.bf16.msra.mxu0 %v1152
    %1839 = vmatpush.bf16.msra.mxu0 %v1148
    %1840 = vmatpush.bf16.msra.mxu0 %v1144
    %1841 = vmatpush.bf16.msra.mxu0 %v1140
    %1842 = vmatpush.bf16.msra.mxu0 %v1136
    %1843 = vmatpush.bf16.msra.mxu0 %v1132
    %1844 = vmatpush.bf16.msra.mxu0 %v1128
    %1845 = vmatmul.bf16.gmra.mxu0 %v1836
    %v1846 = vpop.f32.mrf.mxu0
    %v1847 = vadd.f32 0.0, %v1846
    %v1848 = vpop.f32.mrf.mxu0
    %v1849 = vadd.f32 0.0, %v1848
    %1850 = vdwg.mxu0
    %1851 = vmatpush.bf16.msra.mxu0 %v1157
    %1852 = vmatpush.bf16.msra.mxu0 %v1153
    %1853 = vmatpush.bf16.msra.mxu0 %v1149
    %1854 = vmatpush.bf16.msra.mxu0 %v1145
    %1855 = vmatpush.bf16.msra.mxu0 %v1141
    %1856 = vmatpush.bf16.msra.mxu0 %v1137
    %1857 = vmatpush.bf16.msra.mxu0 %v1133
    %1858 = vmatpush.bf16.msra.mxu0 %v1129
    %1859 = vmatmul.bf16.gmra.mxu0 %v1836
    %v1860 = vpop.f32.mrf.mxu0
    %v1861 = vadd.f32 0.0, %v1860
    %v1862 = vpop.f32.mrf.mxu0
    %v1863 = vadd.f32 0.0, %v1862
    %1864 = vdwg.mxu0
    %1865 = vmatpush.bf16.msra.mxu0 %v1158
    %1866 = vmatpush.bf16.msra.mxu0 %v1154
    %1867 = vmatpush.bf16.msra.mxu0 %v1150
    %1868 = vmatpush.bf16.msra.mxu0 %v1146
    %1869 = vmatpush.bf16.msra.mxu0 %v1142
    %1870 = vmatpush.bf16.msra.mxu0 %v1138
    %1871 = vmatpush.bf16.msra.mxu0 %v1134
    %1872 = vmatpush.bf16.msra.mxu0 %v1130
    %1873 = vmatmul.bf16.gmra.mxu0 %v1836
    %v1874 = vpop.f32.mrf.mxu0
    %v1875 = vadd.f32 0.0, %v1874
    %v1876 = vpop.f32.mrf.mxu0
    %v1877 = vadd.f32 0.0, %v1876
    %1878 = vdwg.mxu0
    %1879 = vmatpush.bf16.msra.mxu0 %v1159
    %1880 = vmatpush.bf16.msra.mxu0 %v1155
    %1881 = vmatpush.bf16.msra.mxu0 %v1151
    %1882 = vmatpush.bf16.msra.mxu0 %v1147
    %1883 = vmatpush.bf16.msra.mxu0 %v1143
    %1884 = vmatpush.bf16.msra.mxu0 %v1139
    %1885 = vmatpush.bf16.msra.mxu0 %v1135
    %1886 = vmatpush.bf16.msra.mxu0 %v1131
    %1887 = vmatmul.bf16.gmra.mxu0 %v1836
    %v1888 = vpop.f32.mrf.mxu0
    %v1889 = vadd.f32 0.0, %v1888
    %v1890 = vpop.f32.mrf.mxu0
    %v1891 = vadd.f32 0.0, %v1890
    %1892 = vdwg.mxu0
    %v1893 = vadd.f32 %v1828, %v1847
    %v1894 = vadd.f32 %v1829, %v1861
    %v1895 = vadd.f32 %v1830, %v1875
    %v1896 = vadd.f32 %v1831, %v1889
    %v1897 = vadd.f32 %v1832, %v1849
    %v1898 = vadd.f32 %v1833, %v1863
    %v1899 = vadd.f32 %v1834, %v1877
    %v1900 = vadd.f32 %v1835, %v1891
    %v1901 = vxor.u32 %v1893, 2147483648
    %v1902 = vxor.u32 %v1894, 2147483648
    %v1903 = vxor.u32 %v1895, 2147483648
    %v1904 = vxor.u32 %v1897, 2147483648
    %v1905 = vxor.u32 %v1898, 2147483648
    %v1906 = vxor.u32 %v1899, 2147483648
    %v1907 = vmul.f32 %v1901, 1.442695
    %v1908 = vpow.pop %v1907
    %v1909 = vmul.f32 %v1902, 1.442695
    %v1910 = vpow.pop %v1909
    %v1911 = vmul.f32 %v1903, 1.442695
    %v1912 = vpow.pop %v1911
    %v1913 = vmul.f32 %v1904, 1.442695
    %v1914 = vpow.pop %v1913
    %v1915 = vmul.f32 %v1905, 1.442695
    %v1916 = vpow.pop %v1915
    %v1917 = vmul.f32 %v1906, 1.442695
    %v1918 = vpow.pop %v1917
    %v1919 = vadd.f32 %v1908, 1.0
    %v1920 = vadd.f32 %v1910, 1.0
    %v1921 = vadd.f32 %v1912, 1.0
    %v1922 = vadd.f32 %v1914, 1.0
    %v1923 = vadd.f32 %v1916, 1.0
    %v1924 = vadd.f32 %v1918, 1.0
    %v1925 = vrcp.pop %v1919
    %v1926 = vmul.f32 %v1919, %v1925
    %v1927 = vsub.f32 1.0, %v1926
    %v1928 = vmul.f32 %v1925, %v1927
    %v1929 = vadd.f32 %v1925, %v1928
    %vm1930 = vweird.f32 %v1919
    %vm1931 = vweird.f32 %v1925
    %vm1932 = vmor %vm1930, %vm1931
    %v1933 = vsel %vm1932, %v1925, %v1929
    %v1934 = vand.u32 2147483647, %v1919
    %vm1935 = vcmp.eq.f32.partialorder %v1934, 8.507059e+37
    %v1936 = vand.u32 %v1919, 2147483648
    %v1937 = vor.u32 1.1754944e-38, %v1936
    %v1938 = vsel %vm1935, %v1937, %v1933
    %v1939 = vmul.f32 1.0, %v1938
    %v1940 = vrcp.pop %v1920
    %v1941 = vmul.f32 %v1920, %v1940
    %v1942 = vsub.f32 1.0, %v1941
    %v1943 = vmul.f32 %v1940, %v1942
    %v1944 = vadd.f32 %v1940, %v1943
    %vm1945 = vweird.f32 %v1920
    %vm1946 = vweird.f32 %v1940
    %vm1947 = vmor %vm1945, %vm1946
    %v1948 = vsel %vm1947, %v1940, %v1944
    %v1949 = vand.u32 2147483647, %v1920
    %vm1950 = vcmp.eq.f32.partialorder %v1949, 8.507059e+37
    %v1951 = vand.u32 %v1920, 2147483648
    %v1952 = vor.u32 1.1754944e-38, %v1951
    %v1953 = vsel %vm1950, %v1952, %v1948
    %v1954 = vmul.f32 1.0, %v1953
    %v1955 = vrcp.pop %v1921
    %v1956 = vmul.f32 %v1921, %v1955
    %v1957 = vsub.f32 1.0, %v1956
    %v1958 = vmul.f32 %v1955, %v1957
    %v1959 = vadd.f32 %v1955, %v1958
    %vm1960 = vweird.f32 %v1921
    %vm1961 = vweird.f32 %v1955
    %vm1962 = vmor %vm1960, %vm1961
    %v1963 = vsel %vm1962, %v1955, %v1959
    %v1964 = vand.u32 2147483647, %v1921
    %vm1965 = vcmp.eq.f32.partialorder %v1964, 8.507059e+37
    %v1966 = vand.u32 %v1921, 2147483648
    %v1967 = vor.u32 1.1754944e-38, %v1966
    %v1968 = vsel %vm1965, %v1967, %v1963
    %v1969 = vmul.f32 1.0, %v1968
    %v1970 = vrcp.pop %v1922
    %v1971 = vmul.f32 %v1922, %v1970
    %v1972 = vsub.f32 1.0, %v1971
    %v1973 = vmul.f32 %v1970, %v1972
    %v1974 = vadd.f32 %v1970, %v1973
    %vm1975 = vweird.f32 %v1922
    %vm1976 = vweird.f32 %v1970
    %vm1977 = vmor %vm1975, %vm1976
    %v1978 = vsel %vm1977, %v1970, %v1974
    %v1979 = vand.u32 2147483647, %v1922
    %vm1980 = vcmp.eq.f32.partialorder %v1979, 8.507059e+37
    %v1981 = vand.u32 %v1922, 2147483648
    %v1982 = vor.u32 1.1754944e-38, %v1981
    %v1983 = vsel %vm1980, %v1982, %v1978
    %v1984 = vmul.f32 1.0, %v1983
    %v1985 = vrcp.pop %v1923
    %v1986 = vmul.f32 %v1923, %v1985
    %v1987 = vsub.f32 1.0, %v1986
    %v1988 = vmul.f32 %v1985, %v1987
    %v1989 = vadd.f32 %v1985, %v1988
    %vm1990 = vweird.f32 %v1923
    %vm1991 = vweird.f32 %v1985
    %vm1992 = vmor %vm1990, %vm1991
    %v1993 = vsel %vm1992, %v1985, %v1989
    %v1994 = vand.u32 2147483647, %v1923
    %vm1995 = vcmp.eq.f32.partialorder %v1994, 8.507059e+37
    %v1996 = vand.u32 %v1923, 2147483648
    %v1997 = vor.u32 1.1754944e-38, %v1996
    %v1998 = vsel %vm1995, %v1997, %v1993
    %v1999 = vmul.f32 1.0, %v1998
    %v2000 = vrcp.pop %v1924
    %v2001 = vmul.f32 %v1924, %v2000
    %v2002 = vsub.f32 1.0, %v2001
    %v2003 = vmul.f32 %v2000, %v2002
    %v2004 = vadd.f32 %v2000, %v2003
    %vm2005 = vweird.f32 %v1924
    %vm2006 = vweird.f32 %v2000
    %vm2007 = vmor %vm2005, %vm2006
    %v2008 = vsel %vm2007, %v2000, %v2004
    %v2009 = vand.u32 2147483647, %v1924
    %vm2010 = vcmp.eq.f32.partialorder %v2009, 8.507059e+37
    %v2011 = vand.u32 %v1924, 2147483648
    %v2012 = vor.u32 1.1754944e-38, %v2011
    %v2013 = vsel %vm2010, %v2012, %v2008
    %v2014 = vmul.f32 1.0, %v2013
    %v2015 = vtanh.pop %v1896
    %v2016 = vtanh.pop %v1900
    %v2017 = vmul.f32 %v1954, %v1826
    %v2018 = vmul.f32 %v1999, %v1827
    %v2019 = vmul.f32 %v1939, %v2015
    %v2020 = vmul.f32 %v1984, %v2016
    %v2021 = vadd.f32 %v2017, %v2019
    %v2022 = vadd.f32 %v2018, %v2020
    %v2023 = vtanh.pop %v2021
    %v2024 = vtanh.pop %v2022
    %v2025 = vmul.f32 %v1969, %v2023
    %v2026 = vmul.f32 %v2014, %v2024
    %vm2027 = vcmp.gt.s32.totalorder %v839, 4
    %vm2028 = vcmp.gt.s32.totalorder %v840, 4
    %v2029 = vsel %vm2027, 1, 0
    %v2030 = vsel %vm2028, 1, 0
    %2031 = vset.pattern.permute.xlu0 0
    %2032 = vperm.xlu0 %2031, %v2029
    %v2033 = vpop.permute.xlu0 %2032
    %2034 = vset.pattern.permute.xlu0 0
    %2035 = vperm.xlu0 %2034, %v2030
    %v2036 = vpop.permute.xlu0 %2035
    %vm2037 = vcmp.eq.s32.totalorder %v2033, 1
    %vm2038 = vcmp.eq.s32.totalorder %v2036, 1
    %v2039 = vsel %vm2037, %v2025, %v1824
    %v2040 = vsel %vm2038, %v2026, %v1825
    %v2041 = vsel %vm2037, %v2021, %v1826
    %v2042 = vsel %vm2038, %v2022, %v1827
    %v2043 = vld [vmem:[#allocation2 + $0x140] sm:$0xff]
    %v2044 = vld [vmem:[#allocation2 + $0x148] sm:$0xff]
    %v2045 = vld [vmem:[#allocation2 + $0x150] sm:$0xff]
    %v2046 = vld [vmem:[#allocation2 + $0x158] sm:$0xff]
    %v2047 = vld [vmem:[#allocation2 + $0x160] sm:$0xff]
    %v2048 = vld [vmem:[#allocation2 + $0x168] sm:$0xff]
    %v2049 = vld [vmem:[#allocation2 + $0x170] sm:$0xff]
    %v2050 = vld [vmem:[#allocation2 + $0x178] sm:$0xff]
    %v2051 = vpack.c.bf16 %v2040, %v2039
    %2052 = vmatpush.bf16.msra.mxu0 %v1156
    %2053 = vmatpush.bf16.msra.mxu0 %v1152
    %2054 = vmatpush.bf16.msra.mxu0 %v1148
    %2055 = vmatpush.bf16.msra.mxu0 %v1144
    %2056 = vmatpush.bf16.msra.mxu0 %v1140
    %2057 = vmatpush.bf16.msra.mxu0 %v1136
    %2058 = vmatpush.bf16.msra.mxu0 %v1132
    %2059 = vmatpush.bf16.msra.mxu0 %v1128
    %2060 = vmatmul.bf16.gmra.mxu0 %v2051
    %v2061 = vpop.f32.mrf.mxu0
    %v2062 = vadd.f32 0.0, %v2061
    %v2063 = vpop.f32.mrf.mxu0
    %v2064 = vadd.f32 0.0, %v2063
    %2065 = vdwg.mxu0
    %2066 = vmatpush.bf16.msra.mxu0 %v1157
    %2067 = vmatpush.bf16.msra.mxu0 %v1153
    %2068 = vmatpush.bf16.msra.mxu0 %v1149
    %2069 = vmatpush.bf16.msra.mxu0 %v1145
    %2070 = vmatpush.bf16.msra.mxu0 %v1141
    %2071 = vmatpush.bf16.msra.mxu0 %v1137
    %2072 = vmatpush.bf16.msra.mxu0 %v1133
    %2073 = vmatpush.bf16.msra.mxu0 %v1129
    %2074 = vmatmul.bf16.gmra.mxu0 %v2051
    %v2075 = vpop.f32.mrf.mxu0
    %v2076 = vadd.f32 0.0, %v2075
    %v2077 = vpop.f32.mrf.mxu0
    %v2078 = vadd.f32 0.0, %v2077
    %2079 = vdwg.mxu0
    %2080 = vmatpush.bf16.msra.mxu0 %v1158
    %2081 = vmatpush.bf16.msra.mxu0 %v1154
    %2082 = vmatpush.bf16.msra.mxu0 %v1150
    %2083 = vmatpush.bf16.msra.mxu0 %v1146
    %2084 = vmatpush.bf16.msra.mxu0 %v1142
    %2085 = vmatpush.bf16.msra.mxu0 %v1138
    %2086 = vmatpush.bf16.msra.mxu0 %v1134
    %2087 = vmatpush.bf16.msra.mxu0 %v1130
    %2088 = vmatmul.bf16.gmra.mxu0 %v2051
    %v2089 = vpop.f32.mrf.mxu0
    %v2090 = vadd.f32 0.0, %v2089
    %v2091 = vpop.f32.mrf.mxu0
    %v2092 = vadd.f32 0.0, %v2091
    %2093 = vdwg.mxu0
    %2094 = vmatpush.bf16.msra.mxu0 %v1159
    %2095 = vmatpush.bf16.msra.mxu0 %v1155
    %2096 = vmatpush.bf16.msra.mxu0 %v1151
    %2097 = vmatpush.bf16.msra.mxu0 %v1147
    %2098 = vmatpush.bf16.msra.mxu0 %v1143
    %2099 = vmatpush.bf16.msra.mxu0 %v1139
    %2100 = vmatpush.bf16.msra.mxu0 %v1135
    %2101 = vmatpush.bf16.msra.mxu0 %v1131
    %2102 = vmatmul.bf16.gmra.mxu0 %v2051
    %v2103 = vpop.f32.mrf.mxu0
    %v2104 = vadd.f32 0.0, %v2103
    %v2105 = vpop.f32.mrf.mxu0
    %v2106 = vadd.f32 0.0, %v2105
    %2107 = vdwg.mxu0
    %v2108 = vadd.f32 %v2043, %v2062
    %v2109 = vadd.f32 %v2044, %v2076
    %v2110 = vadd.f32 %v2045, %v2090
    %v2111 = vadd.f32 %v2046, %v2104
    %v2112 = vadd.f32 %v2047, %v2064
    %v2113 = vadd.f32 %v2048, %v2078
    %v2114 = vadd.f32 %v2049, %v2092
    %v2115 = vadd.f32 %v2050, %v2106
    %v2116 = vxor.u32 %v2108, 2147483648
    %v2117 = vxor.u32 %v2109, 2147483648
    %v2118 = vxor.u32 %v2110, 2147483648
    %v2119 = vxor.u32 %v2112, 2147483648
    %v2120 = vxor.u32 %v2113, 2147483648
    %v2121 = vxor.u32 %v2114, 2147483648
    %v2122 = vmul.f32 %v2116, 1.442695
    %v2123 = vpow.pop %v2122
    %v2124 = vmul.f32 %v2117, 1.442695
    %v2125 = vpow.pop %v2124
    %v2126 = vmul.f32 %v2118, 1.442695
    %v2127 = vpow.pop %v2126
    %v2128 = vmul.f32 %v2119, 1.442695
    %v2129 = vpow.pop %v2128
    %v2130 = vmul.f32 %v2120, 1.442695
    %v2131 = vpow.pop %v2130
    %v2132 = vmul.f32 %v2121, 1.442695
    %v2133 = vpow.pop %v2132
    %v2134 = vadd.f32 %v2123, 1.0
    %v2135 = vadd.f32 %v2125, 1.0
    %v2136 = vadd.f32 %v2127, 1.0
    %v2137 = vadd.f32 %v2129, 1.0
    %v2138 = vadd.f32 %v2131, 1.0
    %v2139 = vadd.f32 %v2133, 1.0
    %v2140 = vrcp.pop %v2134
    %v2141 = vmul.f32 %v2134, %v2140
    %v2142 = vsub.f32 1.0, %v2141
    %v2143 = vmul.f32 %v2140, %v2142
    %v2144 = vadd.f32 %v2140, %v2143
    %vm2145 = vweird.f32 %v2134
    %vm2146 = vweird.f32 %v2140
    %vm2147 = vmor %vm2145, %vm2146
    %v2148 = vsel %vm2147, %v2140, %v2144
    %v2149 = vand.u32 2147483647, %v2134
    %vm2150 = vcmp.eq.f32.partialorder %v2149, 8.507059e+37
    %v2151 = vand.u32 %v2134, 2147483648
    %v2152 = vor.u32 1.1754944e-38, %v2151
    %v2153 = vsel %vm2150, %v2152, %v2148
    %v2154 = vmul.f32 1.0, %v2153
    %v2155 = vrcp.pop %v2135
    %v2156 = vmul.f32 %v2135, %v2155
    %v2157 = vsub.f32 1.0, %v2156
    %v2158 = vmul.f32 %v2155, %v2157
    %v2159 = vadd.f32 %v2155, %v2158
    %vm2160 = vweird.f32 %v2135
    %vm2161 = vweird.f32 %v2155
    %vm2162 = vmor %vm2160, %vm2161
    %v2163 = vsel %vm2162, %v2155, %v2159
    %v2164 = vand.u32 2147483647, %v2135
    %vm2165 = vcmp.eq.f32.partialorder %v2164, 8.507059e+37
    %v2166 = vand.u32 %v2135, 2147483648
    %v2167 = vor.u32 1.1754944e-38, %v2166
    %v2168 = vsel %vm2165, %v2167, %v2163
    %v2169 = vmul.f32 1.0, %v2168
    %v2170 = vrcp.pop %v2136
    %v2171 = vmul.f32 %v2136, %v2170
    %v2172 = vsub.f32 1.0, %v2171
    %v2173 = vmul.f32 %v2170, %v2172
    %v2174 = vadd.f32 %v2170, %v2173
    %vm2175 = vweird.f32 %v2136
    %vm2176 = vweird.f32 %v2170
    %vm2177 = vmor %vm2175, %vm2176
    %v2178 = vsel %vm2177, %v2170, %v2174
    %v2179 = vand.u32 2147483647, %v2136
    %vm2180 = vcmp.eq.f32.partialorder %v2179, 8.507059e+37
    %v2181 = vand.u32 %v2136, 2147483648
    %v2182 = vor.u32 1.1754944e-38, %v2181
    %v2183 = vsel %vm2180, %v2182, %v2178
    %v2184 = vmul.f32 1.0, %v2183
    %v2185 = vrcp.pop %v2137
    %v2186 = vmul.f32 %v2137, %v2185
    %v2187 = vsub.f32 1.0, %v2186
    %v2188 = vmul.f32 %v2185, %v2187
    %v2189 = vadd.f32 %v2185, %v2188
    %vm2190 = vweird.f32 %v2137
    %vm2191 = vweird.f32 %v2185
    %vm2192 = vmor %vm2190, %vm2191
    %v2193 = vsel %vm2192, %v2185, %v2189
    %v2194 = vand.u32 2147483647, %v2137
    %vm2195 = vcmp.eq.f32.partialorder %v2194, 8.507059e+37
    %v2196 = vand.u32 %v2137, 2147483648
    %v2197 = vor.u32 1.1754944e-38, %v2196
    %v2198 = vsel %vm2195, %v2197, %v2193
    %v2199 = vmul.f32 1.0, %v2198
    %v2200 = vrcp.pop %v2138
    %v2201 = vmul.f32 %v2138, %v2200
    %v2202 = vsub.f32 1.0, %v2201
    %v2203 = vmul.f32 %v2200, %v2202
    %v2204 = vadd.f32 %v2200, %v2203
    %vm2205 = vweird.f32 %v2138
    %vm2206 = vweird.f32 %v2200
    %vm2207 = vmor %vm2205, %vm2206
    %v2208 = vsel %vm2207, %v2200, %v2204
    %v2209 = vand.u32 2147483647, %v2138
    %vm2210 = vcmp.eq.f32.partialorder %v2209, 8.507059e+37
    %v2211 = vand.u32 %v2138, 2147483648
    %v2212 = vor.u32 1.1754944e-38, %v2211
    %v2213 = vsel %vm2210, %v2212, %v2208
    %v2214 = vmul.f32 1.0, %v2213
    %v2215 = vrcp.pop %v2139
    %v2216 = vmul.f32 %v2139, %v2215
    %v2217 = vsub.f32 1.0, %v2216
    %v2218 = vmul.f32 %v2215, %v2217
    %v2219 = vadd.f32 %v2215, %v2218
    %vm2220 = vweird.f32 %v2139
    %vm2221 = vweird.f32 %v2215
    %vm2222 = vmor %vm2220, %vm2221
    %v2223 = vsel %vm2222, %v2215, %v2219
    %v2224 = vand.u32 2147483647, %v2139
    %vm2225 = vcmp.eq.f32.partialorder %v2224, 8.507059e+37
    %v2226 = vand.u32 %v2139, 2147483648
    %v2227 = vor.u32 1.1754944e-38, %v2226
    %v2228 = vsel %vm2225, %v2227, %v2223
    %v2229 = vmul.f32 1.0, %v2228
    %v2230 = vtanh.pop %v2111
    %v2231 = vtanh.pop %v2115
    %v2232 = vmul.f32 %v2169, %v2041
    %v2233 = vmul.f32 %v2214, %v2042
    %v2234 = vmul.f32 %v2154, %v2230
    %v2235 = vmul.f32 %v2199, %v2231
    %v2236 = vadd.f32 %v2232, %v2234
    %v2237 = vadd.f32 %v2233, %v2235
    %v2238 = vtanh.pop %v2236
    %v2239 = vtanh.pop %v2237
    %v2240 = vmul.f32 %v2184, %v2238
    %v2241 = vmul.f32 %v2229, %v2239
    %vm2242 = vcmp.gt.s32.totalorder %v839, 5
    %vm2243 = vcmp.gt.s32.totalorder %v840, 5
    %v2244 = vsel %vm2242, 1, 0
    %v2245 = vsel %vm2243, 1, 0
    %2246 = vset.pattern.permute.xlu0 0
    %2247 = vperm.xlu0 %2246, %v2244
    %v2248 = vpop.permute.xlu0 %2247
    %2249 = vset.pattern.permute.xlu0 0
    %2250 = vperm.xlu0 %2249, %v2245
    %v2251 = vpop.permute.xlu0 %2250
    %vm2252 = vcmp.eq.s32.totalorder %v2248, 1
    %vm2253 = vcmp.eq.s32.totalorder %v2251, 1
    %v2254 = vsel %vm2252, %v2240, %v2039
    %v2255 = vsel %vm2253, %v2241, %v2040
    %v2256 = vsel %vm2252, %v2236, %v2041
    %v2257 = vsel %vm2253, %v2237, %v2042
    %v2258 = vld [vmem:[#allocation2 + $0x180] sm:$0xff]
    %v2259 = vld [vmem:[#allocation2 + $0x188] sm:$0xff]
    %v2260 = vld [vmem:[#allocation2 + $0x190] sm:$0xff]
    %v2261 = vld [vmem:[#allocation2 + $0x198] sm:$0xff]
    %v2262 = vld [vmem:[#allocation2 + $0x1a0] sm:$0xff]
    %v2263 = vld [vmem:[#allocation2 + $0x1a8] sm:$0xff]
    %v2264 = vld [vmem:[#allocation2 + $0x1b0] sm:$0xff]
    %v2265 = vld [vmem:[#allocation2 + $0x1b8] sm:$0xff]
    %v2266 = vpack.c.bf16 %v2255, %v2254
    %2267 = vmatpush.bf16.msra.mxu0 %v1156
    %2268 = vmatpush.bf16.msra.mxu0 %v1152
    %2269 = vmatpush.bf16.msra.mxu0 %v1148
    %2270 = vmatpush.bf16.msra.mxu0 %v1144
    %2271 = vmatpush.bf16.msra.mxu0 %v1140
    %2272 = vmatpush.bf16.msra.mxu0 %v1136
    %2273 = vmatpush.bf16.msra.mxu0 %v1132
    %2274 = vmatpush.bf16.msra.mxu0 %v1128
    %2275 = vmatmul.bf16.gmra.mxu0 %v2266
    %v2276 = vpop.f32.mrf.mxu0
    %v2277 = vadd.f32 0.0, %v2276
    %v2278 = vpop.f32.mrf.mxu0
    %v2279 = vadd.f32 0.0, %v2278
    %2280 = vdwg.mxu0
    %2281 = vmatpush.bf16.msra.mxu0 %v1157
    %2282 = vmatpush.bf16.msra.mxu0 %v1153
    %2283 = vmatpush.bf16.msra.mxu0 %v1149
    %2284 = vmatpush.bf16.msra.mxu0 %v1145
    %2285 = vmatpush.bf16.msra.mxu0 %v1141
    %2286 = vmatpush.bf16.msra.mxu0 %v1137
    %2287 = vmatpush.bf16.msra.mxu0 %v1133
    %2288 = vmatpush.bf16.msra.mxu0 %v1129
    %2289 = vmatmul.bf16.gmra.mxu0 %v2266
    %v2290 = vpop.f32.mrf.mxu0
    %v2291 = vadd.f32 0.0, %v2290
    %v2292 = vpop.f32.mrf.mxu0
    %v2293 = vadd.f32 0.0, %v2292
    %2294 = vdwg.mxu0
    %2295 = vmatpush.bf16.msra.mxu0 %v1158
    %2296 = vmatpush.bf16.msra.mxu0 %v1154
    %2297 = vmatpush.bf16.msra.mxu0 %v1150
    %2298 = vmatpush.bf16.msra.mxu0 %v1146
    %2299 = vmatpush.bf16.msra.mxu0 %v1142
    %2300 = vmatpush.bf16.msra.mxu0 %v1138
    %2301 = vmatpush.bf16.msra.mxu0 %v1134
    %2302 = vmatpush.bf16.msra.mxu0 %v1130
    %2303 = vmatmul.bf16.gmra.mxu0 %v2266
    %v2304 = vpop.f32.mrf.mxu0
    %v2305 = vadd.f32 0.0, %v2304
    %v2306 = vpop.f32.mrf.mxu0
    %v2307 = vadd.f32 0.0, %v2306
    %2308 = vdwg.mxu0
    %2309 = vmatpush.bf16.msra.mxu0 %v1159
    %2310 = vmatpush.bf16.msra.mxu0 %v1155
    %2311 = vmatpush.bf16.msra.mxu0 %v1151
    %2312 = vmatpush.bf16.msra.mxu0 %v1147
    %2313 = vmatpush.bf16.msra.mxu0 %v1143
    %2314 = vmatpush.bf16.msra.mxu0 %v1139
    %2315 = vmatpush.bf16.msra.mxu0 %v1135
    %2316 = vmatpush.bf16.msra.mxu0 %v1131
    %2317 = vmatmul.bf16.gmra.mxu0 %v2266
    %v2318 = vpop.f32.mrf.mxu0
    %v2319 = vadd.f32 0.0, %v2318
    %v2320 = vpop.f32.mrf.mxu0
    %v2321 = vadd.f32 0.0, %v2320
    %2322 = vdwg.mxu0
    %v2323 = vadd.f32 %v2258, %v2277
    %v2324 = vadd.f32 %v2259, %v2291
    %v2325 = vadd.f32 %v2260, %v2305
    %v2326 = vadd.f32 %v2261, %v2319
    %v2327 = vadd.f32 %v2262, %v2279
    %v2328 = vadd.f32 %v2263, %v2293
    %v2329 = vadd.f32 %v2264, %v2307
    %v2330 = vadd.f32 %v2265, %v2321
    %v2331 = vxor.u32 %v2323, 2147483648
    %v2332 = vxor.u32 %v2324, 2147483648
    %v2333 = vxor.u32 %v2325, 2147483648
    %v2334 = vxor.u32 %v2327, 2147483648
    %v2335 = vxor.u32 %v2328, 2147483648
    %v2336 = vxor.u32 %v2329, 2147483648
    %v2337 = vmul.f32 %v2331, 1.442695
    %v2338 = vpow.pop %v2337
    %v2339 = vmul.f32 %v2332, 1.442695
    %v2340 = vpow.pop %v2339
    %v2341 = vmul.f32 %v2333, 1.442695
    %v2342 = vpow.pop %v2341
    %v2343 = vmul.f32 %v2334, 1.442695
    %v2344 = vpow.pop %v2343
    %v2345 = vmul.f32 %v2335, 1.442695
    %v2346 = vpow.pop %v2345
    %v2347 = vmul.f32 %v2336, 1.442695
    %v2348 = vpow.pop %v2347
    %v2349 = vadd.f32 %v2338, 1.0
    %v2350 = vadd.f32 %v2340, 1.0
    %v2351 = vadd.f32 %v2342, 1.0
    %v2352 = vadd.f32 %v2344, 1.0
    %v2353 = vadd.f32 %v2346, 1.0
    %v2354 = vadd.f32 %v2348, 1.0
    %v2355 = vrcp.pop %v2349
    %v2356 = vmul.f32 %v2349, %v2355
    %v2357 = vsub.f32 1.0, %v2356
    %v2358 = vmul.f32 %v2355, %v2357
    %v2359 = vadd.f32 %v2355, %v2358
    %vm2360 = vweird.f32 %v2349
    %vm2361 = vweird.f32 %v2355
    %vm2362 = vmor %vm2360, %vm2361
    %v2363 = vsel %vm2362, %v2355, %v2359
    %v2364 = vand.u32 2147483647, %v2349
    %vm2365 = vcmp.eq.f32.partialorder %v2364, 8.507059e+37
    %v2366 = vand.u32 %v2349, 2147483648
    %v2367 = vor.u32 1.1754944e-38, %v2366
    %v2368 = vsel %vm2365, %v2367, %v2363
    %v2369 = vmul.f32 1.0, %v2368
    %v2370 = vrcp.pop %v2350
    %v2371 = vmul.f32 %v2350, %v2370
    %v2372 = vsub.f32 1.0, %v2371
    %v2373 = vmul.f32 %v2370, %v2372
    %v2374 = vadd.f32 %v2370, %v2373
    %vm2375 = vweird.f32 %v2350
    %vm2376 = vweird.f32 %v2370
    %vm2377 = vmor %vm2375, %vm2376
    %v2378 = vsel %vm2377, %v2370, %v2374
    %v2379 = vand.u32 2147483647, %v2350
    %vm2380 = vcmp.eq.f32.partialorder %v2379, 8.507059e+37
    %v2381 = vand.u32 %v2350, 2147483648
    %v2382 = vor.u32 1.1754944e-38, %v2381
    %v2383 = vsel %vm2380, %v2382, %v2378
    %v2384 = vmul.f32 1.0, %v2383
    %v2385 = vrcp.pop %v2351
    %v2386 = vmul.f32 %v2351, %v2385
    %v2387 = vsub.f32 1.0, %v2386
    %v2388 = vmul.f32 %v2385, %v2387
    %v2389 = vadd.f32 %v2385, %v2388
    %vm2390 = vweird.f32 %v2351
    %vm2391 = vweird.f32 %v2385
    %vm2392 = vmor %vm2390, %vm2391
    %v2393 = vsel %vm2392, %v2385, %v2389
    %v2394 = vand.u32 2147483647, %v2351
    %vm2395 = vcmp.eq.f32.partialorder %v2394, 8.507059e+37
    %v2396 = vand.u32 %v2351, 2147483648
    %v2397 = vor.u32 1.1754944e-38, %v2396
    %v2398 = vsel %vm2395, %v2397, %v2393
    %v2399 = vmul.f32 1.0, %v2398
    %v2400 = vrcp.pop %v2352
    %v2401 = vmul.f32 %v2352, %v2400
    %v2402 = vsub.f32 1.0, %v2401
    %v2403 = vmul.f32 %v2400, %v2402
    %v2404 = vadd.f32 %v2400, %v2403
    %vm2405 = vweird.f32 %v2352
    %vm2406 = vweird.f32 %v2400
    %vm2407 = vmor %vm2405, %vm2406
    %v2408 = vsel %vm2407, %v2400, %v2404
    %v2409 = vand.u32 2147483647, %v2352
    %vm2410 = vcmp.eq.f32.partialorder %v2409, 8.507059e+37
    %v2411 = vand.u32 %v2352, 2147483648
    %v2412 = vor.u32 1.1754944e-38, %v2411
    %v2413 = vsel %vm2410, %v2412, %v2408
    %v2414 = vmul.f32 1.0, %v2413
    %v2415 = vrcp.pop %v2353
    %v2416 = vmul.f32 %v2353, %v2415
    %v2417 = vsub.f32 1.0, %v2416
    %v2418 = vmul.f32 %v2415, %v2417
    %v2419 = vadd.f32 %v2415, %v2418
    %vm2420 = vweird.f32 %v2353
    %vm2421 = vweird.f32 %v2415
    %vm2422 = vmor %vm2420, %vm2421
    %v2423 = vsel %vm2422, %v2415, %v2419
    %v2424 = vand.u32 2147483647, %v2353
    %vm2425 = vcmp.eq.f32.partialorder %v2424, 8.507059e+37
    %v2426 = vand.u32 %v2353, 2147483648
    %v2427 = vor.u32 1.1754944e-38, %v2426
    %v2428 = vsel %vm2425, %v2427, %v2423
    %v2429 = vmul.f32 1.0, %v2428
    %v2430 = vrcp.pop %v2354
    %v2431 = vmul.f32 %v2354, %v2430
    %v2432 = vsub.f32 1.0, %v2431
    %v2433 = vmul.f32 %v2430, %v2432
    %v2434 = vadd.f32 %v2430, %v2433
    %vm2435 = vweird.f32 %v2354
    %vm2436 = vweird.f32 %v2430
    %vm2437 = vmor %vm2435, %vm2436
    %v2438 = vsel %vm2437, %v2430, %v2434
    %v2439 = vand.u32 2147483647, %v2354
    %vm2440 = vcmp.eq.f32.partialorder %v2439, 8.507059e+37
    %v2441 = vand.u32 %v2354, 2147483648
    %v2442 = vor.u32 1.1754944e-38, %v2441
    %v2443 = vsel %vm2440, %v2442, %v2438
    %v2444 = vmul.f32 1.0, %v2443
    %v2445 = vtanh.pop %v2326
    %v2446 = vtanh.pop %v2330
    %v2447 = vmul.f32 %v2384, %v2256
    %v2448 = vmul.f32 %v2429, %v2257
    %v2449 = vmul.f32 %v2369, %v2445
    %v2450 = vmul.f32 %v2414, %v2446
    %v2451 = vadd.f32 %v2447, %v2449
    %v2452 = vadd.f32 %v2448, %v2450
    %v2453 = vtanh.pop %v2451
    %v2454 = vtanh.pop %v2452
    %v2455 = vmul.f32 %v2399, %v2453
    %v2456 = vmul.f32 %v2444, %v2454
    %vm2457 = vcmp.gt.s32.totalorder %v839, 6
    %vm2458 = vcmp.gt.s32.totalorder %v840, 6
    %v2459 = vsel %vm2457, 1, 0
    %v2460 = vsel %vm2458, 1, 0
    %2461 = vset.pattern.permute.xlu0 0
    %2462 = vperm.xlu0 %2461, %v2459
    %v2463 = vpop.permute.xlu0 %2462
    %2464 = vset.pattern.permute.xlu0 0
    %2465 = vperm.xlu0 %2464, %v2460
    %v2466 = vpop.permute.xlu0 %2465
    %vm2467 = vcmp.eq.s32.totalorder %v2463, 1
    %vm2468 = vcmp.eq.s32.totalorder %v2466, 1
    %v2469 = vsel %vm2467, %v2455, %v2254
    %v2470 = vsel %vm2468, %v2456, %v2255
    %v2471 = vsel %vm2467, %v2451, %v2256
    %v2472 = vsel %vm2468, %v2452, %v2257
    %v2473 = vld [vmem:[#allocation2 + $0x1c0] sm:$0xff]
    %v2474 = vld [vmem:[#allocation2 + $0x1c8] sm:$0xff]
    %v2475 = vld [vmem:[#allocation2 + $0x1d0] sm:$0xff]
    %v2476 = vld [vmem:[#allocation2 + $0x1d8] sm:$0xff]
    %v2477 = vld [vmem:[#allocation2 + $0x1e0] sm:$0xff]
    %v2478 = vld [vmem:[#allocation2 + $0x1e8] sm:$0xff]
    %v2479 = vld [vmem:[#allocation2 + $0x1f0] sm:$0xff]
    %v2480 = vld [vmem:[#allocation2 + $0x1f8] sm:$0xff]
    %v2481 = vpack.c.bf16 %v2470, %v2469
    %2482 = vmatpush.bf16.msra.mxu0 %v1156
    %2483 = vmatpush.bf16.msra.mxu0 %v1152
    %2484 = vmatpush.bf16.msra.mxu0 %v1148
    %2485 = vmatpush.bf16.msra.mxu0 %v1144
    %2486 = vmatpush.bf16.msra.mxu0 %v1140
    %2487 = vmatpush.bf16.msra.mxu0 %v1136
    %2488 = vmatpush.bf16.msra.mxu0 %v1132
    %2489 = vmatpush.bf16.msra.mxu0 %v1128
    %2490 = vmatmul.bf16.gmra.mxu0 %v2481
    %v2491 = vpop.f32.mrf.mxu0
    %v2492 = vadd.f32 0.0, %v2491
    %v2493 = vpop.f32.mrf.mxu0
    %v2494 = vadd.f32 0.0, %v2493
    %2495 = vdwg.mxu0
    %2496 = vmatpush.bf16.msra.mxu0 %v1157
    %2497 = vmatpush.bf16.msra.mxu0 %v1153
    %2498 = vmatpush.bf16.msra.mxu0 %v1149
    %2499 = vmatpush.bf16.msra.mxu0 %v1145
    %2500 = vmatpush.bf16.msra.mxu0 %v1141
    %2501 = vmatpush.bf16.msra.mxu0 %v1137
    %2502 = vmatpush.bf16.msra.mxu0 %v1133
    %2503 = vmatpush.bf16.msra.mxu0 %v1129
    %2504 = vmatmul.bf16.gmra.mxu0 %v2481
    %v2505 = vpop.f32.mrf.mxu0
    %v2506 = vadd.f32 0.0, %v2505
    %v2507 = vpop.f32.mrf.mxu0
    %v2508 = vadd.f32 0.0, %v2507
    %2509 = vdwg.mxu0
    %2510 = vmatpush.bf16.msra.mxu0 %v1158
    %2511 = vmatpush.bf16.msra.mxu0 %v1154
    %2512 = vmatpush.bf16.msra.mxu0 %v1150
    %2513 = vmatpush.bf16.msra.mxu0 %v1146
    %2514 = vmatpush.bf16.msra.mxu0 %v1142
    %2515 = vmatpush.bf16.msra.mxu0 %v1138
    %2516 = vmatpush.bf16.msra.mxu0 %v1134
    %2517 = vmatpush.bf16.msra.mxu0 %v1130
    %2518 = vmatmul.bf16.gmra.mxu0 %v2481
    %v2519 = vpop.f32.mrf.mxu0
    %v2520 = vadd.f32 0.0, %v2519
    %v2521 = vpop.f32.mrf.mxu0
    %v2522 = vadd.f32 0.0, %v2521
    %2523 = vdwg.mxu0
    %2524 = vmatpush.bf16.msra.mxu0 %v1159
    %2525 = vmatpush.bf16.msra.mxu0 %v1155
    %2526 = vmatpush.bf16.msra.mxu0 %v1151
    %2527 = vmatpush.bf16.msra.mxu0 %v1147
    %2528 = vmatpush.bf16.msra.mxu0 %v1143
    %2529 = vmatpush.bf16.msra.mxu0 %v1139
    %2530 = vmatpush.bf16.msra.mxu0 %v1135
    %2531 = vmatpush.bf16.msra.mxu0 %v1131
    %2532 = vmatmul.bf16.gmra.mxu0 %v2481
    %v2533 = vpop.f32.mrf.mxu0
    %v2534 = vadd.f32 0.0, %v2533
    %v2535 = vpop.f32.mrf.mxu0
    %v2536 = vadd.f32 0.0, %v2535
    %2537 = vdwg.mxu0
    %v2538 = vadd.f32 %v2473, %v2492
    %v2539 = vadd.f32 %v2474, %v2506
    %v2540 = vadd.f32 %v2475, %v2520
    %v2541 = vadd.f32 %v2476, %v2534
    %v2542 = vadd.f32 %v2477, %v2494
    %v2543 = vadd.f32 %v2478, %v2508
    %v2544 = vadd.f32 %v2479, %v2522
    %v2545 = vadd.f32 %v2480, %v2536
    %v2546 = vxor.u32 %v2538, 2147483648
    %v2547 = vxor.u32 %v2539, 2147483648
    %v2548 = vxor.u32 %v2540, 2147483648
    %v2549 = vxor.u32 %v2542, 2147483648
    %v2550 = vxor.u32 %v2543, 2147483648
    %v2551 = vxor.u32 %v2544, 2147483648
    %v2552 = vmul.f32 %v2546, 1.442695
    %v2553 = vpow.pop %v2552
    %v2554 = vmul.f32 %v2547, 1.442695
    %v2555 = vpow.pop %v2554
    %v2556 = vmul.f32 %v2548, 1.442695
    %v2557 = vpow.pop %v2556
    %v2558 = vmul.f32 %v2549, 1.442695
    %v2559 = vpow.pop %v2558
    %v2560 = vmul.f32 %v2550, 1.442695
    %v2561 = vpow.pop %v2560
    %v2562 = vmul.f32 %v2551, 1.442695
    %v2563 = vpow.pop %v2562
    %v2564 = vadd.f32 %v2553, 1.0
    %v2565 = vadd.f32 %v2555, 1.0
    %v2566 = vadd.f32 %v2557, 1.0
    %v2567 = vadd.f32 %v2559, 1.0
    %v2568 = vadd.f32 %v2561, 1.0
    %v2569 = vadd.f32 %v2563, 1.0
    %v2570 = vrcp.pop %v2564
    %v2571 = vmul.f32 %v2564, %v2570
    %v2572 = vsub.f32 1.0, %v2571
    %v2573 = vmul.f32 %v2570, %v2572
    %v2574 = vadd.f32 %v2570, %v2573
    %vm2575 = vweird.f32 %v2564
    %vm2576 = vweird.f32 %v2570
    %vm2577 = vmor %vm2575, %vm2576
    %v2578 = vsel %vm2577, %v2570, %v2574
    %v2579 = vand.u32 2147483647, %v2564
    %vm2580 = vcmp.eq.f32.partialorder %v2579, 8.507059e+37
    %v2581 = vand.u32 %v2564, 2147483648
    %v2582 = vor.u32 1.1754944e-38, %v2581
    %v2583 = vsel %vm2580, %v2582, %v2578
    %v2584 = vmul.f32 1.0, %v2583
    %v2585 = vrcp.pop %v2565
    %v2586 = vmul.f32 %v2565, %v2585
    %v2587 = vsub.f32 1.0, %v2586
    %v2588 = vmul.f32 %v2585, %v2587
    %v2589 = vadd.f32 %v2585, %v2588
    %vm2590 = vweird.f32 %v2565
    %vm2591 = vweird.f32 %v2585
    %vm2592 = vmor %vm2590, %vm2591
    %v2593 = vsel %vm2592, %v2585, %v2589
    %v2594 = vand.u32 2147483647, %v2565
    %vm2595 = vcmp.eq.f32.partialorder %v2594, 8.507059e+37
    %v2596 = vand.u32 %v2565, 2147483648
    %v2597 = vor.u32 1.1754944e-38, %v2596
    %v2598 = vsel %vm2595, %v2597, %v2593
    %v2599 = vmul.f32 1.0, %v2598
    %v2600 = vrcp.pop %v2566
    %v2601 = vmul.f32 %v2566, %v2600
    %v2602 = vsub.f32 1.0, %v2601
    %v2603 = vmul.f32 %v2600, %v2602
    %v2604 = vadd.f32 %v2600, %v2603
    %vm2605 = vweird.f32 %v2566
    %vm2606 = vweird.f32 %v2600
    %vm2607 = vmor %vm2605, %vm2606
    %v2608 = vsel %vm2607, %v2600, %v2604
    %v2609 = vand.u32 2147483647, %v2566
    %vm2610 = vcmp.eq.f32.partialorder %v2609, 8.507059e+37
    %v2611 = vand.u32 %v2566, 2147483648
    %v2612 = vor.u32 1.1754944e-38, %v2611
    %v2613 = vsel %vm2610, %v2612, %v2608
    %v2614 = vmul.f32 1.0, %v2613
    %v2615 = vrcp.pop %v2567
    %v2616 = vmul.f32 %v2567, %v2615
    %v2617 = vsub.f32 1.0, %v2616
    %v2618 = vmul.f32 %v2615, %v2617
    %v2619 = vadd.f32 %v2615, %v2618
    %vm2620 = vweird.f32 %v2567
    %vm2621 = vweird.f32 %v2615
    %vm2622 = vmor %vm2620, %vm2621
    %v2623 = vsel %vm2622, %v2615, %v2619
    %v2624 = vand.u32 2147483647, %v2567
    %vm2625 = vcmp.eq.f32.partialorder %v2624, 8.507059e+37
    %v2626 = vand.u32 %v2567, 2147483648
    %v2627 = vor.u32 1.1754944e-38, %v2626
    %v2628 = vsel %vm2625, %v2627, %v2623
    %v2629 = vmul.f32 1.0, %v2628
    %v2630 = vrcp.pop %v2568
    %v2631 = vmul.f32 %v2568, %v2630
    %v2632 = vsub.f32 1.0, %v2631
    %v2633 = vmul.f32 %v2630, %v2632
    %v2634 = vadd.f32 %v2630, %v2633
    %vm2635 = vweird.f32 %v2568
    %vm2636 = vweird.f32 %v2630
    %vm2637 = vmor %vm2635, %vm2636
    %v2638 = vsel %vm2637, %v2630, %v2634
    %v2639 = vand.u32 2147483647, %v2568
    %vm2640 = vcmp.eq.f32.partialorder %v2639, 8.507059e+37
    %v2641 = vand.u32 %v2568, 2147483648
    %v2642 = vor.u32 1.1754944e-38, %v2641
    %v2643 = vsel %vm2640, %v2642, %v2638
    %v2644 = vmul.f32 1.0, %v2643
    %v2645 = vrcp.pop %v2569
    %v2646 = vmul.f32 %v2569, %v2645
    %v2647 = vsub.f32 1.0, %v2646
    %v2648 = vmul.f32 %v2645, %v2647
    %v2649 = vadd.f32 %v2645, %v2648
    %vm2650 = vweird.f32 %v2569
    %vm2651 = vweird.f32 %v2645
    %vm2652 = vmor %vm2650, %vm2651
    %v2653 = vsel %vm2652, %v2645, %v2649
    %v2654 = vand.u32 2147483647, %v2569
    %vm2655 = vcmp.eq.f32.partialorder %v2654, 8.507059e+37
    %v2656 = vand.u32 %v2569, 2147483648
    %v2657 = vor.u32 1.1754944e-38, %v2656
    %v2658 = vsel %vm2655, %v2657, %v2653
    %v2659 = vmul.f32 1.0, %v2658
    %v2660 = vtanh.pop %v2541
    %v2661 = vtanh.pop %v2545
    %v2662 = vmul.f32 %v2599, %v2471
    %v2663 = vmul.f32 %v2644, %v2472
    %v2664 = vmul.f32 %v2584, %v2660
    %v2665 = vmul.f32 %v2629, %v2661
    %v2666 = vadd.f32 %v2662, %v2664
    %v2667 = vadd.f32 %v2663, %v2665
    %v2668 = vtanh.pop %v2666
    %v2669 = vtanh.pop %v2667
    %v2670 = vmul.f32 %v2614, %v2668
    %v2671 = vmul.f32 %v2659, %v2669
    %vm2672 = vcmp.gt.s32.totalorder %v839, 7
    %vm2673 = vcmp.gt.s32.totalorder %v840, 7
    %v2674 = vsel %vm2672, 1, 0
    %v2675 = vsel %vm2673, 1, 0
    %2676 = vset.pattern.permute.xlu0 0
    %2677 = vperm.xlu0 %2676, %v2674
    %v2678 = vpop.permute.xlu0 %2677
    %2679 = vset.pattern.permute.xlu0 0
    %2680 = vperm.xlu0 %2679, %v2675
    %v2681 = vpop.permute.xlu0 %2680
    %vm2682 = vcmp.eq.s32.totalorder %v2678, 1
    %vm2683 = vcmp.eq.s32.totalorder %v2681, 1
    %v2684 = vsel %vm2682, %v2670, %v2469
    %v2685 = vsel %vm2683, %v2671, %v2470
    %v2686 = vpack.c.bf16 %v2685, %v2684
    %v2687 = vld [vmem:[#allocation10] sm:$0xf]
    %v2688 = vld [vmem:[#allocation10 + $0x4] sm:$0xf]
    %v2689 = vld [vmem:[#allocation10 + $0x8] sm:$0xf]
    %v2690 = vld [vmem:[#allocation10 + $0xc] sm:$0xf]
    %v2691 = vld [vmem:[#allocation10 + $0x10] sm:$0xf]
    %v2692 = vld [vmem:[#allocation10 + $0x14] sm:$0xf]
    %v2693 = vld [vmem:[#allocation10 + $0x18] sm:$0xf]
    %v2694 = vld [vmem:[#allocation10 + $0x1c] sm:$0xf]
    %v2695 = vld [vmem:[#allocation10 + $0x20] sm:$0xf]
    %v2696 = vld [vmem:[#allocation10 + $0x24] sm:$0xf]
    %v2697 = vld [vmem:[#allocation10 + $0x28] sm:$0xf]
    %v2698 = vld [vmem:[#allocation10 + $0x2c] sm:$0xf]
    %v2699 = vld [vmem:[#allocation10 + $0x30] sm:$0xf]
    %v2700 = vld [vmem:[#allocation10 + $0x34] sm:$0xf]
    %v2701 = vld [vmem:[#allocation10 + $0x38] sm:$0xf]
    %v2702 = vld [vmem:[#allocation10 + $0x3c] sm:$0xf]
    %v2703 = vld [vmem:[%s10] sm:$0x1]
    %v2705 = vperm.slane %v2703, 0
    %v2723 = vunpack.c.l.b16 %v2687
    %v2724 = vunpack.c.l.b16 %v2688
    %v2725 = vunpack.c.l.b16 %v2689
    %v2726 = vunpack.c.l.b16 %v2690
    %v2727 = vunpack.c.l.b16 %v2691
    %v2728 = vunpack.c.l.b16 %v2692
    %v2729 = vunpack.c.l.b16 %v2693
    %v2730 = vunpack.c.l.b16 %v2694
    %v2731 = vunpack.c.l.b16 %v2695
    %v2732 = vunpack.c.l.b16 %v2696
    %v2733 = vunpack.c.l.b16 %v2697
    %v2734 = vunpack.c.l.b16 %v2698
    %v2735 = vunpack.c.l.b16 %v2699
    %v2736 = vunpack.c.l.b16 %v2700
    %v2737 = vunpack.c.l.b16 %v2701
    %v2738 = vunpack.c.l.b16 %v2702
    %v2739 = vpack.c.b16 %v2724, %v2723
    %v2740 = vpack.c.b16 %v2726, %v2725
    %v2741 = vpack.c.b16 %v2728, %v2727
    %v2742 = vpack.c.b16 %v2730, %v2729
    %v2743 = vpack.c.b16 %v2732, %v2731
    %v2744 = vpack.c.b16 %v2734, %v2733
    %v2745 = vpack.c.b16 %v2736, %v2735
    %v2746 = vpack.c.b16 %v2738, %v2737
    %2755 = vmatpush.bf16.msra.mxu0 %v2746
    %2756 = vmatpush.bf16.msra.mxu0 %v2745
    %2757 = vmatpush.bf16.msra.mxu0 %v2744
    %2758 = vmatpush.bf16.msra.mxu0 %v2743
    %2759 = vmatpush.bf16.msra.mxu0 %v2742
    %2760 = vmatpush.bf16.msra.mxu0 %v2741
    %2761 = vmatpush.bf16.msra.mxu0 %v2740
    %2762 = vmatpush.bf16.msra.mxu0 %v2739
    %2763 = vmatmul.bf16.gmra.mxu0 %v2686
    %v2764 = vpop.f32.mrf.mxu0
    %v2765 = vadd.f32 %v2705, %v2764
    %v2766 = vpop.f32.mrf.mxu0
    %v2767 = vadd.f32 %v2705, %v2766
    %2768 = vdwg.mxu0
    %v2769 = vld [vmem:[%s6] sm:$0xff]
    %v2770 = vld [vmem:[%s6 + $0x8] sm:$0xff]
    %v2771 = vld [vmem:[#allocation8] sm:$0xf]
    %v2772 = vld [vmem:[#allocation8 + $0x4] sm:$0xf]
    %v2773 = vld [vmem:[#allocation8 + $0x8] sm:$0xf]
    %v2774 = vld [vmem:[#allocation8 + $0xc] sm:$0xf]
    %v2775 = vld [vmem:[#allocation8 + $0x10] sm:$0xf]
    %v2776 = vld [vmem:[#allocation8 + $0x14] sm:$0xf]
    %v2777 = vld [vmem:[#allocation8 + $0x18] sm:$0xf]
    %v2778 = vld [vmem:[#allocation8 + $0x1c] sm:$0xf]
    %v2779 = vld [vmem:[#allocation8 + $0x20] sm:$0xf]
    %v2780 = vld [vmem:[#allocation8 + $0x24] sm:$0xf]
    %v2781 = vld [vmem:[#allocation8 + $0x28] sm:$0xf]
    %v2782 = vld [vmem:[#allocation8 + $0x2c] sm:$0xf]
    %v2783 = vld [vmem:[#allocation8 + $0x30] sm:$0xf]
    %v2784 = vld [vmem:[#allocation8 + $0x34] sm:$0xf]
    %v2785 = vld [vmem:[#allocation8 + $0x38] sm:$0xf]
    %v2786 = vld [vmem:[#allocation8 + $0x3c] sm:$0xf]
    %v2787 = vld [vmem:[#allocation8 + $0x40] sm:$0xf]
    %v2788 = vld [vmem:[#allocation8 + $0x44] sm:$0xf]
    %v2789 = vld [vmem:[#allocation8 + $0x48] sm:$0xf]
    %v2790 = vld [vmem:[#allocation8 + $0x4c] sm:$0xf]
    %v2791 = vld [vmem:[#allocation8 + $0x50] sm:$0xf]
    %v2792 = vld [vmem:[#allocation8 + $0x54] sm:$0xf]
    %v2793 = vld [vmem:[#allocation8 + $0x58] sm:$0xf]
    %v2794 = vld [vmem:[#allocation8 + $0x5c] sm:$0xf]
    %v2795 = vld [vmem:[#allocation8 + $0x60] sm:$0xf]
    %v2796 = vld [vmem:[#allocation8 + $0x64] sm:$0xf]
    %v2797 = vld [vmem:[#allocation8 + $0x68] sm:$0xf]
    %v2798 = vld [vmem:[#allocation8 + $0x6c] sm:$0xf]
    %v2799 = vld [vmem:[#allocation8 + $0x70] sm:$0xf]
    %v2800 = vld [vmem:[#allocation8 + $0x74] sm:$0xf]
    %v2801 = vld [vmem:[#allocation8 + $0x78] sm:$0xf]
    %v2802 = vld [vmem:[#allocation8 + $0x7c] sm:$0xf]
    %v2803 = vld [vmem:[%s8] sm:$0x1]
    %v2805 = vperm.slane %v2803, 0
    %v2809 = vunpack.c.l.b16 %v2769
    %v2810 = vunpack.c.h.b16 %v2769
    %v2811 = vunpack.c.l.b16 %v2770
    %v2812 = vunpack.c.h.b16 %v2770
    %v2813 = vpack.c.b16 %v2811, %v2809
    %v2814 = vpack.c.b16 %v2812, %v2810
    %v2849 = vunpack.c.l.b16 %v2771
    %v2850 = vunpack.c.l.b16 %v2772
    %v2851 = vunpack.c.l.b16 %v2773
    %v2852 = vunpack.c.l.b16 %v2774
    %v2853 = vunpack.c.l.b16 %v2775
    %v2854 = vunpack.c.l.b16 %v2776
    %v2855 = vunpack.c.l.b16 %v2777
    %v2856 = vunpack.c.l.b16 %v2778
    %v2857 = vunpack.c.l.b16 %v2779
    %v2858 = vunpack.c.l.b16 %v2780
    %v2859 = vunpack.c.l.b16 %v2781
    %v2860 = vunpack.c.l.b16 %v2782
    %v2861 = vunpack.c.l.b16 %v2783
    %v2862 = vunpack.c.l.b16 %v2784
    %v2863 = vunpack.c.l.b16 %v2785
    %v2864 = vunpack.c.l.b16 %v2786
    %v2865 = vunpack.c.l.b16 %v2787
    %v2866 = vunpack.c.l.b16 %v2788
    %v2867 = vunpack.c.l.b16 %v2789
    %v2868 = vunpack.c.l.b16 %v2790
    %v2869 = vunpack.c.l.b16 %v2791
    %v2870 = vunpack.c.l.b16 %v2792
    %v2871 = vunpack.c.l.b16 %v2793
    %v2872 = vunpack.c.l.b16 %v2794
    %v2873 = vunpack.c.l.b16 %v2795
    %v2874 = vunpack.c.l.b16 %v2796
    %v2875 = vunpack.c.l.b16 %v2797
    %v2876 = vunpack.c.l.b16 %v2798
    %v2877 = vunpack.c.l.b16 %v2799
    %v2878 = vunpack.c.l.b16 %v2800
    %v2879 = vunpack.c.l.b16 %v2801
    %v2880 = vunpack.c.l.b16 %v2802
    %v2881 = vpack.c.b16 %v2850, %v2849
    %v2882 = vpack.c.b16 %v2852, %v2851
    %v2883 = vpack.c.b16 %v2854, %v2853
    %v2884 = vpack.c.b16 %v2856, %v2855
    %v2885 = vpack.c.b16 %v2858, %v2857
    %v2886 = vpack.c.b16 %v2860, %v2859
    %v2887 = vpack.c.b16 %v2862, %v2861
    %v2888 = vpack.c.b16 %v2864, %v2863
    %v2889 = vpack.c.b16 %v2866, %v2865
    %v2890 = vpack.c.b16 %v2868, %v2867
    %v2891 = vpack.c.b16 %v2870, %v2869
    %v2892 = vpack.c.b16 %v2872, %v2871
    %v2893 = vpack.c.b16 %v2874, %v2873
    %v2894 = vpack.c.b16 %v2876, %v2875
    %v2895 = vpack.c.b16 %v2878, %v2877
    %v2896 = vpack.c.b16 %v2880, %v2879
    %2913 = vmatpush.bf16.msra.mxu0 %v2888
    %2914 = vmatpush.bf16.msra.mxu0 %v2887
    %2915 = vmatpush.bf16.msra.mxu0 %v2886
    %2916 = vmatpush.bf16.msra.mxu0 %v2885
    %2917 = vmatpush.bf16.msra.mxu0 %v2884
    %2918 = vmatpush.bf16.msra.mxu0 %v2883
    %2919 = vmatpush.bf16.msra.mxu0 %v2882
    %2920 = vmatpush.bf16.msra.mxu0 %v2881
    %2921 = vmatmul.bf16.gmra.mxu0 %v2813
    %v2922 = vpop.f32.mrf.mxu0
    %v2923 = vadd.f32 %v2805, %v2922
    %v2924 = vpop.f32.mrf.mxu0
    %v2925 = vadd.f32 %v2805, %v2924
    %2926 = vdwg.mxu0
    %2927 = vmatpush.bf16.msra.mxu0 %v2896
    %2928 = vmatpush.bf16.msra.mxu0 %v2895
    %2929 = vmatpush.bf16.msra.mxu0 %v2894
    %2930 = vmatpush.bf16.msra.mxu0 %v2893
    %2931 = vmatpush.bf16.msra.mxu0 %v2892
    %2932 = vmatpush.bf16.msra.mxu0 %v2891
    %2933 = vmatpush.bf16.msra.mxu0 %v2890
    %2934 = vmatpush.bf16.msra.mxu0 %v2889
    %2935 = vmatmul.bf16.gmra.mxu0 %v2814
    %v2936 = vpop.f32.mrf.mxu0
    %v2937 = vadd.f32 %v2923, %v2936
    %v2938 = vpop.f32.mrf.mxu0
    %v2939 = vadd.f32 %v2925, %v2938
    %2940 = vdwg.mxu0
    %v2941 = vmul.f32 %v2765, %v2937
    %v2942 = vmul.f32 %v2767, %v2939
    %v2943 = vpack.c.bf16 %v2941, %v2941
    %v2944 = vpack.c.bf16 %v2942, %v2942
    %v2945 = vld [vmem:[%s12] sm:$0xff]
    %v2946 = vld [vmem:[%s12 + $0x8] sm:$0xff]
    %2947 = vset.pattern.permute.xlu0 0
    %2948 = vperm.xlu0 %2947, %v2945
    %v2949 = vpop.permute.xlu0 %2948
    %2950 = vset.pattern.permute.xlu0 0
    %2951 = vperm.xlu0 %2950, %v2946
    %v2952 = vpop.permute.xlu0 %2951
    %vm2953 = vcmp.eq.s32.totalorder %v2949, %v151
    %vm2954 = vcmp.eq.s32.totalorder %v2952, %v151
    %v2955 = vsel %vm2953, 1.0, 0.0
    %v2956 = vsel %vm2954, 1.0, 0.0
    %v2957 = vpack.c.bf16 %v2955, %v2955
    %v2958 = vpack.c.bf16 %v2956, %v2956
    %v2959 = vld [vmem:[%s11] sm:$0xf]
    %v2960 = vld [vmem:[%s11 + $0x4] sm:$0xf]
    %v2963 = vunpack.c.l.b16 %v2943
    %v2964 = vunpack.c.l.b16 %v2944
    %v2965 = vpack.c.b16 %v2964, %v2963
    %v2969 = vunpack.c.l.b16 %v2959
    %v2970 = vunpack.c.l.b16 %v2960
    %v2971 = vpack.c.b16 %v2970, %v2969
    %v2975 = vunpack.c.l.b16 %v2957
    %v2976 = vunpack.c.l.b16 %v2958
    %v2977 = vpack.c.b16 %v2976, %v2975
    %v2979 = vld [vmem:[%s13] sm:$0xf]
    %v2980 = vld [vmem:[%s13 + $0x4] sm:$0xf]
    %v2981 = vld [vmem:[%s13 + $0x8] sm:$0xf]
    %v2982 = vld [vmem:[%s13 + $0xc] sm:$0xf]
    %v2983 = vld [vmem:[%s13 + $0x10] sm:$0xf]
    %v2984 = vld [vmem:[%s13 + $0x14] sm:$0xf]
    %v2985 = vld [vmem:[%s13 + $0x18] sm:$0xf]
    %v2986 = vld [vmem:[%s13 + $0x1c] sm:$0xf]
    %v2987 = vld [vmem:[%s13 + $0x20] sm:$0xf]
    %v2988 = vld [vmem:[%s13 + $0x24] sm:$0xf]
    %v2989 = vld [vmem:[%s13 + $0x28] sm:$0xf]
    %v2990 = vld [vmem:[%s13 + $0x2c] sm:$0xf]
    %v2991 = vld [vmem:[%s13 + $0x30] sm:$0xf]
    %v2992 = vld [vmem:[%s13 + $0x34] sm:$0xf]
    %v2993 = vld [vmem:[%s13 + $0x38] sm:$0xf]
    %v2994 = vld [vmem:[%s13 + $0x3c] sm:$0xf]
    %v2995 = vld [vmem:[%s13 + $0x40] sm:$0xf]
    %v2996 = vld [vmem:[%s13 + $0x44] sm:$0xf]
    %v2997 = vld [vmem:[%s13 + $0x48] sm:$0xf]
    %v2998 = vld [vmem:[%s13 + $0x4c] sm:$0xf]
    %v2999 = vld [vmem:[%s13 + $0x50] sm:$0xf]
    %v3000 = vld [vmem:[%s13 + $0x54] sm:$0xf]
    %v3001 = vld [vmem:[%s13 + $0x58] sm:$0xf]
    %v3002 = vld [vmem:[%s13 + $0x5c] sm:$0xf]
    %v3003 = vld [vmem:[%s13 + $0x60] sm:$0xf]
    %v3004 = vld [vmem:[%s13 + $0x64] sm:$0xf]
    %v3005 = vld [vmem:[%s13 + $0x68] sm:$0xf]
    %v3006 = vld [vmem:[%s13 + $0x6c] sm:$0xf]
    %v3007 = vld [vmem:[%s13 + $0x70] sm:$0xf]
    %v3008 = vld [vmem:[%s13 + $0x74] sm:$0xf]
    %v3009 = vld [vmem:[%s13 + $0x78] sm:$0xf]
    %v3010 = vld [vmem:[%s13 + $0x7c] sm:$0xf]
    %v3011 = vld [vmem:[%s13 + $0x80] sm:$0xf]
    %v3012 = vld [vmem:[%s13 + $0x84] sm:$0xf]
    %v3013 = vld [vmem:[%s13 + $0x88] sm:$0xf]
    %v3014 = vld [vmem:[%s13 + $0x8c] sm:$0xf]
    %v3015 = vld [vmem:[%s13 + $0x90] sm:$0xf]
    %v3016 = vld [vmem:[%s13 + $0x94] sm:$0xf]
    %v3017 = vld [vmem:[%s13 + $0x98] sm:$0xf]
    %v3018 = vld [vmem:[%s13 + $0x9c] sm:$0xf]
    %v3019 = vld [vmem:[%s13 + $0xa0] sm:$0xf]
    %v3020 = vld [vmem:[%s13 + $0xa4] sm:$0xf]
    %v3021 = vld [vmem:[%s13 + $0xa8] sm:$0xf]
    %v3022 = vld [vmem:[%s13 + $0xac] sm:$0xf]
    %v3023 = vld [vmem:[%s13 + $0xb0] sm:$0xf]
    %v3024 = vld [vmem:[%s13 + $0xb4] sm:$0xf]
    %v3025 = vld [vmem:[%s13 + $0xb8] sm:$0xf]
    %v3026 = vld [vmem:[%s13 + $0xbc] sm:$0xf]
    %v3027 = vld [vmem:[%s14] sm:$0x1]
    %v3029 = vperm.slane %v3027, 0
    %v3079 = vunpack.c.l.b16 %v2979
    %v3080 = vunpack.c.l.b16 %v2980
    %v3081 = vunpack.c.l.b16 %v2981
    %v3082 = vunpack.c.l.b16 %v2982
    %v3083 = vunpack.c.l.b16 %v2983
    %v3084 = vunpack.c.l.b16 %v2984
    %v3085 = vunpack.c.l.b16 %v2985
    %v3086 = vunpack.c.l.b16 %v2986
    %v3087 = vunpack.c.l.b16 %v2987
    %v3088 = vunpack.c.l.b16 %v2988
    %v3089 = vunpack.c.l.b16 %v2989
    %v3090 = vunpack.c.l.b16 %v2990
    %v3091 = vunpack.c.l.b16 %v2991
    %v3092 = vunpack.c.l.b16 %v2992
    %v3093 = vunpack.c.l.b16 %v2993
    %v3094 = vunpack.c.l.b16 %v2994
    %v3095 = vunpack.c.l.b16 %v2995
    %v3096 = vunpack.c.l.b16 %v2996
    %v3097 = vunpack.c.l.b16 %v2997
    %v3098 = vunpack.c.l.b16 %v2998
    %v3099 = vunpack.c.l.b16 %v2999
    %v3100 = vunpack.c.l.b16 %v3000
    %v3101 = vunpack.c.l.b16 %v3001
    %v3102 = vunpack.c.l.b16 %v3002
    %v3103 = vunpack.c.l.b16 %v3003
    %v3104 = vunpack.c.l.b16 %v3004
    %v3105 = vunpack.c.l.b16 %v3005
    %v3106 = vunpack.c.l.b16 %v3006
    %v3107 = vunpack.c.l.b16 %v3007
    %v3108 = vunpack.c.l.b16 %v3008
    %v3109 = vunpack.c.l.b16 %v3009
    %v3110 = vunpack.c.l.b16 %v3010
    %v3111 = vunpack.c.l.b16 %v3011
    %v3112 = vunpack.c.l.b16 %v3012
    %v3113 = vunpack.c.l.b16 %v3013
    %v3114 = vunpack.c.l.b16 %v3014
    %v3115 = vunpack.c.l.b16 %v3015
    %v3116 = vunpack.c.l.b16 %v3016
    %v3117 = vunpack.c.l.b16 %v3017
    %v3118 = vunpack.c.l.b16 %v3018
    %v3119 = vunpack.c.l.b16 %v3019
    %v3120 = vunpack.c.l.b16 %v3020
    %v3121 = vunpack.c.l.b16 %v3021
    %v3122 = vunpack.c.l.b16 %v3022
    %v3123 = vunpack.c.l.b16 %v3023
    %v3124 = vunpack.c.l.b16 %v3024
    %v3125 = vunpack.c.l.b16 %v3025
    %v3126 = vunpack.c.l.b16 %v3026
    %v3127 = vpack.c.b16 %v3080, %v3079
    %v3128 = vpack.c.b16 %v3082, %v3081
    %v3129 = vpack.c.b16 %v3084, %v3083
    %v3130 = vpack.c.b16 %v3086, %v3085
    %v3131 = vpack.c.b16 %v3088, %v3087
    %v3132 = vpack.c.b16 %v3090, %v3089
    %v3133 = vpack.c.b16 %v3092, %v3091
    %v3134 = vpack.c.b16 %v3094, %v3093
    %v3135 = vpack.c.b16 %v3096, %v3095
    %v3136 = vpack.c.b16 %v3098, %v3097
    %v3137 = vpack.c.b16 %v3100, %v3099
    %v3138 = vpack.c.b16 %v3102, %v3101
    %v3139 = vpack.c.b16 %v3104, %v3103
    %v3140 = vpack.c.b16 %v3106, %v3105
    %v3141 = vpack.c.b16 %v3108, %v3107
    %v3142 = vpack.c.b16 %v3110, %v3109
    %v3143 = vpack.c.b16 %v3112, %v3111
    %v3144 = vpack.c.b16 %v3114, %v3113
    %v3145 = vpack.c.b16 %v3116, %v3115
    %v3146 = vpack.c.b16 %v3118, %v3117
    %v3147 = vpack.c.b16 %v3120, %v3119
    %v3148 = vpack.c.b16 %v3122, %v3121
    %v3149 = vpack.c.b16 %v3124, %v3123
    %v3150 = vpack.c.b16 %v3126, %v3125
    %3175 = vmatpush.bf16.msra.mxu0 %v3134
    %3176 = vmatpush.bf16.msra.mxu0 %v3133
    %3177 = vmatpush.bf16.msra.mxu0 %v3132
    %3178 = vmatpush.bf16.msra.mxu0 %v3131
    %3179 = vmatpush.bf16.msra.mxu0 %v3130
    %3180 = vmatpush.bf16.msra.mxu0 %v3129
    %3181 = vmatpush.bf16.msra.mxu0 %v3128
    %3182 = vmatpush.bf16.msra.mxu0 %v3127
    %3183 = vmatmul.bf16.gmra.mxu0 %v2965
    %v3184 = vpop.f32.mrf.mxu0
    %v3185 = vadd.f32 %v3029, %v3184
    %v3186 = vpop.f32.mrf.mxu0
    %v3187 = vadd.f32 %v3029, %v3186
    %3188 = vdwg.mxu0
    %3189 = vmatpush.bf16.msra.mxu0 %v3142
    %3190 = vmatpush.bf16.msra.mxu0 %v3141
    %3191 = vmatpush.bf16.msra.mxu0 %v3140
    %3192 = vmatpush.bf16.msra.mxu0 %v3139
    %3193 = vmatpush.bf16.msra.mxu0 %v3138
    %3194 = vmatpush.bf16.msra.mxu0 %v3137
    %3195 = vmatpush.bf16.msra.mxu0 %v3136
    %3196 = vmatpush.bf16.msra.mxu0 %v3135
    %3197 = vmatmul.bf16.gmra.mxu0 %v2971
    %v3198 = vpop.f32.mrf.mxu0
    %v3199 = vadd.f32 %v3185, %v3198
    %v3200 = vpop.f32.mrf.mxu0
    %v3201 = vadd.f32 %v3187, %v3200
    %3202 = vdwg.mxu0
    %3203 = vmatpush.bf16.msra.mxu0 %v3150
    %3204 = vmatpush.bf16.msra.mxu0 %v3149
    %3205 = vmatpush.bf16.msra.mxu0 %v3148
    %3206 = vmatpush.bf16.msra.mxu0 %v3147
    %3207 = vmatpush.bf16.msra.mxu0 %v3146
    %3208 = vmatpush.bf16.msra.mxu0 %v3145
    %3209 = vmatpush.bf16.msra.mxu0 %v3144
    %3210 = vmatpush.bf16.msra.mxu0 %v3143
    %3211 = vmatmul.bf16.gmra.mxu0 %v2977
    %v3212 = vpop.f32.mrf.mxu0
    %v3213 = vadd.f32 %v3199, %v3212
    %v3214 = vpop.f32.mrf.mxu0
    %v3215 = vadd.f32 %v3201, %v3214
    %3216 = vdwg.mxu0
    %v3217 = vmax.f32 %v3213, 0.0
    %v3218 = vmax.f32 %v3215, 0.0
    %v3219 = vpack.c.bf16 %v3218, %v3217
    %v3220 = vld [vmem:[#allocation11] sm:$0xf]
    %v3221 = vld [vmem:[#allocation11 + $0x4] sm:$0xf]
    %v3222 = vld [vmem:[#allocation11 + $0x8] sm:$0xf]
    %v3223 = vld [vmem:[#allocation11 + $0xc] sm:$0xf]
    %v3224 = vld [vmem:[#allocation11 + $0x10] sm:$0xf]
    %v3225 = vld [vmem:[#allocation11 + $0x14] sm:$0xf]
    %v3226 = vld [vmem:[#allocation11 + $0x18] sm:$0xf]
    %v3227 = vld [vmem:[#allocation11 + $0x1c] sm:$0xf]
    %v3228 = vld [vmem:[#allocation11 + $0x20] sm:$0xf]
    %v3229 = vld [vmem:[#allocation11 + $0x24] sm:$0xf]
    %v3230 = vld [vmem:[#allocation11 + $0x28] sm:$0xf]
    %v3231 = vld [vmem:[#allocation11 + $0x2c] sm:$0xf]
    %v3232 = vld [vmem:[#allocation11 + $0x30] sm:$0xf]
    %v3233 = vld [vmem:[#allocation11 + $0x34] sm:$0xf]
    %v3234 = vld [vmem:[#allocation11 + $0x38] sm:$0xf]
    %v3235 = vld [vmem:[#allocation11 + $0x3c] sm:$0xf]
    %v3236 = vld [vmem:[%s16] sm:$0x1]
    %v3238 = vperm.slane %v3236, 0
    %v3256 = vunpack.c.l.b16 %v3220
    %v3257 = vunpack.c.l.b16 %v3221
    %v3258 = vunpack.c.l.b16 %v3222
    %v3259 = vunpack.c.l.b16 %v3223
    %v3260 = vunpack.c.l.b16 %v3224
    %v3261 = vunpack.c.l.b16 %v3225
    %v3262 = vunpack.c.l.b16 %v3226
    %v3263 = vunpack.c.l.b16 %v3227
    %v3264 = vunpack.c.l.b16 %v3228
    %v3265 = vunpack.c.l.b16 %v3229
    %v3266 = vunpack.c.l.b16 %v3230
    %v3267 = vunpack.c.l.b16 %v3231
    %v3268 = vunpack.c.l.b16 %v3232
    %v3269 = vunpack.c.l.b16 %v3233
    %v3270 = vunpack.c.l.b16 %v3234
    %v3271 = vunpack.c.l.b16 %v3235
    %v3272 = vpack.c.b16 %v3257, %v3256
    %v3273 = vpack.c.b16 %v3259, %v3258
    %v3274 = vpack.c.b16 %v3261, %v3260
    %v3275 = vpack.c.b16 %v3263, %v3262
    %v3276 = vpack.c.b16 %v3265, %v3264
    %v3277 = vpack.c.b16 %v3267, %v3266
    %v3278 = vpack.c.b16 %v3269, %v3268
    %v3279 = vpack.c.b16 %v3271, %v3270
    %3288 = vmatpush.bf16.msra.mxu0 %v3279
    %3289 = vmatpush.bf16.msra.mxu0 %v3278
    %3290 = vmatpush.bf16.msra.mxu0 %v3277
    %3291 = vmatpush.bf16.msra.mxu0 %v3276
    %3292 = vmatpush.bf16.msra.mxu0 %v3275
    %3293 = vmatpush.bf16.msra.mxu0 %v3274
    %3294 = vmatpush.bf16.msra.mxu0 %v3273
    %3295 = vmatpush.bf16.msra.mxu0 %v3272
    %3296 = vmatmul.bf16.gmra.mxu0 %v3219
    %v3297 = vpop.f32.mrf.mxu0
    %v3298 = vadd.f32 %v3238, %v3297
    %v3299 = vpop.f32.mrf.mxu0
    %v3300 = vadd.f32 %v3238, %v3299
    %3301 = vdwg.mxu0
    %3302 = vst [vmem:[%s17] sm:$0xff] %v3298
    %3303 = vst [vmem:[%s17 + $0x8] sm:$0xff] %v3300
    // Predicated region
    $region94: #{oracle_forward.1} parent=1 // pred_check
      _
    $region95: #{oracle_forward.1} parent=1 // pred_check_branch
      %3305 = sbr.rel (0) target = $region97
    $region96: #{oracle_forward.1} parent=1 // pred_region
      _
    $region97: #{oracle_forward.1} parent=1 // pred_fallthru
      _
    // Predicated region
    $region98: #{oracle_forward.1} parent=1 // pred_check
      _
    $region99: #{oracle_forward.1} parent=1 // pred_check_branch
      %3307 = sbr.rel (0) target = $region101
    $region100: #{oracle_forward.1} parent=1 // pred_region
      _
    $region101: #{oracle_forward.1} parent=1 // pred_fallthru
      _
    %3308 = vsyncpa [#allocation4], 1
    %3309 = vsyncpa [#allocation6], 1
    %3310 = vsyncpa [#allocation9], 1
    %3311 = vsyncpa [#allocation12], 1

</llo_original>
